<compile_context>
chip_gen: v7x
topology: tpu7x:2x2x1
jax: 0.10.0
libtpu: 0.0.40
codegen_flags: <defaults>
</compile_context>

<pallas_src>
from functools import partial

import jax
import jax.numpy as jnp
from jax import lax
from jax.experimental import pallas as pl
from jax.experimental.pallas import tpu as pltpu

# ---------------------------------------------------------------------------
# Model dimensions (from GeluNet.__init__)
# ---------------------------------------------------------------------------
IN_F = 13
H1, H2, H3 = 1024, 1024, 128
OUT_F = 4
DIMS = [IN_F, H1, H2, H3, OUT_F]

LANE = 128
IN_PAD = LANE        # 13 -> 128 (zero padded feature lanes)
OUT_PAD = LANE       # 4  -> 128 (zero padded, lane-dense output slab)
BATCH_TILE = 512     # max rows per grid step (was 128)


def _gelu_exact(v):
    """Exact (erf-based) GELU, evaluated in v's dtype (f32 or bf16)."""
    dt = v.dtype
    return (jnp.asarray(0.5, dt) * v *
            (jnp.asarray(1.0, dt) +
             lax.erf(v * jnp.asarray(0.7071067811865476, dt))))


# ---------------------------------------------------------------------------
# One-time hardware capability probes (resolved OUTSIDE any jit trace).
# ---------------------------------------------------------------------------
_BF16_GELU_OK = None
_SINGLE_BUF_OK = None


def _use_bf16_gelu():
    """bf16 GELU only pays off on chips with a bf16 VPU (v6e / v7x), and only
    if the installed Mosaic lowers erf on bf16 — probe both once."""
    global _BF16_GELU_OK
    if _BF16_GELU_OK is not None:
        return _BF16_GELU_OK
    ok = False
    try:
        kind = jax.devices()[0].device_kind.lower()
        if any(tag in kind for tag in ("v6", "v7", "7x")):
            def _probe(x_ref, o_ref):
                o_ref[...] = _gelu_exact(x_ref[...])
            fn = pl.pallas_call(
                _probe,
                out_shape=jax.ShapeDtypeStruct((16, 128), jnp.bfloat16))
            jax.block_until_ready(
                jax.jit(fn)(jnp.zeros((16, 128), jnp.bfloat16)))
            ok = True
    except Exception:
        ok = False
    _BF16_GELU_OK = ok
    return ok


def _single_buffer_weights_supported():
    """Probe pipeline_mode=pl.Buffered(1) (single-buffered constant blocks)."""
    global _SINGLE_BUF_OK
    if _SINGLE_BUF_OK is not None:
        return _SINGLE_BUF_OK
    ok = False
    try:
        def _probe(a_ref, o_ref):
            o_ref[...] = a_ref[...] + 1.0
        fn = pl.pallas_call(
            _probe,
            out_shape=jax.ShapeDtypeStruct((8, 128), jnp.float32),
            grid=(2,),
            in_specs=[pl.BlockSpec((8, 128), lambda i: (0, 0),
                                   pipeline_mode=pl.Buffered(1))],
            out_specs=pl.BlockSpec((8, 128), lambda i: (0, 0)))
        jax.block_until_ready(jax.jit(fn)(jnp.zeros((8, 128), jnp.float32)))
        ok = True
    except Exception:
        ok = False
    _SINGLE_BUF_OK = ok
    return ok


# ---------------------------------------------------------------------------
# Kernel
# ---------------------------------------------------------------------------
def _gelu_net_kernel(act_dtype,
                     x_ref,
                     w1_ref, b1_ref,
                     w2_ref, b2_ref,
                     w3_ref, b3_ref,
                     w4_ref, b4_ref,
                     o_ref):
    """Fused 4-layer MLP: (Linear+GELU) x3 then Linear, for one batch tile.

    Matmuls accumulate in f32 (preferred_element_type); bias add stays f32;
    the GELU is evaluated in `act_dtype` (bf16 on v6e/v7x, f32 otherwise) and
    its result feeds the next matmul without a further cast.
    """
    def dense(h, w_ref, b_ref):
        w = w_ref[...]
        acc = jnp.dot(h.astype(w.dtype), w, preferred_element_type=jnp.float32)
        return acc + b_ref[...]               # bias add in f32

    h = x_ref[...]                            # [bt, 128] f32 (padded features)
    h = _gelu_exact(dense(h, w1_ref, b1_ref).astype(act_dtype))
    h = _gelu_exact(dense(h, w2_ref, b2_ref).astype(act_dtype))
    h = _gelu_exact(dense(h, w3_ref, b3_ref).astype(act_dtype))
    o_ref[...] = dense(h, w4_ref, b4_ref).astype(o_ref.dtype)


# ---------------------------------------------------------------------------
# Parameter prep (once, outside the jitted hot path)
# ---------------------------------------------------------------------------
def prepare_params(params, param_dtype=jnp.bfloat16):
    """Pad ragged feature dims to 128 lanes and cast weights to `param_dtype`
    (biases stay f32 so the bias add is exact).  Zero pad rows/cols make the
    padded math exact."""
    (w1, b1), (w2, b2), (w3, b3), (w4, b4) = params

    w1p = jnp.zeros((IN_PAD, H1), param_dtype).at[:IN_F, :].set(
        w1.astype(param_dtype))
    w2p = w2.astype(param_dtype)
    w3p = w3.astype(param_dtype)
    w4p = jnp.zeros((H3, OUT_PAD), param_dtype).at[:, :OUT_F].set(
        w4.astype(param_dtype))

    b1p = b1.reshape(1, H1).astype(jnp.float32)
    b2p = b2.reshape(1, H2).astype(jnp.float32)
    b3p = b3.reshape(1, H3).astype(jnp.float32)
    b4p = jnp.zeros((1, OUT_PAD), jnp.float32).at[:, :OUT_F].set(
        b4.astype(jnp.float32))

    return (w1p, b1p, w2p, b2p, w3p, b3p, w4p, b4p)


# ---------------------------------------------------------------------------
# Batch tiling policy
# ---------------------------------------------------------------------------
def _batch_tiling(b):
    """Return (batch_tile, num_tiles, padded_batch)."""
    if b <= 256:
        # One full-extent tile (block == full dim is always layout-legal);
        # a single grid step minimizes fixed per-step overhead.
        return b, 1, b
    if b <= BATCH_TILE:
        # 256 < b <= 512: split in two tiles when halves stay a multiple of 8
        # sublanes, so v7x's two TensorCores both get work.
        if b % 16 == 0:
            return b // 2, 2, b
        return b, 1, b
    nb = pl.cdiv(b, BATCH_TILE)
    return BATCH_TILE, nb, nb * BATCH_TILE


# ---------------------------------------------------------------------------
# Forward
# ---------------------------------------------------------------------------
@partial(jax.jit, static_argnames=("act_dtype", "single_buf_weights"))
def _gelu_net_jit(x, prepared, act_dtype, single_buf_weights):
    b = x.shape[0]
    w1p, b1p, w2p, b2p, w3p, b3p, w4p, b4p = prepared

    bt, nb, b_pad = _batch_tiling(b)

    # Single pad op: batch rows to a whole number of tiles, feature lanes
    # 13 -> 128.  (Zero rows of w1 / zero input rows keep the math exact.)
    x_p = jnp.pad(x, ((0, b_pad - b), (0, IN_PAD - IN_F)))

    const = lambda i: (0, 0)   # weights / biases: same block every grid step
    wkwargs = ({"pipeline_mode": pl.Buffered(1)}
               if single_buf_weights else {})

    def wspec(shape):
        return pl.BlockSpec(shape, const, **wkwargs)

    in_specs = [
        pl.BlockSpec((bt, IN_PAD), lambda i: (i, 0)),   # x
        wspec((IN_PAD, H1)), wspec((1, H1)),            # w1, b1
        wspec((H1, H2)),     wspec((1, H2)),            # w2, b2
        wspec((H2, H3)),     wspec((1, H3)),            # w3, b3
        wspec((H3, OUT_PAD)), wspec((1, OUT_PAD)),      # w4, b4
    ]
    out_specs = pl.BlockSpec((bt, OUT_PAD), lambda i: (i, 0))

    weight_bytes = sum(int(a.size) * a.dtype.itemsize
                       for a in (w1p, b1p, w2p, b2p, w3p, b3p, w4p, b4p))
    flops = 2 * b_pad * (IN_PAD * H1 + H1 * H2 + H2 * H3 + H3 * OUT_PAD)
    transcendentals = b_pad * (H1 + H2 + H3)        # one erf per GELU input
    bytes_accessed = (weight_bytes + int(x_p.size) * 4
                      + b_pad * OUT_PAD * 4)

    out_padded = pl.pallas_call(
        partial(_gelu_net_kernel, act_dtype),
        out_shape=jax.ShapeDtypeStruct((b_pad, OUT_PAD), jnp.float32),
        grid=(nb,),
        in_specs=in_specs,
        out_specs=out_specs,
        compiler_params=pltpu.CompilerParams(
            dimension_semantics=("parallel",),   # shard batch tiles (v7x 2TC)
            vmem_limit_bytes=32 << 20,           # legal on v5e/v6e/v7x
        ),
        cost_estimate=pl.CostEstimate(
            flops=flops,
            transcendentals=transcendentals,
            bytes_accessed=bytes_accessed),
    )(x_p, w1p, b1p, w2p, b2p, w3p, b3p, w4p, b4p)

    return out_padded[:b, :OUT_F]


def gelu_net(x, prepared, act_dtype=None):
    """x: [B, 13] f32, prepared: output of prepare_params -> [B, 4] f32.

    Resolves hardware capabilities (bf16 GELU, single-buffered weights)
    outside the trace, then calls the jitted implementation.
    """
    if act_dtype is None:
        act_dtype = jnp.bfloat16 if _use_bf16_gelu() else jnp.float32
    single_buf = _single_buffer_weights_supported()
    return _gelu_net_jit(x, prepared, act_dtype, single_buf)


# ---------------------------------------------------------------------------
# Params init + pure-JAX reference
# ---------------------------------------------------------------------------
def init_params(key):
    """Deterministic PyTorch-style parameter init (synthetic; not a ckpt)."""
    params = []
    for i in range(len(DIMS) - 1):
        fan_in, fan_out = DIMS[i], DIMS[i + 1]
        key, kw, kb = jax.random.split(key, 3)
        bound = 1.0 / jnp.sqrt(jnp.float32(fan_in))
        w = jax.random.uniform(kw, (fan_in, fan_out), jnp.float32, -bound, bound)
        bv = jax.random.uniform(kb, (fan_out,), jnp.float32, -bound, bound)
        params.append((w, bv))
    return params


def _reference(x, params):
    """Pure-JAX f32 reference matching GeluNet.forward (exact erf GELU)."""
    h = x
    for i, (w, bv) in enumerate(params):
        h = h @ w + bv
        if i < len(params) - 1:
            h = jax.nn.gelu(h, approximate=False)
    return h


if __name__ == "__main__":
    key = jax.random.PRNGKey(0)
    kx, kx2, kp = jax.random.split(key, 3)

    params = init_params(kp)

    # --- small batch (matches the nn.Module usage scale) ---------------------
    batch = 8
    x = jax.random.normal(kx, (batch, IN_F), jnp.float32)
    ref = _reference(x, params)

    # f32 weight / f32 GELU path: numerically matches the reference.
    prepared_f32 = prepare_params(params, param_dtype=jnp.float32)
    out_f32 = jax.block_until_ready(
        gelu_net(x, prepared_f32, act_dtype=jnp.float32))
    assert out_f32.shape == (batch, OUT_F), out_f32.shape
    assert jnp.allclose(out_f32, ref, atol=1e-4, rtol=1e-4), float(
        jnp.max(jnp.abs(out_f32 - ref)))

    # Default fast path: bf16 weights; GELU in bf16 on v6e/v7x, f32 on v5e.
    prepared_bf16 = prepare_params(params)            # bfloat16 weights
    out_fast = jax.block_until_ready(gelu_net(x, prepared_bf16))
    assert out_fast.shape == (batch, OUT_F), out_fast.shape
    assert jnp.allclose(out_fast, ref, atol=5e-2, rtol=5e-2), float(
        jnp.max(jnp.abs(out_fast - ref)))

    # --- multi-tile batch (exercises the 512-row tiling + row padding) -------
    batch2 = 600
    x2 = jax.random.normal(kx2, (batch2, IN_F), jnp.float32)
    ref2 = _reference(x2, params)
    out2 = jax.block_until_ready(gelu_net(x2, prepared_bf16))
    assert out2.shape == (batch2, OUT_F), out2.shape
    assert jnp.allclose(out2, ref2, atol=5e-2, rtol=5e-2), float(
        jnp.max(jnp.abs(out2 - ref2)))

    print("KERNEL_OK")
</pallas_src>

<mosaic_0001>
module attributes {stable_mosaic.version = 11 : i64} {
  func.func @_probe(%arg0: i32, %arg1: memref<8x128xf32, #tpu.memory_space<vmem>>, %arg2: memref<8x128xf32, #tpu.memory_space<vmem>>) attributes {dimension_semantics = [#tpu.dimension_semantics<arbitrary>], iteration_bounds = array<i64: 2>, scalar_prefetch = 0 : i64, scratch_operands = 0 : i64, tpu.core_type = #tpu.core_type<tc>, window_params = [{pipeline_mode = #tpu.pipeline_mode<synchronous>, transform_indices = @transform_0, window_bounds = array<i64: 8, 128>}, {pipeline_mode = #tpu.pipeline_mode<synchronous>, transform_indices = @transform_1, window_bounds = array<i64: 8, 128>}]} {
    %c0 = arith.constant 0 : index
    %c0_0 = arith.constant 0 : index
    %0 = vector.load %arg1[%c0, %c0_0] : memref<8x128xf32, #tpu.memory_space<vmem>>, vector<8x128xf32>
    %cst = arith.constant 1.000000e+00 : f32
    %1 = vector.broadcast %cst : f32 to vector<8x128xf32>
    %2 = arith.addf %0, %1 : vector<8x128xf32>
    %c0_1 = arith.constant 0 : index
    %c0_2 = arith.constant 0 : index
    %3 = vector.load %arg2[%c0_1, %c0_2] : memref<8x128xf32, #tpu.memory_space<vmem>>, vector<8x128xf32>
    tpu.vector_store %arg2[%c0_1, %c0_2], %2 {strides = array<i32>} : memref<8x128xf32, #tpu.memory_space<vmem>>, vector<8x128xf32>,
    return
  }
  func.func @transform_0(%arg0: i32) -> (i32, i32) {
    %c0_i32 = arith.constant 0 : i32
    %c0_i32_0 = arith.constant 0 : i32
    %c0_i32_1 = arith.constant 0 : i32
    return %c0_i32, %c0_i32_0 : i32, i32
  }
  func.func @transform_1(%arg0: i32) -> (i32, i32) {
    %c0_i32 = arith.constant 0 : i32
    %c0_i32_0 = arith.constant 0 : i32
    %c0_i32_1 = arith.constant 0 : i32
    return %c0_i32, %c0_i32_0 : i32, i32
  }
}

module attributes {stable_mosaic.version = 11 : i64} {
  func.func @_gelu_net_kernel(%arg0: i32, %arg1: memref<8x128xf32, #tpu.memory_space<vmem>>, %arg2: memref<128x1024xf32, #tpu.memory_space<vmem>>, %arg3: memref<1x1024xf32, #tpu.memory_space<vmem>>, %arg4: memref<1024x1024xf32, #tpu.memory_space<vmem>>, %arg5: memref<1x1024xf32, #tpu.memory_space<vmem>>, %arg6: memref<1024x128xf32, #tpu.memory_space<vmem>>, %arg7: memref<1x128xf32, #tpu.memory_space<vmem>>, %arg8: memref<128x128xf32, #tpu.memory_space<vmem>>, %arg9: memref<1x128xf32, #tpu.memory_space<vmem>>, %arg10: memref<8x128xf32, #tpu.memory_space<vmem>>) attributes {dimension_semantics = [#tpu.dimension_semantics<parallel>], iteration_bounds = array<i64: 1>, scalar_prefetch = 0 : i64, scratch_operands = 0 : i64, tpu.core_type = #tpu.core_type<tc>, window_params = [{transform_indices = @transform_0, window_bounds = array<i64: 8, 128>}, {pipeline_mode = #tpu.pipeline_mode<synchronous>, transform_indices = @transform_1, window_bounds = array<i64: 128, 1024>}, {pipeline_mode = #tpu.pipeline_mode<synchronous>, transform_indices = @transform_2, window_bounds = array<i64: 1, 1024>}, {pipeline_mode = #tpu.pipeline_mode<synchronous>, transform_indices = @transform_3, window_bounds = array<i64: 1024, 1024>}, {pipeline_mode = #tpu.pipeline_mode<synchronous>, transform_indices = @transform_4, window_bounds = array<i64: 1, 1024>}, {pipeline_mode = #tpu.pipeline_mode<synchronous>, transform_indices = @transform_5, window_bounds = array<i64: 1024, 128>}, {pipeline_mode = #tpu.pipeline_mode<synchronous>, transform_indices = @transform_6, window_bounds = array<i64: 1, 128>}, {pipeline_mode = #tpu.pipeline_mode<synchronous>, transform_indices = @transform_7, window_bounds = array<i64: 128, 128>}, {pipeline_mode = #tpu.pipeline_mode<synchronous>, transform_indices = @transform_8, window_bounds = array<i64: 1, 128>}, {transform_indices = @transform_9, window_bounds = array<i64: 8, 128>}]} {
    %c0 = arith.constant 0 : index
    %c0_0 = arith.constant 0 : index
    %0 = vector.load %arg1[%c0, %c0_0] : memref<8x128xf32, #tpu.memory_space<vmem>>, vector<8x128xf32>
    %c0_1 = arith.constant 0 : index
    %c0_2 = arith.constant 0 : index
    %1 = vector.load %arg2[%c0_1, %c0_2] : memref<128x1024xf32, #tpu.memory_space<vmem>>, vector<128x1024xf32>
    %cst = arith.constant dense<0.000000e+00> : vector<8x1024xf32>
    %2 = tpu.matmul %0, %1, %cst {dimension_numbers = #tpu.dot_dimension_numbers<[1], [0], [0], [1], [0, 0, 1, 1], [], []>} : vector<8x128xf32>, vector<128x1024xf32>, vector<8x1024xf32> -> vector<8x1024xf32>
    %c0_3 = arith.constant 0 : index
    %c0_4 = arith.constant 0 : index
    %3 = vector.load %arg3[%c0_3, %c0_4] : memref<1x1024xf32, #tpu.memory_space<vmem>>, vector<1x1024xf32>
    %4 = vector.broadcast %3 : vector<1x1024xf32> to vector<8x1024xf32>
    %5 = arith.addf %2, %4 : vector<8x1024xf32>
    %cst_5 = arith.constant 5.000000e-01 : f32
    %6 = vector.broadcast %cst_5 : f32 to vector<8x1024xf32>
    %7 = arith.mulf %6, %5 : vector<8x1024xf32>
    %cst_6 = arith.constant 0.707106769 : f32
    %8 = vector.broadcast %cst_6 : f32 to vector<8x1024xf32>
    %9 = arith.mulf %5, %8 : vector<8x1024xf32>
    %10 = math.erf %9 : vector<8x1024xf32>
    %cst_7 = arith.constant 1.000000e+00 : f32
    %11 = vector.broadcast %cst_7 : f32 to vector<8x1024xf32>
    %12 = arith.addf %11, %10 : vector<8x1024xf32>
    %13 = arith.mulf %7, %12 : vector<8x1024xf32>
    %c0_8 = arith.constant 0 : index
    %c0_9 = arith.constant 0 : index
    %14 = vector.load %arg4[%c0_8, %c0_9] : memref<1024x1024xf32, #tpu.memory_space<vmem>>, vector<1024x1024xf32>
    %cst_10 = arith.constant dense<0.000000e+00> : vector<8x1024xf32>
    %15 = tpu.matmul %13, %14, %cst_10 {dimension_numbers = #tpu.dot_dimension_numbers<[1], [0], [0], [1], [0, 0, 1, 1], [], []>} : vector<8x1024xf32>, vector<1024x1024xf32>, vector<8x1024xf32> -> vector<8x1024xf32>
    %c0_11 = arith.constant 0 : index
    %c0_12 = arith.constant 0 : index
    %16 = vector.load %arg5[%c0_11, %c0_12] : memref<1x1024xf32, #tpu.memory_space<vmem>>, vector<1x1024xf32>
    %17 = vector.broadcast %16 : vector<1x1024xf32> to vector<8x1024xf32>
    %18 = arith.addf %15, %17 : vector<8x1024xf32>
    %cst_13 = arith.constant 5.000000e-01 : f32
    %19 = vector.broadcast %cst_13 : f32 to vector<8x1024xf32>
    %20 = arith.mulf %19, %18 : vector<8x1024xf32>
    %cst_14 = arith.constant 0.707106769 : f32
    %21 = vector.broadcast %cst_14 : f32 to vector<8x1024xf32>
    %22 = arith.mulf %18, %21 : vector<8x1024xf32>
    %23 = math.erf %22 : vector<8x1024xf32>
    %cst_15 = arith.constant 1.000000e+00 : f32
    %24 = vector.broadcast %cst_15 : f32 to vector<8x1024xf32>
    %25 = arith.addf %24, %23 : vector<8x1024xf32>
    %26 = arith.mulf %20, %25 : vector<8x1024xf32>
    %c0_16 = arith.constant 0 : index
    %c0_17 = arith.constant 0 : index
    %27 = vector.load %arg6[%c0_16, %c0_17] : memref<1024x128xf32, #tpu.memory_space<vmem>>, vector<1024x128xf32>
    %cst_18 = arith.constant dense<0.000000e+00> : vector<8x128xf32>
    %28 = tpu.matmul %26, %27, %cst_18 {dimension_numbers = #tpu.dot_dimension_numbers<[1], [0], [0], [1], [0, 0, 1, 1], [], []>} : vector<8x1024xf32>, vector<1024x128xf32>, vector<8x128xf32> -> vector<8x128xf32>
    %c0_19 = arith.constant 0 : index
    %c0_20 = arith.constant 0 : index
    %29 = vector.load %arg7[%c0_19, %c0_20] : memref<1x128xf32, #tpu.memory_space<vmem>>, vector<1x128xf32>
    %30 = vector.broadcast %29 : vector<1x128xf32> to vector<8x128xf32>
    %31 = arith.addf %28, %30 : vector<8x128xf32>
    %cst_21 = arith.constant 5.000000e-01 : f32
    %32 = vector.broadcast %cst_21 : f32 to vector<8x128xf32>
    %33 = arith.mulf %32, %31 : vector<8x128xf32>
    %cst_22 = arith.constant 0.707106769 : f32
    %34 = vector.broadcast %cst_22 : f32 to vector<8x128xf32>
    %35 = arith.mulf %31, %34 : vector<8x128xf32>
    %36 = math.erf %35 : vector<8x128xf32>
    %cst_23 = arith.constant 1.000000e+00 : f32
    %37 = vector.broadcast %cst_23 : f32 to vector<8x128xf32>
    %38 = arith.addf %37, %36 : vector<8x128xf32>
    %39 = arith.mulf %33, %38 : vector<8x128xf32>
    %c0_24 = arith.constant 0 : index
    %c0_25 = arith.constant 0 : index
    %40 = vector.load %arg8[%c0_24, %c0_25] : memref<128x128xf32, #tpu.memory_space<vmem>>, vector<128x128xf32>
    %cst_26 = arith.constant dense<0.000000e+00> : vector<8x128xf32>
    %41 = tpu.matmul %39, %40, %cst_26 {dimension_numbers = #tpu.dot_dimension_numbers<[1], [0], [0], [1], [0, 0, 1, 1], [], []>} : vector<8x128xf32>, vector<128x128xf32>, vector<8x128xf32> -> vector<8x128xf32>
    %c0_27 = arith.constant 0 : index
    %c0_28 = arith.constant 0 : index
    %42 = vector.load %arg9[%c0_27, %c0_28] : memref<1x128xf32, #tpu.memory_space<vmem>>, vector<1x128xf32>
    %43 = vector.broadcast %42 : vector<1x128xf32> to vector<8x128xf32>
    %44 = arith.addf %41, %43 : vector<8x128xf32>
    %c0_29 = arith.constant 0 : index
    %c0_30 = arith.constant 0 : index
    %45 = vector.load %arg10[%c0_29, %c0_30] : memref<8x128xf32, #tpu.memory_space<vmem>>, vector<8x128xf32>
    tpu.vector_store %arg10[%c0_29, %c0_30], %44 {strides = array<i32>} : memref<8x128xf32, #tpu.memory_space<vmem>>, vector<8x128xf32>,
    return
  }
  func.func @transform_0(%arg0: i32) -> (i32, i32) {
    %c0_i32 = arith.constant 0 : i32
    %c0_i32_0 = arith.constant 0 : i32
    return %arg0, %c0_i32 : i32, i32
  }
  func.func @transform_1(%arg0: i32) -> (i32, i32) {
    %c0_i32 = arith.constant 0 : i32
    %c0_i32_0 = arith.constant 0 : i32
    %c0_i32_1 = arith.constant 0 : i32
    return %c0_i32, %c0_i32_0 : i32, i32
  }
  func.func @transform_2(%arg0: i32) -> (i32, i32) {
    %c0_i32 = arith.constant 0 : i32
    %c0_i32_0 = arith.constant 0 : i32
    %c0_i32_1 = arith.constant 0 : i32
    return %c0_i32, %c0_i32_0 : i32, i32
  }
  func.func @transform_3(%arg0: i32) -> (i32, i32) {
    %c0_i32 = arith.constant 0 : i32
    %c0_i32_0 = arith.constant 0 : i32
    %c0_i32_1 = arith.constant 0 : i32
    return %c0_i32, %c0_i32_0 : i32, i32
  }
  func.func @transform_4(%arg0: i32) -> (i32, i32) {
    %c0_i32 = arith.constant 0 : i32
    %c0_i32_0 = arith.constant 0 : i32
    %c0_i32_1 = arith.constant 0 : i32
    return %c0_i32, %c0_i32_0 : i32, i32
  }
  func.func @transform_5(%arg0: i32) -> (i32, i32) {
    %c0_i32 = arith.constant 0 : i32
    %c0_i32_0 = arith.constant 0 : i32
    %c0_i32_1 = arith.constant 0 : i32
    return %c0_i32, %c0_i32_0 : i32, i32
  }
  func.func @transform_6(%arg0: i32) -> (i32, i32) {
    %c0_i32 = arith.constant 0 : i32
    %c0_i32_0 = arith.constant 0 : i32
    %c0_i32_1 = arith.constant 0 : i32
    return %c0_i32, %c0_i32_0 : i32, i32
  }
  func.func @transform_7(%arg0: i32) -> (i32, i32) {
    %c0_i32 = arith.constant 0 : i32
    %c0_i32_0 = arith.constant 0 : i32
    %c0_i32_1 = arith.constant 0 : i32
    return %c0_i32, %c0_i32_0 : i32, i32
  }
  func.func @transform_8(%arg0: i32) -> (i32, i32) {
    %c0_i32 = arith.constant 0 : i32
    %c0_i32_0 = arith.constant 0 : i32
    %c0_i32_1 = arith.constant 0 : i32
    return %c0_i32, %c0_i32_0 : i32, i32
  }
  func.func @transform_9(%arg0: i32) -> (i32, i32) {
    %c0_i32 = arith.constant 0 : i32
    %c0_i32_0 = arith.constant 0 : i32
    return %arg0, %c0_i32 : i32, i32
  }
}

</mosaic_0001>

<llo_original>
// kernel: tpu_custom_call.1
$region0: #{tpu_custom_call.1}
  #allocation0 [shape = 'u32[]', space=smem, size = 0x4, offset = 0x4, fixed_abs, tag = 'smem constant byte address 0x4 - core index']
  #allocation1 [shape = 'u32[144,128]{1,0:T(1,128)}', space=vmem, size = 0x12000, scoped, tag = 'internal scratch']
  %s0 = inlined_call_operand.hbm [shape: f32[8,128], index: 0, kind: input, shape index: {}]
  %s1 = inlined_call_operand.hbm [shape: f32[8,128], index: 1, kind: output, shape index: {}]
  %s2 = sld [smem:[#allocation0]]
  $region41: #{tpu_custom_call.1} parent=0
    _
  %s4 = ssub.s32 1, %s2
  %s5 = scalar_select 0, %s4, %s2
  $region1: #{tpu_custom_call.1} parent=0
    #allocation2 [shape = 'u8[4096]{0}', space=vmem, size = 0x1000, scoped, tag = 'input window, operand 0, single buffered']
    #allocation3 [shape = 's32[2]{0}', space=sflag, size = 0x8, scoped, tag = 'scoped memory for tpu_custom_call.1']
    #allocation4 [shape = 's32[2]{0}', space=sflag, size = 0x8, scoped, tag = 'scoped memory for tpu_custom_call.1']
    #allocation5 [shape = 'u8[4096]{0}', space=vmem, size = 0x1000, scoped, tag = 'output window, operand 0, single buffered']
    %6 = vsyncpa [#allocation3], 0
    %7 = vsyncpa [#allocation4], 0
    loop: start=0, step=1, limit=4
    $region2: #{tpu_custom_call.1} parent=1 // loop_pre_header
      _
    $region3: #{tpu_custom_call.1} parent=1 // loop_header
      %s9 = sphi 0, %s13
      %p10 = scmp.ge.s32.totalorder %s9, 4
      %s17 = sphi 0, %s17
      %s19 = sphi 0, %s17
      %s20 = sphi 0, %s19
      %s34 = sphi 0, %s20
      %s38 = sphi 0, %s38
      %s40 = sphi 0, %s38
      %s41 = sphi 0, %s40
      %s55 = sphi 0, %s41
    $region4: #{tpu_custom_call.1} parent=1 // loop_header_branch
      %12 = sbr.rel (%p10) target = $region8
    $region5: #{tpu_custom_call.1} parent=1 // loop_body
      %s14 = ssub.s32 %s9, 1
      %s15 = ssub.s32 %s9, 2
      %s16 = sadd.s32 %s9, 1
      %s18 = sadd.s32 %s17, 1
      %p21 = scmp.eq.s32.totalorder %s9, 1
      %p22 = scmp.ne.s32.totalorder %s17, %s19
      %p23 = scmp.eq.s32.totalorder %s9, 0
      %p24 = por %p22, %p23
      %p25 = scmp.ne.s32.totalorder %s17, %s19
      %p26 = scmp.eq.s32.totalorder %s14, 1
      %p27 = por %p25, %p26
      %p28 = scmp.ne.s32.totalorder %s19, %s20
      %p29 = scmp.eq.s32.totalorder %s14, 0
      %p30 = por %p28, %p29
      %p31 = scmp.ne.s32.totalorder %s19, %s20
      %p32 = scmp.eq.s32.totalorder %s15, 1
      %p33 = por %p31, %p32
      %p35 = scmp.ne.s32.totalorder %s20, %s34
      %p36 = scmp.eq.s32.totalorder %s15, 0
      %p37 = por %p35, %p36
      %s39 = sadd.s32 %s38, 1
      %p42 = scmp.eq.s32.totalorder %s9, 1
      %p43 = scmp.ne.s32.totalorder %s38, %s40
      %p44 = scmp.eq.s32.totalorder %s9, 0
      %p45 = por %p43, %p44
      %p46 = scmp.ne.s32.totalorder %s38, %s40
      %p47 = scmp.eq.s32.totalorder %s14, 1
      %p48 = por %p46, %p47
      %p49 = scmp.ne.s32.totalorder %s40, %s41
      %p50 = scmp.eq.s32.totalorder %s14, 0
      %p51 = por %p49, %p50
      %p52 = scmp.ne.s32.totalorder %s40, %s41
      %p53 = scmp.eq.s32.totalorder %s15, 1
      %p54 = por %p52, %p53
      %p56 = scmp.ne.s32.totalorder %s41, %s55
      %p57 = scmp.eq.s32.totalorder %s15, 0
      %p58 = por %p56, %p57
      %p59 = scmp.le.s32.totalorder 1, %s9
      %p60 = scmp.lt.s32.totalorder %s9, 3
      %p61 = pnand %p59, %p60
      %p62 = pneg %p61
      // Predicated region
      $region9: #{tpu_custom_call.1} parent=5 // pred_check
        _
      $region10: #{tpu_custom_call.1} parent=5 // pred_check_branch
        %64 = sbr.rel (%p61) target = $region12
      $region11: #{tpu_custom_call.1} parent=5 // pred_region
        %s65 = ssub.s32 %s9, 1
        // Predicated region
        $region13: #{tpu_custom_call.1} parent=11 // pred_check
          %p66 = pneg %p30
        $region14: #{tpu_custom_call.1} parent=11 // pred_check_branch
          %68 = sbr.rel (%p66) target = $region16
        $region15: #{tpu_custom_call.1} parent=11 // pred_region
          %s70 = ssub.s32 128, 128
          %71 = vsyncadd [#allocation3], %s70
          %s73 = sshll.u32 [#allocation2], 4
          %s74 = int_to_ptr.vmem [resolvable:$true] %s73
          %76 = dma.hbm_to_vmem [thread:$0]  %s0, 128, %s74, [#allocation3]
        $region16: #{tpu_custom_call.1} parent=11 // pred_fallthru
          _
      $region12: #{tpu_custom_call.1} parent=5 // pred_fallthru
        _
      %p77 = scmp.lt.s32.totalorder %s9, 2
      // Predicated region
      $region17: #{tpu_custom_call.1} parent=5 // pred_check
        %p78 = pneg %p77
      $region18: #{tpu_custom_call.1} parent=5 // pred_check_branch
        %80 = sbr.rel (%p78) target = $region20
      $region19: #{tpu_custom_call.1} parent=5 // pred_region
        _
      $region20: #{tpu_custom_call.1} parent=5 // pred_fallthru
        _
      %p81 = scmp.le.s32.totalorder 1, %s9
      %p82 = scmp.lt.s32.totalorder %s9, 3
      %p83 = pnand %p81, %p82
      %p84 = pneg %p83
      // Predicated region
      $region21: #{tpu_custom_call.1} parent=5 // pred_check
        _
      $region22: #{tpu_custom_call.1} parent=5 // pred_check_branch
        %86 = sbr.rel (%p83) target = $region24
      $region23: #{tpu_custom_call.1} parent=5 // pred_region
        %s87 = ssub.s32 %s9, 1
        // Predicated region
        $region25: #{tpu_custom_call.1} parent=23 // pred_check
          %p88 = pneg %p30
        $region26: #{tpu_custom_call.1} parent=23 // pred_check_branch
          %90 = sbr.rel (%p88) target = $region28
        $region27: #{tpu_custom_call.1} parent=23 // pred_region
          %91 = dma.done [#allocation3], 128
        $region28: #{tpu_custom_call.1} parent=23 // pred_fallthru
          _
        %p92 = pneg %p30
        %p93 = pneg %p27
        %p94 = pneg %p51
        %p95 = pneg %p48
        %v96 = vld [vmem:[#allocation2] sm:$0xff]
        %v97 = vadd.f32 %v96, 1.0
        %98 = vst [vmem:[#allocation5] sm:$0xff] %v97
        // Predicated region
        $region29: #{tpu_custom_call.1} parent=23 // pred_check
          %p99 = pneg %p48
        $region30: #{tpu_custom_call.1} parent=23 // pred_check_branch
          %101 = sbr.rel (%p99) target = $region32
        $region31: #{tpu_custom_call.1} parent=23 // pred_region
          %s103 = ssub.s32 128, 128
          %104 = vsyncadd [#allocation4], %s103
          %s106 = sshll.u32 [#allocation5], 4
          %s107 = int_to_ptr.vmem [resolvable:$true] %s106
          %109 = dma.vmem_to_hbm [thread:$0]  %s107, 128, %s1, [#allocation4]
        $region32: #{tpu_custom_call.1} parent=23 // pred_fallthru
          _
        // Predicated region
        $region33: #{tpu_custom_call.1} parent=23 // pred_check
          %p110 = pneg %p48
        $region34: #{tpu_custom_call.1} parent=23 // pred_check_branch
          %112 = sbr.rel (%p110) target = $region36
        $region35: #{tpu_custom_call.1} parent=23 // pred_region
          %113 = dma.done [#allocation4], 128
        $region36: #{tpu_custom_call.1} parent=23 // pred_fallthru
          _
      $region24: #{tpu_custom_call.1} parent=5 // pred_fallthru
        _
      %p114 = scmp.le.s32.totalorder 2, %s9
      // Predicated region
      $region37: #{tpu_custom_call.1} parent=5 // pred_check
        %p115 = pneg %p114
      $region38: #{tpu_custom_call.1} parent=5 // pred_check_branch
        %117 = sbr.rel (%p115) target = $region40
      $region39: #{tpu_custom_call.1} parent=5 // pred_region
        %s118 = ssub.s32 %s9, 2
      $region40: #{tpu_custom_call.1} parent=5 // pred_fallthru
        _
    $region6: #{tpu_custom_call.1} parent=1 // loop_footer
      %s13 = sadd.s32 1, %s9
    $region7: #{tpu_custom_call.1} parent=1 // loop_footer_branch
      %8 = sbr.rel target = $region3
    $region8: #{tpu_custom_call.1} parent=1 // loop_exit
      _
    %119 = vsyncpa [#allocation3], 1
    %s120 = scalar_lea.sflag [#allocation3], 1
    %121 = vsyncpa %s120, 1
    %122 = vsyncpa [#allocation4], 1
    %s123 = scalar_lea.sflag [#allocation4], 1
    %124 = vsyncpa %s123, 1

// kernel: _gelu_net_jit.1
$region0: #{_gelu_net_jit.1}
  #allocation0 [shape = 'u32[]', space=smem, size = 0x4, offset = 0x4, fixed_abs, tag = 'smem constant byte address 0x4 - core index']
  #allocation1 [shape = 'u32[144,128]{1,0:T(1,128)}', space=vmem, size = 0x12000, scoped, tag = 'internal scratch']
  %s0 = inlined_call_operand.vmem [shape: f32[8,128], index: 0, kind: input, shape index: {}]
  %s1 = inlined_call_operand.hbm [shape: f32[128,1024], index: 1, kind: input, shape index: {}]
  %s2 = inlined_call_operand.hbm [shape: f32[1,1024], index: 2, kind: input, shape index: {}]
  %s3 = inlined_call_operand.hbm [shape: f32[1024,1024], index: 3, kind: input, shape index: {}]
  %s4 = inlined_call_operand.hbm [shape: f32[1,1024], index: 4, kind: input, shape index: {}]
  %s5 = inlined_call_operand.hbm [shape: f32[1024,128], index: 5, kind: input, shape index: {}]
  %s6 = inlined_call_operand.hbm [shape: f32[1,128], index: 6, kind: input, shape index: {}]
  %s7 = inlined_call_operand.hbm [shape: f32[128,128], index: 7, kind: input, shape index: {}]
  %s8 = inlined_call_operand.hbm [shape: f32[1,128], index: 8, kind: input, shape index: {}]
  %s9 = inlined_call_operand.vmem [shape: f32[8,128], index: 9, kind: output, shape index: {}]
  %s10 = sld [smem:[#allocation0]]
  $region78: #{_gelu_net_jit.1} parent=0
    _
  %s12 = ssub.s32 1, %s10
  %s13 = scalar_select 0, %s12, %s10
  $region1: #{_gelu_net_jit.1} parent=0
    #allocation2 [shape = 'u8[524288]{0}', space=vmem, size = 0x80000, scoped, tag = 'input window, operand 1, single buffered']
    #allocation3 [shape = 's32[1]{0}', space=sflag, size = 0x4, scoped, tag = 'scoped memory for _gelu_net_jit.1']
    #allocation4 [shape = 'u8[4096]{0}', space=vmem, size = 0x1000, scoped, tag = 'input window, operand 2, single buffered']
    #allocation5 [shape = 's32[1]{0}', space=sflag, size = 0x4, scoped, tag = 'scoped memory for _gelu_net_jit.1']
    #allocation6 [shape = 'u8[4194304]{0}', space=vmem, size = 0x400000, scoped, tag = 'input window, operand 3, single buffered']
    #allocation7 [shape = 'u8[4096]{0}', space=vmem, size = 0x1000, scoped, tag = 'input window, operand 4, single buffered']
    #allocation8 [shape = 's32[1]{0}', space=sflag, size = 0x4, scoped, tag = 'scoped memory for _gelu_net_jit.1']
    #allocation9 [shape = 'u8[524288]{0}', space=vmem, size = 0x80000, scoped, tag = 'input window, operand 5, single buffered']
    #allocation10 [shape = 'u8[512]{0}', space=vmem, size = 0x400, scoped, tag = 'input window, operand 6, single buffered']
    #allocation11 [shape = 's32[1]{0}', space=sflag, size = 0x4, scoped, tag = 'scoped memory for _gelu_net_jit.1']
    #allocation12 [shape = 'u8[65536]{0}', space=vmem, size = 0x10000, scoped, tag = 'input window, operand 7, single buffered']
    #allocation13 [shape = 'u8[512]{0}', space=vmem, size = 0x400, scoped, tag = 'input window, operand 8, single buffered']
    #allocation14 [shape = 's32[1]{0}', space=sflag, size = 0x4, scoped, tag = 'scoped memory for _gelu_net_jit.1']
    %14 = vsyncpa [#allocation3], 0
    %15 = vsyncpa [#allocation5], 0
    %16 = vsyncpa [#allocation8], 0
    %17 = vsyncpa [#allocation11], 0
    %18 = vsyncpa [#allocation14], 0
    // Predicated region
    $region2: #{_gelu_net_jit.1} parent=1 // pred_check
      _
    $region3: #{_gelu_net_jit.1} parent=1 // pred_check_branch
      %20 = sbr.rel (0) target = $region5
    $region4: #{_gelu_net_jit.1} parent=1 // pred_region
      _
    $region5: #{_gelu_net_jit.1} parent=1 // pred_fallthru
      _
    // Predicated region
    $region6: #{_gelu_net_jit.1} parent=1 // pred_check
      _
    $region7: #{_gelu_net_jit.1} parent=1 // pred_check_branch
      %22 = sbr.rel (0) target = $region9
    $region8: #{_gelu_net_jit.1} parent=1 // pred_region
      %s24 = ssub.s32 16384, 16384
      %25 = vsyncadd [#allocation3], %s24
      %s26 = sshll.u32 [#allocation2], 4
      %s27 = int_to_ptr.vmem [resolvable:$true] %s26
      %32 = dma.hbm_to_vmem [thread:$0]  %s1, 16384, %s27, [#allocation3], 1024, 1024, 64
    $region9: #{_gelu_net_jit.1} parent=1 // pred_fallthru
      _
    // Predicated region
    $region10: #{_gelu_net_jit.1} parent=1 // pred_check
      _
    $region11: #{_gelu_net_jit.1} parent=1 // pred_check_branch
      %34 = sbr.rel (0) target = $region13
    $region12: #{_gelu_net_jit.1} parent=1 // pred_region
      %s36 = ssub.s32 128, 128
      %37 = vsyncadd [#allocation5], %s36
      %s39 = sshll.u32 [#allocation4], 4
      %s40 = int_to_ptr.vmem [resolvable:$true] %s39
      %42 = dma.hbm_to_vmem [thread:$0]  %s2, 128, %s40, [#allocation5]
    $region13: #{_gelu_net_jit.1} parent=1 // pred_fallthru
      _
    // Predicated region
    $region14: #{_gelu_net_jit.1} parent=1 // pred_check
      _
    $region15: #{_gelu_net_jit.1} parent=1 // pred_check_branch
      %44 = sbr.rel (0) target = $region17
    $region16: #{_gelu_net_jit.1} parent=1 // pred_region
      %s46 = ssub.s32 131072, 131072
      %47 = vsyncadd [#allocation5], %s46
      %s48 = sshll.u32 [#allocation6], 4
      %s49 = int_to_ptr.vmem [resolvable:$true] %s48
      %54 = dma.hbm_to_vmem [thread:$0]  %s3, 131072, %s49, [#allocation5], 1024, 1024, 64
    $region17: #{_gelu_net_jit.1} parent=1 // pred_fallthru
      _
    // Predicated region
    $region18: #{_gelu_net_jit.1} parent=1 // pred_check
      _
    $region19: #{_gelu_net_jit.1} parent=1 // pred_check_branch
      %56 = sbr.rel (0) target = $region21
    $region20: #{_gelu_net_jit.1} parent=1 // pred_region
      %s58 = ssub.s32 128, 128
      %59 = vsyncadd [#allocation8], %s58
      %s61 = sshll.u32 [#allocation7], 4
      %s62 = int_to_ptr.vmem [resolvable:$true] %s61
      %64 = dma.hbm_to_vmem [thread:$0]  %s4, 128, %s62, [#allocation8]
    $region21: #{_gelu_net_jit.1} parent=1 // pred_fallthru
      _
    // Predicated region
    $region22: #{_gelu_net_jit.1} parent=1 // pred_check
      _
    $region23: #{_gelu_net_jit.1} parent=1 // pred_check_branch
      %66 = sbr.rel (0) target = $region25
    $region24: #{_gelu_net_jit.1} parent=1 // pred_region
      %s68 = ssub.s32 16384, 16384
      %69 = vsyncadd [#allocation8], %s68
      %s70 = sshll.u32 [#allocation9], 4
      %s71 = int_to_ptr.vmem [resolvable:$true] %s70
      %76 = dma.hbm_to_vmem [thread:$0]  %s5, 16384, %s71, [#allocation8], 128, 128, 8
    $region25: #{_gelu_net_jit.1} parent=1 // pred_fallthru
      _
    // Predicated region
    $region26: #{_gelu_net_jit.1} parent=1 // pred_check
      _
    $region27: #{_gelu_net_jit.1} parent=1 // pred_check_branch
      %78 = sbr.rel (0) target = $region29
    $region28: #{_gelu_net_jit.1} parent=1 // pred_region
      %s80 = ssub.s32 16, 16
      %81 = vsyncadd [#allocation11], %s80
      %s83 = sshll.u32 [#allocation10], 4
      %s84 = int_to_ptr.vmem [resolvable:$true] %s83
      %86 = dma.hbm_to_vmem [thread:$0]  %s6, 16, %s84, [#allocation11]
    $region29: #{_gelu_net_jit.1} parent=1 // pred_fallthru
      _
    // Predicated region
    $region30: #{_gelu_net_jit.1} parent=1 // pred_check
      _
    $region31: #{_gelu_net_jit.1} parent=1 // pred_check_branch
      %88 = sbr.rel (0) target = $region33
    $region32: #{_gelu_net_jit.1} parent=1 // pred_region
      %s90 = ssub.s32 2048, 2048
      %91 = vsyncadd [#allocation11], %s90
      %s92 = sshll.u32 [#allocation12], 4
      %s93 = int_to_ptr.vmem [resolvable:$true] %s92
      %98 = dma.hbm_to_vmem [thread:$0]  %s7, 2048, %s93, [#allocation11], 128, 128, 8
    $region33: #{_gelu_net_jit.1} parent=1 // pred_fallthru
      _
    // Predicated region
    $region34: #{_gelu_net_jit.1} parent=1 // pred_check
      _
    $region35: #{_gelu_net_jit.1} parent=1 // pred_check_branch
      %100 = sbr.rel (0) target = $region37
    $region36: #{_gelu_net_jit.1} parent=1 // pred_region
      %s102 = ssub.s32 16, 16
      %103 = vsyncadd [#allocation14], %s102
      %s105 = sshll.u32 [#allocation13], 4
      %s106 = int_to_ptr.vmem [resolvable:$true] %s105
      %108 = dma.hbm_to_vmem [thread:$0]  %s8, 16, %s106, [#allocation14]
    $region37: #{_gelu_net_jit.1} parent=1 // pred_fallthru
      _
    // Predicated region
    $region38: #{_gelu_net_jit.1} parent=1 // pred_check
      _
    $region39: #{_gelu_net_jit.1} parent=1 // pred_check_branch
      %110 = sbr.rel (0) target = $region41
    $region40: #{_gelu_net_jit.1} parent=1 // pred_region
      %111 = dma.done [#allocation3], 16384
    $region41: #{_gelu_net_jit.1} parent=1 // pred_fallthru
      _
    // Predicated region
    $region42: #{_gelu_net_jit.1} parent=1 // pred_check
      _
    $region43: #{_gelu_net_jit.1} parent=1 // pred_check_branch
      %113 = sbr.rel (0) target = $region45
    $region44: #{_gelu_net_jit.1} parent=1 // pred_region
      %114 = dma.done [#allocation5], 128
    $region45: #{_gelu_net_jit.1} parent=1 // pred_fallthru
      _
    // Predicated region
    $region46: #{_gelu_net_jit.1} parent=1 // pred_check
      _
    $region47: #{_gelu_net_jit.1} parent=1 // pred_check_branch
      %116 = sbr.rel (0) target = $region49
    $region48: #{_gelu_net_jit.1} parent=1 // pred_region
      %117 = dma.done [#allocation5], 131072
    $region49: #{_gelu_net_jit.1} parent=1 // pred_fallthru
      _
    // Predicated region
    $region50: #{_gelu_net_jit.1} parent=1 // pred_check
      _
    $region51: #{_gelu_net_jit.1} parent=1 // pred_check_branch
      %119 = sbr.rel (0) target = $region53
    $region52: #{_gelu_net_jit.1} parent=1 // pred_region
      %120 = dma.done [#allocation8], 128
    $region53: #{_gelu_net_jit.1} parent=1 // pred_fallthru
      _
    // Predicated region
    $region54: #{_gelu_net_jit.1} parent=1 // pred_check
      _
    $region55: #{_gelu_net_jit.1} parent=1 // pred_check_branch
      %122 = sbr.rel (0) target = $region57
    $region56: #{_gelu_net_jit.1} parent=1 // pred_region
      %123 = dma.done [#allocation8], 16384
    $region57: #{_gelu_net_jit.1} parent=1 // pred_fallthru
      _
    // Predicated region
    $region58: #{_gelu_net_jit.1} parent=1 // pred_check
      _
    $region59: #{_gelu_net_jit.1} parent=1 // pred_check_branch
      %125 = sbr.rel (0) target = $region61
    $region60: #{_gelu_net_jit.1} parent=1 // pred_region
      %126 = dma.done [#allocation11], 16
    $region61: #{_gelu_net_jit.1} parent=1 // pred_fallthru
      _
    // Predicated region
    $region62: #{_gelu_net_jit.1} parent=1 // pred_check
      _
    $region63: #{_gelu_net_jit.1} parent=1 // pred_check_branch
      %128 = sbr.rel (0) target = $region65
    $region64: #{_gelu_net_jit.1} parent=1 // pred_region
      %129 = dma.done [#allocation11], 2048
    $region65: #{_gelu_net_jit.1} parent=1 // pred_fallthru
      _
    // Predicated region
    $region66: #{_gelu_net_jit.1} parent=1 // pred_check
      _
    $region67: #{_gelu_net_jit.1} parent=1 // pred_check_branch
      %131 = sbr.rel (0) target = $region69
    $region68: #{_gelu_net_jit.1} parent=1 // pred_region
      %132 = dma.done [#allocation14], 16
    $region69: #{_gelu_net_jit.1} parent=1 // pred_fallthru
      _
    %v133 = vld [vmem:[%s0] sm:$0xff]
    %v134 = vld [vmem:[#allocation2] sm:$0xff]
    %v135 = vld [vmem:[#allocation2 + $0x8] sm:$0xff]
    %v136 = vld [vmem:[#allocation2 + $0x10] sm:$0xff]
    %v137 = vld [vmem:[#allocation2 + $0x18] sm:$0xff]
    %v138 = vld [vmem:[#allocation2 + $0x20] sm:$0xff]
    %v139 = vld [vmem:[#allocation2 + $0x28] sm:$0xff]
    %v140 = vld [vmem:[#allocation2 + $0x30] sm:$0xff]
    %v141 = vld [vmem:[#allocation2 + $0x38] sm:$0xff]
    %v142 = vld [vmem:[#allocation2 + $0x40] sm:$0xff]
    %v143 = vld [vmem:[#allocation2 + $0x48] sm:$0xff]
    %v144 = vld [vmem:[#allocation2 + $0x50] sm:$0xff]
    %v145 = vld [vmem:[#allocation2 + $0x58] sm:$0xff]
    %v146 = vld [vmem:[#allocation2 + $0x60] sm:$0xff]
    %v147 = vld [vmem:[#allocation2 + $0x68] sm:$0xff]
    %v148 = vld [vmem:[#allocation2 + $0x70] sm:$0xff]
    %v149 = vld [vmem:[#allocation2 + $0x78] sm:$0xff]
    %v150 = vld [vmem:[#allocation2 + $0x80] sm:$0xff]
    %v151 = vld [vmem:[#allocation2 + $0x88] sm:$0xff]
    %v152 = vld [vmem:[#allocation2 + $0x90] sm:$0xff]
    %v153 = vld [vmem:[#allocation2 + $0x98] sm:$0xff]
    %v154 = vld [vmem:[#allocation2 + $0xa0] sm:$0xff]
    %v155 = vld [vmem:[#allocation2 + $0xa8] sm:$0xff]
    %v156 = vld [vmem:[#allocation2 + $0xb0] sm:$0xff]
    %v157 = vld [vmem:[#allocation2 + $0xb8] sm:$0xff]
    %v158 = vld [vmem:[#allocation2 + $0xc0] sm:$0xff]
    %v159 = vld [vmem:[#allocation2 + $0xc8] sm:$0xff]
    %v160 = vld [vmem:[#allocation2 + $0xd0] sm:$0xff]
    %v161 = vld [vmem:[#allocation2 + $0xd8] sm:$0xff]
    %v162 = vld [vmem:[#allocation2 + $0xe0] sm:$0xff]
    %v163 = vld [vmem:[#allocation2 + $0xe8] sm:$0xff]
    %v164 = vld [vmem:[#allocation2 + $0xf0] sm:$0xff]
    %v165 = vld [vmem:[#allocation2 + $0xf8] sm:$0xff]
    %v166 = vld [vmem:[#allocation2 + $0x100] sm:$0xff]
    %v167 = vld [vmem:[#allocation2 + $0x108] sm:$0xff]
    %v168 = vld [vmem:[#allocation2 + $0x110] sm:$0xff]
    %v169 = vld [vmem:[#allocation2 + $0x118] sm:$0xff]
    %v170 = vld [vmem:[#allocation2 + $0x120] sm:$0xff]
    %v171 = vld [vmem:[#allocation2 + $0x128] sm:$0xff]
    %v172 = vld [vmem:[#allocation2 + $0x130] sm:$0xff]
    %v173 = vld [vmem:[#allocation2 + $0x138] sm:$0xff]
    %v174 = vld [vmem:[#allocation2 + $0x140] sm:$0xff]
    %v175 = vld [vmem:[#allocation2 + $0x148] sm:$0xff]
    %v176 = vld [vmem:[#allocation2 + $0x150] sm:$0xff]
    %v177 = vld [vmem:[#allocation2 + $0x158] sm:$0xff]
    %v178 = vld [vmem:[#allocation2 + $0x160] sm:$0xff]
    %v179 = vld [vmem:[#allocation2 + $0x168] sm:$0xff]
    %v180 = vld [vmem:[#allocation2 + $0x170] sm:$0xff]
    %v181 = vld [vmem:[#allocation2 + $0x178] sm:$0xff]
    %v182 = vld [vmem:[#allocation2 + $0x180] sm:$0xff]
    %v183 = vld [vmem:[#allocation2 + $0x188] sm:$0xff]
    %v184 = vld [vmem:[#allocation2 + $0x190] sm:$0xff]
    %v185 = vld [vmem:[#allocation2 + $0x198] sm:$0xff]
    %v186 = vld [vmem:[#allocation2 + $0x1a0] sm:$0xff]
    %v187 = vld [vmem:[#allocation2 + $0x1a8] sm:$0xff]
    %v188 = vld [vmem:[#allocation2 + $0x1b0] sm:$0xff]
    %v189 = vld [vmem:[#allocation2 + $0x1b8] sm:$0xff]
    %v190 = vld [vmem:[#allocation2 + $0x1c0] sm:$0xff]
    %v191 = vld [vmem:[#allocation2 + $0x1c8] sm:$0xff]
    %v192 = vld [vmem:[#allocation2 + $0x1d0] sm:$0xff]
    %v193 = vld [vmem:[#allocation2 + $0x1d8] sm:$0xff]
    %v194 = vld [vmem:[#allocation2 + $0x1e0] sm:$0xff]
    %v195 = vld [vmem:[#allocation2 + $0x1e8] sm:$0xff]
    %v196 = vld [vmem:[#allocation2 + $0x1f0] sm:$0xff]
    %v197 = vld [vmem:[#allocation2 + $0x1f8] sm:$0xff]
    %v198 = vld [vmem:[#allocation2 + $0x200] sm:$0xff]
    %v199 = vld [vmem:[#allocation2 + $0x208] sm:$0xff]
    %v200 = vld [vmem:[#allocation2 + $0x210] sm:$0xff]
    %v201 = vld [vmem:[#allocation2 + $0x218] sm:$0xff]
    %v202 = vld [vmem:[#allocation2 + $0x220] sm:$0xff]
    %v203 = vld [vmem:[#allocation2 + $0x228] sm:$0xff]
    %v204 = vld [vmem:[#allocation2 + $0x230] sm:$0xff]
    %v205 = vld [vmem:[#allocation2 + $0x238] sm:$0xff]
    %v206 = vld [vmem:[#allocation2 + $0x240] sm:$0xff]
    %v207 = vld [vmem:[#allocation2 + $0x248] sm:$0xff]
    %v208 = vld [vmem:[#allocation2 + $0x250] sm:$0xff]
    %v209 = vld [vmem:[#allocation2 + $0x258] sm:$0xff]
    %v210 = vld [vmem:[#allocation2 + $0x260] sm:$0xff]
    %v211 = vld [vmem:[#allocation2 + $0x268] sm:$0xff]
    %v212 = vld [vmem:[#allocation2 + $0x270] sm:$0xff]
    %v213 = vld [vmem:[#allocation2 + $0x278] sm:$0xff]
    %v214 = vld [vmem:[#allocation2 + $0x280] sm:$0xff]
    %v215 = vld [vmem:[#allocation2 + $0x288] sm:$0xff]
    %v216 = vld [vmem:[#allocation2 + $0x290] sm:$0xff]
    %v217 = vld [vmem:[#allocation2 + $0x298] sm:$0xff]
    %v218 = vld [vmem:[#allocation2 + $0x2a0] sm:$0xff]
    %v219 = vld [vmem:[#allocation2 + $0x2a8] sm:$0xff]
    %v220 = vld [vmem:[#allocation2 + $0x2b0] sm:$0xff]
    %v221 = vld [vmem:[#allocation2 + $0x2b8] sm:$0xff]
    %v222 = vld [vmem:[#allocation2 + $0x2c0] sm:$0xff]
    %v223 = vld [vmem:[#allocation2 + $0x2c8] sm:$0xff]
    %v224 = vld [vmem:[#allocation2 + $0x2d0] sm:$0xff]
    %v225 = vld [vmem:[#allocation2 + $0x2d8] sm:$0xff]
    %v226 = vld [vmem:[#allocation2 + $0x2e0] sm:$0xff]
    %v227 = vld [vmem:[#allocation2 + $0x2e8] sm:$0xff]
    %v228 = vld [vmem:[#allocation2 + $0x2f0] sm:$0xff]
    %v229 = vld [vmem:[#allocation2 + $0x2f8] sm:$0xff]
    %v230 = vld [vmem:[#allocation2 + $0x300] sm:$0xff]
    %v231 = vld [vmem:[#allocation2 + $0x308] sm:$0xff]
    %v232 = vld [vmem:[#allocation2 + $0x310] sm:$0xff]
    %v233 = vld [vmem:[#allocation2 + $0x318] sm:$0xff]
    %v234 = vld [vmem:[#allocation2 + $0x320] sm:$0xff]
    %v235 = vld [vmem:[#allocation2 + $0x328] sm:$0xff]
    %v236 = vld [vmem:[#allocation2 + $0x330] sm:$0xff]
    %v237 = vld [vmem:[#allocation2 + $0x338] sm:$0xff]
    %v238 = vld [vmem:[#allocation2 + $0x340] sm:$0xff]
    %v239 = vld [vmem:[#allocation2 + $0x348] sm:$0xff]
    %v240 = vld [vmem:[#allocation2 + $0x350] sm:$0xff]
    %v241 = vld [vmem:[#allocation2 + $0x358] sm:$0xff]
    %v242 = vld [vmem:[#allocation2 + $0x360] sm:$0xff]
    %v243 = vld [vmem:[#allocation2 + $0x368] sm:$0xff]
    %v244 = vld [vmem:[#allocation2 + $0x370] sm:$0xff]
    %v245 = vld [vmem:[#allocation2 + $0x378] sm:$0xff]
    %v246 = vld [vmem:[#allocation2 + $0x380] sm:$0xff]
    %v247 = vld [vmem:[#allocation2 + $0x388] sm:$0xff]
    %v248 = vld [vmem:[#allocation2 + $0x390] sm:$0xff]
    %v249 = vld [vmem:[#allocation2 + $0x398] sm:$0xff]
    %v250 = vld [vmem:[#allocation2 + $0x3a0] sm:$0xff]
    %v251 = vld [vmem:[#allocation2 + $0x3a8] sm:$0xff]
    %v252 = vld [vmem:[#allocation2 + $0x3b0] sm:$0xff]
    %v253 = vld [vmem:[#allocation2 + $0x3b8] sm:$0xff]
    %v254 = vld [vmem:[#allocation2 + $0x3c0] sm:$0xff]
    %v255 = vld [vmem:[#allocation2 + $0x3c8] sm:$0xff]
    %v256 = vld [vmem:[#allocation2 + $0x3d0] sm:$0xff]
    %v257 = vld [vmem:[#allocation2 + $0x3d8] sm:$0xff]
    %v258 = vld [vmem:[#allocation2 + $0x3e0] sm:$0xff]
    %v259 = vld [vmem:[#allocation2 + $0x3e8] sm:$0xff]
    %v260 = vld [vmem:[#allocation2 + $0x3f0] sm:$0xff]
    %v261 = vld [vmem:[#allocation2 + $0x3f8] sm:$0xff]
    %v262 = vld [vmem:[#allocation4] sm:$0xff]
    %v264 = vlaneseq
    %v265 = vshrl.u32 %v264, 7
    %v266 = vsub.s32 0, %v265
    %v267 = vrot.slane %v262, %v266
    %v268 = vlaneseq
    %v269 = vshrl.u32 %v268, 7
    %v270 = vsub.s32 1, %v269
    %v271 = vrot.slane %v262, %v270
    %v272 = vlaneseq
    %v273 = vshrl.u32 %v272, 7
    %v274 = vsub.s32 2, %v273
    %v275 = vrot.slane %v262, %v274
    %v276 = vlaneseq
    %v277 = vshrl.u32 %v276, 7
    %v278 = vsub.s32 3, %v277
    %v279 = vrot.slane %v262, %v278
    %v280 = vlaneseq
    %v281 = vshrl.u32 %v280, 7
    %v282 = vsub.s32 4, %v281
    %v283 = vrot.slane %v262, %v282
    %v284 = vlaneseq
    %v285 = vshrl.u32 %v284, 7
    %v286 = vsub.s32 5, %v285
    %v287 = vrot.slane %v262, %v286
    %v288 = vlaneseq
    %v289 = vshrl.u32 %v288, 7
    %v290 = vsub.s32 6, %v289
    %v291 = vrot.slane %v262, %v290
    %v292 = vlaneseq
    %v293 = vshrl.u32 %v292, 7
    %v294 = vsub.s32 7, %v293
    %v295 = vrot.slane %v262, %v294
    %304 = vmatprep.subr.mxu0 %v135
    %305 = vmatpush1.msra.mxu0 %v134
    %306 = vmatprep.subr.mxu0 %v143
    %307 = vmatpush1.msra.mxu0 %v142
    %308 = vmatprep.subr.mxu0 %v151
    %309 = vmatpush1.msra.mxu0 %v150
    %310 = vmatprep.subr.mxu0 %v159
    %311 = vmatpush1.msra.mxu0 %v158
    %312 = vmatprep.subr.mxu0 %v167
    %313 = vmatpush1.msra.mxu0 %v166
    %314 = vmatprep.subr.mxu0 %v175
    %315 = vmatpush1.msra.mxu0 %v174
    %316 = vmatprep.subr.mxu0 %v183
    %317 = vmatpush1.msra.mxu0 %v182
    %318 = vmatprep.subr.mxu0 %v191
    %319 = vmatpush1.msra.mxu0 %v190
    %320 = vmatprep.subr.mxu0 %v199
    %321 = vmatpush1.msra.mxu0 %v198
    %322 = vmatprep.subr.mxu0 %v207
    %323 = vmatpush1.msra.mxu0 %v206
    %324 = vmatprep.subr.mxu0 %v215
    %325 = vmatpush1.msra.mxu0 %v214
    %326 = vmatprep.subr.mxu0 %v223
    %327 = vmatpush1.msra.mxu0 %v222
    %328 = vmatprep.subr.mxu0 %v231
    %329 = vmatpush1.msra.mxu0 %v230
    %330 = vmatprep.subr.mxu0 %v239
    %331 = vmatpush1.msra.mxu0 %v238
    %332 = vmatprep.subr.mxu0 %v247
    %333 = vmatpush1.msra.mxu0 %v246
    %334 = vmatprep.subr.mxu0 %v255
    %335 = vmatpush1.msra.mxu0 %v254
    %336 = vmatprep.subr.mxu0 0.0
    %337 = vmatpush1.msra.mxu0 0.0
    %338 = vmatprep.subr.mxu0 0.0
    %339 = vmatpush1.msra.mxu0 0.0
    %340 = vmatprep.subr.mxu0 0.0
    %341 = vmatpush1.msra.mxu0 0.0
    %342 = vmatprep.subr.mxu0 0.0
    %343 = vmatpush1.msra.mxu0 0.0
    %344 = vmatprep.subr.mxu0 0.0
    %345 = vmatpush1.msra.mxu0 0.0
    %346 = vmatprep.subr.mxu0 0.0
    %347 = vmatpush1.msra.mxu0 0.0
    %348 = vmatprep.subr.mxu0 0.0
    %349 = vmatpush1.msra.mxu0 0.0
    %350 = vmatprep.subr.mxu0 0.0
    %351 = vmatpush1.msra.mxu0 0.0
    %352 = vmatprep.subr.mxu0 0.0
    %353 = vmatpush1.msra.mxu0 0.0
    %354 = vmatprep.subr.mxu0 0.0
    %355 = vmatpush1.msra.mxu0 0.0
    %356 = vmatprep.subr.mxu0 0.0
    %357 = vmatpush1.msra.mxu0 0.0
    %358 = vmatprep.subr.mxu0 0.0
    %359 = vmatpush1.msra.mxu0 0.0
    %360 = vmatprep.subr.mxu0 0.0
    %361 = vmatpush1.msra.mxu0 0.0
    %362 = vmatprep.subr.mxu0 0.0
    %363 = vmatpush1.msra.mxu0 0.0
    %364 = vmatprep.subr.mxu0 0.0
    %365 = vmatpush1.msra.mxu0 0.0
    %366 = vmatprep.subr.mxu0 0.0
    %367 = vmatpush1.msra.mxu0 0.0
    %368 = vmatprep.mubr.f32.mxu0 0.0
    %369 = vmatmul.mubr.f32.gmra.mrb[0].mxu0 %v133
    %v370 = vpop.f32.mrb[0].mxu0
    %v371 = vadd.f32 %v267, %v370
    %v372 = vpop.f32.mrb[0].mxu0
    %v373 = vadd.f32 %v271, %v372
    %374 = vdwg.mxu0
    %375 = vmatprep.subr.mxu0 %v137
    %376 = vmatpush1.msra.mxu0 %v136
    %377 = vmatprep.subr.mxu0 %v145
    %378 = vmatpush1.msra.mxu0 %v144
    %379 = vmatprep.subr.mxu0 %v153
    %380 = vmatpush1.msra.mxu0 %v152
    %381 = vmatprep.subr.mxu0 %v161
    %382 = vmatpush1.msra.mxu0 %v160
    %383 = vmatprep.subr.mxu0 %v169
    %384 = vmatpush1.msra.mxu0 %v168
    %385 = vmatprep.subr.mxu0 %v177
    %386 = vmatpush1.msra.mxu0 %v176
    %387 = vmatprep.subr.mxu0 %v185
    %388 = vmatpush1.msra.mxu0 %v184
    %389 = vmatprep.subr.mxu0 %v193
    %390 = vmatpush1.msra.mxu0 %v192
    %391 = vmatprep.subr.mxu0 %v201
    %392 = vmatpush1.msra.mxu0 %v200
    %393 = vmatprep.subr.mxu0 %v209
    %394 = vmatpush1.msra.mxu0 %v208
    %395 = vmatprep.subr.mxu0 %v217
    %396 = vmatpush1.msra.mxu0 %v216
    %397 = vmatprep.subr.mxu0 %v225
    %398 = vmatpush1.msra.mxu0 %v224
    %399 = vmatprep.subr.mxu0 %v233
    %400 = vmatpush1.msra.mxu0 %v232
    %401 = vmatprep.subr.mxu0 %v241
    %402 = vmatpush1.msra.mxu0 %v240
    %403 = vmatprep.subr.mxu0 %v249
    %404 = vmatpush1.msra.mxu0 %v248
    %405 = vmatprep.subr.mxu0 %v257
    %406 = vmatpush1.msra.mxu0 %v256
    %407 = vmatprep.subr.mxu0 0.0
    %408 = vmatpush1.msra.mxu0 0.0
    %409 = vmatprep.subr.mxu0 0.0
    %410 = vmatpush1.msra.mxu0 0.0
    %411 = vmatprep.subr.mxu0 0.0
    %412 = vmatpush1.msra.mxu0 0.0
    %413 = vmatprep.subr.mxu0 0.0
    %414 = vmatpush1.msra.mxu0 0.0
    %415 = vmatprep.subr.mxu0 0.0
    %416 = vmatpush1.msra.mxu0 0.0
    %417 = vmatprep.subr.mxu0 0.0
    %418 = vmatpush1.msra.mxu0 0.0
    %419 = vmatprep.subr.mxu0 0.0
    %420 = vmatpush1.msra.mxu0 0.0
    %421 = vmatprep.subr.mxu0 0.0
    %422 = vmatpush1.msra.mxu0 0.0
    %423 = vmatprep.subr.mxu0 0.0
    %424 = vmatpush1.msra.mxu0 0.0
    %425 = vmatprep.subr.mxu0 0.0
    %426 = vmatpush1.msra.mxu0 0.0
    %427 = vmatprep.subr.mxu0 0.0
    %428 = vmatpush1.msra.mxu0 0.0
    %429 = vmatprep.subr.mxu0 0.0
    %430 = vmatpush1.msra.mxu0 0.0
    %431 = vmatprep.subr.mxu0 0.0
    %432 = vmatpush1.msra.mxu0 0.0
    %433 = vmatprep.subr.mxu0 0.0
    %434 = vmatpush1.msra.mxu0 0.0
    %435 = vmatprep.subr.mxu0 0.0
    %436 = vmatpush1.msra.mxu0 0.0
    %437 = vmatprep.subr.mxu0 0.0
    %438 = vmatpush1.msra.mxu0 0.0
    %439 = vmatprep.mubr.f32.mxu0 0.0
    %440 = vmatmul.mubr.f32.gmra.mrb[0].mxu0 %v133
    %v441 = vpop.f32.mrb[0].mxu0
    %v442 = vadd.f32 %v275, %v441
    %v443 = vpop.f32.mrb[0].mxu0
    %v444 = vadd.f32 %v279, %v443
    %445 = vdwg.mxu0
    %446 = vmatprep.subr.mxu0 %v139
    %447 = vmatpush1.msra.mxu0 %v138
    %448 = vmatprep.subr.mxu0 %v147
    %449 = vmatpush1.msra.mxu0 %v146
    %450 = vmatprep.subr.mxu0 %v155
    %451 = vmatpush1.msra.mxu0 %v154
    %452 = vmatprep.subr.mxu0 %v163
    %453 = vmatpush1.msra.mxu0 %v162
    %454 = vmatprep.subr.mxu0 %v171
    %455 = vmatpush1.msra.mxu0 %v170
    %456 = vmatprep.subr.mxu0 %v179
    %457 = vmatpush1.msra.mxu0 %v178
    %458 = vmatprep.subr.mxu0 %v187
    %459 = vmatpush1.msra.mxu0 %v186
    %460 = vmatprep.subr.mxu0 %v195
    %461 = vmatpush1.msra.mxu0 %v194
    %462 = vmatprep.subr.mxu0 %v203
    %463 = vmatpush1.msra.mxu0 %v202
    %464 = vmatprep.subr.mxu0 %v211
    %465 = vmatpush1.msra.mxu0 %v210
    %466 = vmatprep.subr.mxu0 %v219
    %467 = vmatpush1.msra.mxu0 %v218
    %468 = vmatprep.subr.mxu0 %v227
    %469 = vmatpush1.msra.mxu0 %v226
    %470 = vmatprep.subr.mxu0 %v235
    %471 = vmatpush1.msra.mxu0 %v234
    %472 = vmatprep.subr.mxu0 %v243
    %473 = vmatpush1.msra.mxu0 %v242
    %474 = vmatprep.subr.mxu0 %v251
    %475 = vmatpush1.msra.mxu0 %v250
    %476 = vmatprep.subr.mxu0 %v259
    %477 = vmatpush1.msra.mxu0 %v258
    %478 = vmatprep.subr.mxu0 0.0
    %479 = vmatpush1.msra.mxu0 0.0
    %480 = vmatprep.subr.mxu0 0.0
    %481 = vmatpush1.msra.mxu0 0.0
    %482 = vmatprep.subr.mxu0 0.0
    %483 = vmatpush1.msra.mxu0 0.0
    %484 = vmatprep.subr.mxu0 0.0
    %485 = vmatpush1.msra.mxu0 0.0
    %486 = vmatprep.subr.mxu0 0.0
    %487 = vmatpush1.msra.mxu0 0.0
    %488 = vmatprep.subr.mxu0 0.0
    %489 = vmatpush1.msra.mxu0 0.0
    %490 = vmatprep.subr.mxu0 0.0
    %491 = vmatpush1.msra.mxu0 0.0
    %492 = vmatprep.subr.mxu0 0.0
    %493 = vmatpush1.msra.mxu0 0.0
    %494 = vmatprep.subr.mxu0 0.0
    %495 = vmatpush1.msra.mxu0 0.0
    %496 = vmatprep.subr.mxu0 0.0
    %497 = vmatpush1.msra.mxu0 0.0
    %498 = vmatprep.subr.mxu0 0.0
    %499 = vmatpush1.msra.mxu0 0.0
    %500 = vmatprep.subr.mxu0 0.0
    %501 = vmatpush1.msra.mxu0 0.0
    %502 = vmatprep.subr.mxu0 0.0
    %503 = vmatpush1.msra.mxu0 0.0
    %504 = vmatprep.subr.mxu0 0.0
    %505 = vmatpush1.msra.mxu0 0.0
    %506 = vmatprep.subr.mxu0 0.0
    %507 = vmatpush1.msra.mxu0 0.0
    %508 = vmatprep.subr.mxu0 0.0
    %509 = vmatpush1.msra.mxu0 0.0
    %510 = vmatprep.mubr.f32.mxu0 0.0
    %511 = vmatmul.mubr.f32.gmra.mrb[0].mxu0 %v133
    %v512 = vpop.f32.mrb[0].mxu0
    %v513 = vadd.f32 %v283, %v512
    %v514 = vpop.f32.mrb[0].mxu0
    %v515 = vadd.f32 %v287, %v514
    %516 = vdwg.mxu0
    %517 = vmatprep.subr.mxu0 %v141
    %518 = vmatpush1.msra.mxu0 %v140
    %519 = vmatprep.subr.mxu0 %v149
    %520 = vmatpush1.msra.mxu0 %v148
    %521 = vmatprep.subr.mxu0 %v157
    %522 = vmatpush1.msra.mxu0 %v156
    %523 = vmatprep.subr.mxu0 %v165
    %524 = vmatpush1.msra.mxu0 %v164
    %525 = vmatprep.subr.mxu0 %v173
    %526 = vmatpush1.msra.mxu0 %v172
    %527 = vmatprep.subr.mxu0 %v181
    %528 = vmatpush1.msra.mxu0 %v180
    %529 = vmatprep.subr.mxu0 %v189
    %530 = vmatpush1.msra.mxu0 %v188
    %531 = vmatprep.subr.mxu0 %v197
    %532 = vmatpush1.msra.mxu0 %v196
    %533 = vmatprep.subr.mxu0 %v205
    %534 = vmatpush1.msra.mxu0 %v204
    %535 = vmatprep.subr.mxu0 %v213
    %536 = vmatpush1.msra.mxu0 %v212
    %537 = vmatprep.subr.mxu0 %v221
    %538 = vmatpush1.msra.mxu0 %v220
    %539 = vmatprep.subr.mxu0 %v229
    %540 = vmatpush1.msra.mxu0 %v228
    %541 = vmatprep.subr.mxu0 %v237
    %542 = vmatpush1.msra.mxu0 %v236
    %543 = vmatprep.subr.mxu0 %v245
    %544 = vmatpush1.msra.mxu0 %v244
    %545 = vmatprep.subr.mxu0 %v253
    %546 = vmatpush1.msra.mxu0 %v252
    %547 = vmatprep.subr.mxu0 %v261
    %548 = vmatpush1.msra.mxu0 %v260
    %549 = vmatprep.subr.mxu0 0.0
    %550 = vmatpush1.msra.mxu0 0.0
    %551 = vmatprep.subr.mxu0 0.0
    %552 = vmatpush1.msra.mxu0 0.0
    %553 = vmatprep.subr.mxu0 0.0
    %554 = vmatpush1.msra.mxu0 0.0
    %555 = vmatprep.subr.mxu0 0.0
    %556 = vmatpush1.msra.mxu0 0.0
    %557 = vmatprep.subr.mxu0 0.0
    %558 = vmatpush1.msra.mxu0 0.0
    %559 = vmatprep.subr.mxu0 0.0
    %560 = vmatpush1.msra.mxu0 0.0
    %561 = vmatprep.subr.mxu0 0.0
    %562 = vmatpush1.msra.mxu0 0.0
    %563 = vmatprep.subr.mxu0 0.0
    %564 = vmatpush1.msra.mxu0 0.0
    %565 = vmatprep.subr.mxu0 0.0
    %566 = vmatpush1.msra.mxu0 0.0
    %567 = vmatprep.subr.mxu0 0.0
    %568 = vmatpush1.msra.mxu0 0.0
    %569 = vmatprep.subr.mxu0 0.0
    %570 = vmatpush1.msra.mxu0 0.0
    %571 = vmatprep.subr.mxu0 0.0
    %572 = vmatpush1.msra.mxu0 0.0
    %573 = vmatprep.subr.mxu0 0.0
    %574 = vmatpush1.msra.mxu0 0.0
    %575 = vmatprep.subr.mxu0 0.0
    %576 = vmatpush1.msra.mxu0 0.0
    %577 = vmatprep.subr.mxu0 0.0
    %578 = vmatpush1.msra.mxu0 0.0
    %579 = vmatprep.subr.mxu0 0.0
    %580 = vmatpush1.msra.mxu0 0.0
    %581 = vmatprep.mubr.f32.mxu0 0.0
    %582 = vmatmul.mubr.f32.gmra.mrb[0].mxu0 %v133
    %v583 = vpop.f32.mrb[0].mxu0
    %v584 = vadd.f32 %v291, %v583
    %v585 = vpop.f32.mrb[0].mxu0
    %v586 = vadd.f32 %v295, %v585
    %587 = vdwg.mxu0
    %v588 = vmul.f32 %v371, 0.5
    %v589 = vmul.f32 %v373, 0.5
    %v590 = vmul.f32 %v442, 0.5
    %v591 = vmul.f32 %v444, 0.5
    %v592 = vmul.f32 %v513, 0.5
    %v593 = vmul.f32 %v515, 0.5
    %v594 = vmul.f32 %v584, 0.5
    %v595 = vmul.f32 %v586, 0.5
    %v596 = vmul.f32 %v371, 0.70710677
    %v597 = vmul.f32 %v373, 0.70710677
    %v598 = vmul.f32 %v442, 0.70710677
    %v599 = vmul.f32 %v444, 0.70710677
    %v600 = vmul.f32 %v513, 0.70710677
    %v601 = vmul.f32 %v515, 0.70710677
    %v602 = vmul.f32 %v584, 0.70710677
    %v603 = vmul.f32 %v586, 0.70710677
    %v604 = verf.f32.pop %v596
    %v605 = verf.f32.pop %v597
    %v606 = verf.f32.pop %v598
    %v607 = verf.f32.pop %v599
    %v608 = verf.f32.pop %v600
    %v609 = verf.f32.pop %v601
    %v610 = verf.f32.pop %v602
    %v611 = verf.f32.pop %v603
    %v612 = vadd.f32 %v604, 1.0
    %v613 = vadd.f32 %v605, 1.0
    %v614 = vadd.f32 %v606, 1.0
    %v615 = vadd.f32 %v607, 1.0
    %v616 = vadd.f32 %v608, 1.0
    %v617 = vadd.f32 %v609, 1.0
    %v618 = vadd.f32 %v610, 1.0
    %v619 = vadd.f32 %v611, 1.0
    %v620 = vmul.f32 %v588, %v612
    %v621 = vmul.f32 %v589, %v613
    %v622 = vmul.f32 %v590, %v614
    %v623 = vmul.f32 %v591, %v615
    %v624 = vmul.f32 %v592, %v616
    %v625 = vmul.f32 %v593, %v617
    %v626 = vmul.f32 %v594, %v618
    %v627 = vmul.f32 %v595, %v619
    %v628 = vld [vmem:[#allocation6] sm:$0xff]
    %v629 = vld [vmem:[#allocation6 + $0x8] sm:$0xff]
    %v630 = vld [vmem:[#allocation6 + $0x10] sm:$0xff]
    %v631 = vld [vmem:[#allocation6 + $0x18] sm:$0xff]
    %v632 = vld [vmem:[#allocation6 + $0x20] sm:$0xff]
    %v633 = vld [vmem:[#allocation6 + $0x28] sm:$0xff]
    %v634 = vld [vmem:[#allocation6 + $0x30] sm:$0xff]
    %v635 = vld [vmem:[#allocation6 + $0x38] sm:$0xff]
    %v636 = vld [vmem:[#allocation6 + $0x40] sm:$0xff]
    %v637 = vld [vmem:[#allocation6 + $0x48] sm:$0xff]
    %v638 = vld [vmem:[#allocation6 + $0x50] sm:$0xff]
    %v639 = vld [vmem:[#allocation6 + $0x58] sm:$0xff]
    %v640 = vld [vmem:[#allocation6 + $0x60] sm:$0xff]
    %v641 = vld [vmem:[#allocation6 + $0x68] sm:$0xff]
    %v642 = vld [vmem:[#allocation6 + $0x70] sm:$0xff]
    %v643 = vld [vmem:[#allocation6 + $0x78] sm:$0xff]
    %v644 = vld [vmem:[#allocation6 + $0x80] sm:$0xff]
    %v645 = vld [vmem:[#allocation6 + $0x88] sm:$0xff]
    %v646 = vld [vmem:[#allocation6 + $0x90] sm:$0xff]
    %v647 = vld [vmem:[#allocation6 + $0x98] sm:$0xff]
    %v648 = vld [vmem:[#allocation6 + $0xa0] sm:$0xff]
    %v649 = vld [vmem:[#allocation6 + $0xa8] sm:$0xff]
    %v650 = vld [vmem:[#allocation6 + $0xb0] sm:$0xff]
    %v651 = vld [vmem:[#allocation6 + $0xb8] sm:$0xff]
    %v652 = vld [vmem:[#allocation6 + $0xc0] sm:$0xff]
    %v653 = vld [vmem:[#allocation6 + $0xc8] sm:$0xff]
    %v654 = vld [vmem:[#allocation6 + $0xd0] sm:$0xff]
    %v655 = vld [vmem:[#allocation6 + $0xd8] sm:$0xff]
    %v656 = vld [vmem:[#allocation6 + $0xe0] sm:$0xff]
    %v657 = vld [vmem:[#allocation6 + $0xe8] sm:$0xff]
    %v658 = vld [vmem:[#allocation6 + $0xf0] sm:$0xff]
    %v659 = vld [vmem:[#allocation6 + $0xf8] sm:$0xff]
    %v660 = vld [vmem:[#allocation6 + $0x100] sm:$0xff]
    %v661 = vld [vmem:[#allocation6 + $0x108] sm:$0xff]
    %v662 = vld [vmem:[#allocation6 + $0x110] sm:$0xff]
    %v663 = vld [vmem:[#allocation6 + $0x118] sm:$0xff]
    %v664 = vld [vmem:[#allocation6 + $0x120] sm:$0xff]
    %v665 = vld [vmem:[#allocation6 + $0x128] sm:$0xff]
    %v666 = vld [vmem:[#allocation6 + $0x130] sm:$0xff]
    %v667 = vld [vmem:[#allocation6 + $0x138] sm:$0xff]
    %v668 = vld [vmem:[#allocation6 + $0x140] sm:$0xff]
    %v669 = vld [vmem:[#allocation6 + $0x148] sm:$0xff]
    %v670 = vld [vmem:[#allocation6 + $0x150] sm:$0xff]
    %v671 = vld [vmem:[#allocation6 + $0x158] sm:$0xff]
    %v672 = vld [vmem:[#allocation6 + $0x160] sm:$0xff]
    %v673 = vld [vmem:[#allocation6 + $0x168] sm:$0xff]
    %v674 = vld [vmem:[#allocation6 + $0x170] sm:$0xff]
    %v675 = vld [vmem:[#allocation6 + $0x178] sm:$0xff]
    %v676 = vld [vmem:[#allocation6 + $0x180] sm:$0xff]
    %v677 = vld [vmem:[#allocation6 + $0x188] sm:$0xff]
    %v678 = vld [vmem:[#allocation6 + $0x190] sm:$0xff]
    %v679 = vld [vmem:[#allocation6 + $0x198] sm:$0xff]
    %v680 = vld [vmem:[#allocation6 + $0x1a0] sm:$0xff]
    %v681 = vld [vmem:[#allocation6 + $0x1a8] sm:$0xff]
    %v682 = vld [vmem:[#allocation6 + $0x1b0] sm:$0xff]
    %v683 = vld [vmem:[#allocation6 + $0x1b8] sm:$0xff]
    %v684 = vld [vmem:[#allocation6 + $0x1c0] sm:$0xff]
    %v685 = vld [vmem:[#allocation6 + $0x1c8] sm:$0xff]
    %v686 = vld [vmem:[#allocation6 + $0x1d0] sm:$0xff]
    %v687 = vld [vmem:[#allocation6 + $0x1d8] sm:$0xff]
    %v688 = vld [vmem:[#allocation6 + $0x1e0] sm:$0xff]
    %v689 = vld [vmem:[#allocation6 + $0x1e8] sm:$0xff]
    %v690 = vld [vmem:[#allocation6 + $0x1f0] sm:$0xff]
    %v691 = vld [vmem:[#allocation6 + $0x1f8] sm:$0xff]
    %v692 = vld [vmem:[#allocation6 + $0x200] sm:$0xff]
    %v693 = vld [vmem:[#allocation6 + $0x208] sm:$0xff]
    %v694 = vld [vmem:[#allocation6 + $0x210] sm:$0xff]
    %v695 = vld [vmem:[#allocation6 + $0x218] sm:$0xff]
    %v696 = vld [vmem:[#allocation6 + $0x220] sm:$0xff]
    %v697 = vld [vmem:[#allocation6 + $0x228] sm:$0xff]
    %v698 = vld [vmem:[#allocation6 + $0x230] sm:$0xff]
    %v699 = vld [vmem:[#allocation6 + $0x238] sm:$0xff]
    %v700 = vld [vmem:[#allocation6 + $0x240] sm:$0xff]
    %v701 = vld [vmem:[#allocation6 + $0x248] sm:$0xff]
    %v702 = vld [vmem:[#allocation6 + $0x250] sm:$0xff]
    %v703 = vld [vmem:[#allocation6 + $0x258] sm:$0xff]
    %v704 = vld [vmem:[#allocation6 + $0x260] sm:$0xff]
    %v705 = vld [vmem:[#allocation6 + $0x268] sm:$0xff]
    %v706 = vld [vmem:[#allocation6 + $0x270] sm:$0xff]
    %v707 = vld [vmem:[#allocation6 + $0x278] sm:$0xff]
    %v708 = vld [vmem:[#allocation6 + $0x280] sm:$0xff]
    %v709 = vld [vmem:[#allocation6 + $0x288] sm:$0xff]
    %v710 = vld [vmem:[#allocation6 + $0x290] sm:$0xff]
    %v711 = vld [vmem:[#allocation6 + $0x298] sm:$0xff]
    %v712 = vld [vmem:[#allocation6 + $0x2a0] sm:$0xff]
    %v713 = vld [vmem:[#allocation6 + $0x2a8] sm:$0xff]
    %v714 = vld [vmem:[#allocation6 + $0x2b0] sm:$0xff]
    %v715 = vld [vmem:[#allocation6 + $0x2b8] sm:$0xff]
    %v716 = vld [vmem:[#allocation6 + $0x2c0] sm:$0xff]
    %v717 = vld [vmem:[#allocation6 + $0x2c8] sm:$0xff]
    %v718 = vld [vmem:[#allocation6 + $0x2d0] sm:$0xff]
    %v719 = vld [vmem:[#allocation6 + $0x2d8] sm:$0xff]
    %v720 = vld [vmem:[#allocation6 + $0x2e0] sm:$0xff]
    %v721 = vld [vmem:[#allocation6 + $0x2e8] sm:$0xff]
    %v722 = vld [vmem:[#allocation6 + $0x2f0] sm:$0xff]
    %v723 = vld [vmem:[#allocation6 + $0x2f8] sm:$0xff]
    %v724 = vld [vmem:[#allocation6 + $0x300] sm:$0xff]
    %v725 = vld [vmem:[#allocation6 + $0x308] sm:$0xff]
    %v726 = vld [vmem:[#allocation6 + $0x310] sm:$0xff]
    %v727 = vld [vmem:[#allocation6 + $0x318] sm:$0xff]
    %v728 = vld [vmem:[#allocation6 + $0x320] sm:$0xff]
    %v729 = vld [vmem:[#allocation6 + $0x328] sm:$0xff]
    %v730 = vld [vmem:[#allocation6 + $0x330] sm:$0xff]
    %v731 = vld [vmem:[#allocation6 + $0x338] sm:$0xff]
    %v732 = vld [vmem:[#allocation6 + $0x340] sm:$0xff]
    %v733 = vld [vmem:[#allocation6 + $0x348] sm:$0xff]
    %v734 = vld [vmem:[#allocation6 + $0x350] sm:$0xff]
    %v735 = vld [vmem:[#allocation6 + $0x358] sm:$0xff]
    %v736 = vld [vmem:[#allocation6 + $0x360] sm:$0xff]
    %v737 = vld [vmem:[#allocation6 + $0x368] sm:$0xff]
    %v738 = vld [vmem:[#allocation6 + $0x370] sm:$0xff]
    %v739 = vld [vmem:[#allocation6 + $0x378] sm:$0xff]
    %v740 = vld [vmem:[#allocation6 + $0x380] sm:$0xff]
    %v741 = vld [vmem:[#allocation6 + $0x388] sm:$0xff]
    %v742 = vld [vmem:[#allocation6 + $0x390] sm:$0xff]
    %v743 = vld [vmem:[#allocation6 + $0x398] sm:$0xff]
    %v744 = vld [vmem:[#allocation6 + $0x3a0] sm:$0xff]
    %v745 = vld [vmem:[#allocation6 + $0x3a8] sm:$0xff]
    %v746 = vld [vmem:[#allocation6 + $0x3b0] sm:$0xff]
    %v747 = vld [vmem:[#allocation6 + $0x3b8] sm:$0xff]
    %v748 = vld [vmem:[#allocation6 + $0x3c0] sm:$0xff]
    %v749 = vld [vmem:[#allocation6 + $0x3c8] sm:$0xff]
    %v750 = vld [vmem:[#allocation6 + $0x3d0] sm:$0xff]
    %v751 = vld [vmem:[#allocation6 + $0x3d8] sm:$0xff]
    %v752 = vld [vmem:[#allocation6 + $0x3e0] sm:$0xff]
    %v753 = vld [vmem:[#allocation6 + $0x3e8] sm:$0xff]
    %v754 = vld [vmem:[#allocation6 + $0x3f0] sm:$0xff]
    %v755 = vld [vmem:[#allocation6 + $0x3f8] sm:$0xff]
    %v756 = vld [vmem:[#allocation6 + $0x400] sm:$0xff]
    %v757 = vld [vmem:[#allocation6 + $0x408] sm:$0xff]
    %v758 = vld [vmem:[#allocation6 + $0x410] sm:$0xff]
    %v759 = vld [vmem:[#allocation6 + $0x418] sm:$0xff]
    %v760 = vld [vmem:[#allocation6 + $0x420] sm:$0xff]
    %v761 = vld [vmem:[#allocation6 + $0x428] sm:$0xff]
    %v762 = vld [vmem:[#allocation6 + $0x430] sm:$0xff]
    %v763 = vld [vmem:[#allocation6 + $0x438] sm:$0xff]
    %v764 = vld [vmem:[#allocation6 + $0x440] sm:$0xff]
    %v765 = vld [vmem:[#allocation6 + $0x448] sm:$0xff]
    %v766 = vld [vmem:[#allocation6 + $0x450] sm:$0xff]
    %v767 = vld [vmem:[#allocation6 + $0x458] sm:$0xff]
    %v768 = vld [vmem:[#allocation6 + $0x460] sm:$0xff]
    %v769 = vld [vmem:[#allocation6 + $0x468] sm:$0xff]
    %v770 = vld [vmem:[#allocation6 + $0x470] sm:$0xff]
    %v771 = vld [vmem:[#allocation6 + $0x478] sm:$0xff]
    %v772 = vld [vmem:[#allocation6 + $0x480] sm:$0xff]
    %v773 = vld [vmem:[#allocation6 + $0x488] sm:$0xff]
    %v774 = vld [vmem:[#allocation6 + $0x490] sm:$0xff]
    %v775 = vld [vmem:[#allocation6 + $0x498] sm:$0xff]
    %v776 = vld [vmem:[#allocation6 + $0x4a0] sm:$0xff]
    %v777 = vld [vmem:[#allocation6 + $0x4a8] sm:$0xff]
    %v778 = vld [vmem:[#allocation6 + $0x4b0] sm:$0xff]
    %v779 = vld [vmem:[#allocation6 + $0x4b8] sm:$0xff]
    %v780 = vld [vmem:[#allocation6 + $0x4c0] sm:$0xff]
    %v781 = vld [vmem:[#allocation6 + $0x4c8] sm:$0xff]
    %v782 = vld [vmem:[#allocation6 + $0x4d0] sm:$0xff]
    %v783 = vld [vmem:[#allocation6 + $0x4d8] sm:$0xff]
    %v784 = vld [vmem:[#allocation6 + $0x4e0] sm:$0xff]
    %v785 = vld [vmem:[#allocation6 + $0x4e8] sm:$0xff]
    %v786 = vld [vmem:[#allocation6 + $0x4f0] sm:$0xff]
    %v787 = vld [vmem:[#allocation6 + $0x4f8] sm:$0xff]
    %v788 = vld [vmem:[#allocation6 + $0x500] sm:$0xff]
    %v789 = vld [vmem:[#allocation6 + $0x508] sm:$0xff]
    %v790 = vld [vmem:[#allocation6 + $0x510] sm:$0xff]
    %v791 = vld [vmem:[#allocation6 + $0x518] sm:$0xff]
    %v792 = vld [vmem:[#allocation6 + $0x520] sm:$0xff]
    %v793 = vld [vmem:[#allocation6 + $0x528] sm:$0xff]
    %v794 = vld [vmem:[#allocation6 + $0x530] sm:$0xff]
    %v795 = vld [vmem:[#allocation6 + $0x538] sm:$0xff]
    %v796 = vld [vmem:[#allocation6 + $0x540] sm:$0xff]
    %v797 = vld [vmem:[#allocation6 + $0x548] sm:$0xff]
    %v798 = vld [vmem:[#allocation6 + $0x550] sm:$0xff]
    %v799 = vld [vmem:[#allocation6 + $0x558] sm:$0xff]
    %v800 = vld [vmem:[#allocation6 + $0x560] sm:$0xff]
    %v801 = vld [vmem:[#allocation6 + $0x568] sm:$0xff]
    %v802 = vld [vmem:[#allocation6 + $0x570] sm:$0xff]
    %v803 = vld [vmem:[#allocation6 + $0x578] sm:$0xff]
    %v804 = vld [vmem:[#allocation6 + $0x580] sm:$0xff]
    %v805 = vld [vmem:[#allocation6 + $0x588] sm:$0xff]
    %v806 = vld [vmem:[#allocation6 + $0x590] sm:$0xff]
    %v807 = vld [vmem:[#allocation6 + $0x598] sm:$0xff]
    %v808 = vld [vmem:[#allocation6 + $0x5a0] sm:$0xff]
    %v809 = vld [vmem:[#allocation6 + $0x5a8] sm:$0xff]
    %v810 = vld [vmem:[#allocation6 + $0x5b0] sm:$0xff]
    %v811 = vld [vmem:[#allocation6 + $0x5b8] sm:$0xff]
    %v812 = vld [vmem:[#allocation6 + $0x5c0] sm:$0xff]
    %v813 = vld [vmem:[#allocation6 + $0x5c8] sm:$0xff]
    %v814 = vld [vmem:[#allocation6 + $0x5d0] sm:$0xff]
    %v815 = vld [vmem:[#allocation6 + $0x5d8] sm:$0xff]
    %v816 = vld [vmem:[#allocation6 + $0x5e0] sm:$0xff]
    %v817 = vld [vmem:[#allocation6 + $0x5e8] sm:$0xff]
    %v818 = vld [vmem:[#allocation6 + $0x5f0] sm:$0xff]
    %v819 = vld [vmem:[#allocation6 + $0x5f8] sm:$0xff]
    %v820 = vld [vmem:[#allocation6 + $0x600] sm:$0xff]
    %v821 = vld [vmem:[#allocation6 + $0x608] sm:$0xff]
    %v822 = vld [vmem:[#allocation6 + $0x610] sm:$0xff]
    %v823 = vld [vmem:[#allocation6 + $0x618] sm:$0xff]
    %v824 = vld [vmem:[#allocation6 + $0x620] sm:$0xff]
    %v825 = vld [vmem:[#allocation6 + $0x628] sm:$0xff]
    %v826 = vld [vmem:[#allocation6 + $0x630] sm:$0xff]
    %v827 = vld [vmem:[#allocation6 + $0x638] sm:$0xff]
    %v828 = vld [vmem:[#allocation6 + $0x640] sm:$0xff]
    %v829 = vld [vmem:[#allocation6 + $0x648] sm:$0xff]
    %v830 = vld [vmem:[#allocation6 + $0x650] sm:$0xff]
    %v831 = vld [vmem:[#allocation6 + $0x658] sm:$0xff]
    %v832 = vld [vmem:[#allocation6 + $0x660] sm:$0xff]
    %v833 = vld [vmem:[#allocation6 + $0x668] sm:$0xff]
    %v834 = vld [vmem:[#allocation6 + $0x670] sm:$0xff]
    %v835 = vld [vmem:[#allocation6 + $0x678] sm:$0xff]
    %v836 = vld [vmem:[#allocation6 + $0x680] sm:$0xff]
    %v837 = vld [vmem:[#allocation6 + $0x688] sm:$0xff]
    %v838 = vld [vmem:[#allocation6 + $0x690] sm:$0xff]
    %v839 = vld [vmem:[#allocation6 + $0x698] sm:$0xff]
    %v840 = vld [vmem:[#allocation6 + $0x6a0] sm:$0xff]
    %v841 = vld [vmem:[#allocation6 + $0x6a8] sm:$0xff]
    %v842 = vld [vmem:[#allocation6 + $0x6b0] sm:$0xff]
    %v843 = vld [vmem:[#allocation6 + $0x6b8] sm:$0xff]
    %v844 = vld [vmem:[#allocation6 + $0x6c0] sm:$0xff]
    %v845 = vld [vmem:[#allocation6 + $0x6c8] sm:$0xff]
    %v846 = vld [vmem:[#allocation6 + $0x6d0] sm:$0xff]
    %v847 = vld [vmem:[#allocation6 + $0x6d8] sm:$0xff]
    %v848 = vld [vmem:[#allocation6 + $0x6e0] sm:$0xff]
    %v849 = vld [vmem:[#allocation6 + $0x6e8] sm:$0xff]
    %v850 = vld [vmem:[#allocation6 + $0x6f0] sm:$0xff]
    %v851 = vld [vmem:[#allocation6 + $0x6f8] sm:$0xff]
    %v852 = vld [vmem:[#allocation6 + $0x700] sm:$0xff]
    %v853 = vld [vmem:[#allocation6 + $0x708] sm:$0xff]
    %v854 = vld [vmem:[#allocation6 + $0x710] sm:$0xff]
    %v855 = vld [vmem:[#allocation6 + $0x718] sm:$0xff]
    %v856 = vld [vmem:[#allocation6 + $0x720] sm:$0xff]
    %v857 = vld [vmem:[#allocation6 + $0x728] sm:$0xff]
    %v858 = vld [vmem:[#allocation6 + $0x730] sm:$0xff]
    %v859 = vld [vmem:[#allocation6 + $0x738] sm:$0xff]
    %v860 = vld [vmem:[#allocation6 + $0x740] sm:$0xff]
    %v861 = vld [vmem:[#allocation6 + $0x748] sm:$0xff]
    %v862 = vld [vmem:[#allocation6 + $0x750] sm:$0xff]
    %v863 = vld [vmem:[#allocation6 + $0x758] sm:$0xff]
    %v864 = vld [vmem:[#allocation6 + $0x760] sm:$0xff]
    %v865 = vld [vmem:[#allocation6 + $0x768] sm:$0xff]
    %v866 = vld [vmem:[#allocation6 + $0x770] sm:$0xff]
    %v867 = vld [vmem:[#allocation6 + $0x778] sm:$0xff]
    %v868 = vld [vmem:[#allocation6 + $0x780] sm:$0xff]
    %v869 = vld [vmem:[#allocation6 + $0x788] sm:$0xff]
    %v870 = vld [vmem:[#allocation6 + $0x790] sm:$0xff]
    %v871 = vld [vmem:[#allocation6 + $0x798] sm:$0xff]
    %v872 = vld [vmem:[#allocation6 + $0x7a0] sm:$0xff]
    %v873 = vld [vmem:[#allocation6 + $0x7a8] sm:$0xff]
    %v874 = vld [vmem:[#allocation6 + $0x7b0] sm:$0xff]
    %v875 = vld [vmem:[#allocation6 + $0x7b8] sm:$0xff]
    %v876 = vld [vmem:[#allocation6 + $0x7c0] sm:$0xff]
    %v877 = vld [vmem:[#allocation6 + $0x7c8] sm:$0xff]
    %v878 = vld [vmem:[#allocation6 + $0x7d0] sm:$0xff]
    %v879 = vld [vmem:[#allocation6 + $0x7d8] sm:$0xff]
    %v880 = vld [vmem:[#allocation6 + $0x7e0] sm:$0xff]
    %v881 = vld [vmem:[#allocation6 + $0x7e8] sm:$0xff]
    %v882 = vld [vmem:[#allocation6 + $0x7f0] sm:$0xff]
    %v883 = vld [vmem:[#allocation6 + $0x7f8] sm:$0xff]
    %v884 = vld [vmem:[#allocation6 + $0x800] sm:$0xff]
    %v885 = vld [vmem:[#allocation6 + $0x808] sm:$0xff]
    %v886 = vld [vmem:[#allocation6 + $0x810] sm:$0xff]
    %v887 = vld [vmem:[#allocation6 + $0x818] sm:$0xff]
    %v888 = vld [vmem:[#allocation6 + $0x820] sm:$0xff]
    %v889 = vld [vmem:[#allocation6 + $0x828] sm:$0xff]
    %v890 = vld [vmem:[#allocation6 + $0x830] sm:$0xff]
    %v891 = vld [vmem:[#allocation6 + $0x838] sm:$0xff]
    %v892 = vld [vmem:[#allocation6 + $0x840] sm:$0xff]
    %v893 = vld [vmem:[#allocation6 + $0x848] sm:$0xff]
    %v894 = vld [vmem:[#allocation6 + $0x850] sm:$0xff]
    %v895 = vld [vmem:[#allocation6 + $0x858] sm:$0xff]
    %v896 = vld [vmem:[#allocation6 + $0x860] sm:$0xff]
    %v897 = vld [vmem:[#allocation6 + $0x868] sm:$0xff]
    %v898 = vld [vmem:[#allocation6 + $0x870] sm:$0xff]
    %v899 = vld [vmem:[#allocation6 + $0x878] sm:$0xff]
    %v900 = vld [vmem:[#allocation6 + $0x880] sm:$0xff]
    %v901 = vld [vmem:[#allocation6 + $0x888] sm:$0xff]
    %v902 = vld [vmem:[#allocation6 + $0x890] sm:$0xff]
    %v903 = vld [vmem:[#allocation6 + $0x898] sm:$0xff]
    %v904 = vld [vmem:[#allocation6 + $0x8a0] sm:$0xff]
    %v905 = vld [vmem:[#allocation6 + $0x8a8] sm:$0xff]
    %v906 = vld [vmem:[#allocation6 + $0x8b0] sm:$0xff]
    %v907 = vld [vmem:[#allocation6 + $0x8b8] sm:$0xff]
    %v908 = vld [vmem:[#allocation6 + $0x8c0] sm:$0xff]
    %v909 = vld [vmem:[#allocation6 + $0x8c8] sm:$0xff]
    %v910 = vld [vmem:[#allocation6 + $0x8d0] sm:$0xff]
    %v911 = vld [vmem:[#allocation6 + $0x8d8] sm:$0xff]
    %v912 = vld [vmem:[#allocation6 + $0x8e0] sm:$0xff]
    %v913 = vld [vmem:[#allocation6 + $0x8e8] sm:$0xff]
    %v914 = vld [vmem:[#allocation6 + $0x8f0] sm:$0xff]
    %v915 = vld [vmem:[#allocation6 + $0x8f8] sm:$0xff]
    %v916 = vld [vmem:[#allocation6 + $0x900] sm:$0xff]
    %v917 = vld [vmem:[#allocation6 + $0x908] sm:$0xff]
    %v918 = vld [vmem:[#allocation6 + $0x910] sm:$0xff]
    %v919 = vld [vmem:[#allocation6 + $0x918] sm:$0xff]
    %v920 = vld [vmem:[#allocation6 + $0x920] sm:$0xff]
    %v921 = vld [vmem:[#allocation6 + $0x928] sm:$0xff]
    %v922 = vld [vmem:[#allocation6 + $0x930] sm:$0xff]
    %v923 = vld [vmem:[#allocation6 + $0x938] sm:$0xff]
    %v924 = vld [vmem:[#allocation6 + $0x940] sm:$0xff]
    %v925 = vld [vmem:[#allocation6 + $0x948] sm:$0xff]
    %v926 = vld [vmem:[#allocation6 + $0x950] sm:$0xff]
    %v927 = vld [vmem:[#allocation6 + $0x958] sm:$0xff]
    %v928 = vld [vmem:[#allocation6 + $0x960] sm:$0xff]
    %v929 = vld [vmem:[#allocation6 + $0x968] sm:$0xff]
    %v930 = vld [vmem:[#allocation6 + $0x970] sm:$0xff]
    %v931 = vld [vmem:[#allocation6 + $0x978] sm:$0xff]
    %v932 = vld [vmem:[#allocation6 + $0x980] sm:$0xff]
    %v933 = vld [vmem:[#allocation6 + $0x988] sm:$0xff]
    %v934 = vld [vmem:[#allocation6 + $0x990] sm:$0xff]
    %v935 = vld [vmem:[#allocation6 + $0x998] sm:$0xff]
    %v936 = vld [vmem:[#allocation6 + $0x9a0] sm:$0xff]
    %v937 = vld [vmem:[#allocation6 + $0x9a8] sm:$0xff]
    %v938 = vld [vmem:[#allocation6 + $0x9b0] sm:$0xff]
    %v939 = vld [vmem:[#allocation6 + $0x9b8] sm:$0xff]
    %v940 = vld [vmem:[#allocation6 + $0x9c0] sm:$0xff]
    %v941 = vld [vmem:[#allocation6 + $0x9c8] sm:$0xff]
    %v942 = vld [vmem:[#allocation6 + $0x9d0] sm:$0xff]
    %v943 = vld [vmem:[#allocation6 + $0x9d8] sm:$0xff]
    %v944 = vld [vmem:[#allocation6 + $0x9e0] sm:$0xff]
    %v945 = vld [vmem:[#allocation6 + $0x9e8] sm:$0xff]
    %v946 = vld [vmem:[#allocation6 + $0x9f0] sm:$0xff]
    %v947 = vld [vmem:[#allocation6 + $0x9f8] sm:$0xff]
    %v948 = vld [vmem:[#allocation6 + $0xa00] sm:$0xff]
    %v949 = vld [vmem:[#allocation6 + $0xa08] sm:$0xff]
    %v950 = vld [vmem:[#allocation6 + $0xa10] sm:$0xff]
    %v951 = vld [vmem:[#allocation6 + $0xa18] sm:$0xff]
    %v952 = vld [vmem:[#allocation6 + $0xa20] sm:$0xff]
    %v953 = vld [vmem:[#allocation6 + $0xa28] sm:$0xff]
    %v954 = vld [vmem:[#allocation6 + $0xa30] sm:$0xff]
    %v955 = vld [vmem:[#allocation6 + $0xa38] sm:$0xff]
    %v956 = vld [vmem:[#allocation6 + $0xa40] sm:$0xff]
    %v957 = vld [vmem:[#allocation6 + $0xa48] sm:$0xff]
    %v958 = vld [vmem:[#allocation6 + $0xa50] sm:$0xff]
    %v959 = vld [vmem:[#allocation6 + $0xa58] sm:$0xff]
    %v960 = vld [vmem:[#allocation6 + $0xa60] sm:$0xff]
    %v961 = vld [vmem:[#allocation6 + $0xa68] sm:$0xff]
    %v962 = vld [vmem:[#allocation6 + $0xa70] sm:$0xff]
    %v963 = vld [vmem:[#allocation6 + $0xa78] sm:$0xff]
    %v964 = vld [vmem:[#allocation6 + $0xa80] sm:$0xff]
    %v965 = vld [vmem:[#allocation6 + $0xa88] sm:$0xff]
    %v966 = vld [vmem:[#allocation6 + $0xa90] sm:$0xff]
    %v967 = vld [vmem:[#allocation6 + $0xa98] sm:$0xff]
    %v968 = vld [vmem:[#allocation6 + $0xaa0] sm:$0xff]
    %v969 = vld [vmem:[#allocation6 + $0xaa8] sm:$0xff]
    %v970 = vld [vmem:[#allocation6 + $0xab0] sm:$0xff]
    %v971 = vld [vmem:[#allocation6 + $0xab8] sm:$0xff]
    %v972 = vld [vmem:[#allocation6 + $0xac0] sm:$0xff]
    %v973 = vld [vmem:[#allocation6 + $0xac8] sm:$0xff]
    %v974 = vld [vmem:[#allocation6 + $0xad0] sm:$0xff]
    %v975 = vld [vmem:[#allocation6 + $0xad8] sm:$0xff]
    %v976 = vld [vmem:[#allocation6 + $0xae0] sm:$0xff]
    %v977 = vld [vmem:[#allocation6 + $0xae8] sm:$0xff]
    %v978 = vld [vmem:[#allocation6 + $0xaf0] sm:$0xff]
    %v979 = vld [vmem:[#allocation6 + $0xaf8] sm:$0xff]
    %v980 = vld [vmem:[#allocation6 + $0xb00] sm:$0xff]
    %v981 = vld [vmem:[#allocation6 + $0xb08] sm:$0xff]
    %v982 = vld [vmem:[#allocation6 + $0xb10] sm:$0xff]
    %v983 = vld [vmem:[#allocation6 + $0xb18] sm:$0xff]
    %v984 = vld [vmem:[#allocation6 + $0xb20] sm:$0xff]
    %v985 = vld [vmem:[#allocation6 + $0xb28] sm:$0xff]
    %v986 = vld [vmem:[#allocation6 + $0xb30] sm:$0xff]
    %v987 = vld [vmem:[#allocation6 + $0xb38] sm:$0xff]
    %v988 = vld [vmem:[#allocation6 + $0xb40] sm:$0xff]
    %v989 = vld [vmem:[#allocation6 + $0xb48] sm:$0xff]
    %v990 = vld [vmem:[#allocation6 + $0xb50] sm:$0xff]
    %v991 = vld [vmem:[#allocation6 + $0xb58] sm:$0xff]
    %v992 = vld [vmem:[#allocation6 + $0xb60] sm:$0xff]
    %v993 = vld [vmem:[#allocation6 + $0xb68] sm:$0xff]
    %v994 = vld [vmem:[#allocation6 + $0xb70] sm:$0xff]
    %v995 = vld [vmem:[#allocation6 + $0xb78] sm:$0xff]
    %v996 = vld [vmem:[#allocation6 + $0xb80] sm:$0xff]
    %v997 = vld [vmem:[#allocation6 + $0xb88] sm:$0xff]
    %v998 = vld [vmem:[#allocation6 + $0xb90] sm:$0xff]
    %v999 = vld [vmem:[#allocation6 + $0xb98] sm:$0xff]
    %v1000 = vld [vmem:[#allocation6 + $0xba0] sm:$0xff]
    %v1001 = vld [vmem:[#allocation6 + $0xba8] sm:$0xff]
    %v1002 = vld [vmem:[#allocation6 + $0xbb0] sm:$0xff]
    %v1003 = vld [vmem:[#allocation6 + $0xbb8] sm:$0xff]
    %v1004 = vld [vmem:[#allocation6 + $0xbc0] sm:$0xff]
    %v1005 = vld [vmem:[#allocation6 + $0xbc8] sm:$0xff]
    %v1006 = vld [vmem:[#allocation6 + $0xbd0] sm:$0xff]
    %v1007 = vld [vmem:[#allocation6 + $0xbd8] sm:$0xff]
    %v1008 = vld [vmem:[#allocation6 + $0xbe0] sm:$0xff]
    %v1009 = vld [vmem:[#allocation6 + $0xbe8] sm:$0xff]
    %v1010 = vld [vmem:[#allocation6 + $0xbf0] sm:$0xff]
    %v1011 = vld [vmem:[#allocation6 + $0xbf8] sm:$0xff]
    %v1012 = vld [vmem:[#allocation6 + $0xc00] sm:$0xff]
    %v1013 = vld [vmem:[#allocation6 + $0xc08] sm:$0xff]
    %v1014 = vld [vmem:[#allocation6 + $0xc10] sm:$0xff]
    %v1015 = vld [vmem:[#allocation6 + $0xc18] sm:$0xff]
    %v1016 = vld [vmem:[#allocation6 + $0xc20] sm:$0xff]
    %v1017 = vld [vmem:[#allocation6 + $0xc28] sm:$0xff]
    %v1018 = vld [vmem:[#allocation6 + $0xc30] sm:$0xff]
    %v1019 = vld [vmem:[#allocation6 + $0xc38] sm:$0xff]
    %v1020 = vld [vmem:[#allocation6 + $0xc40] sm:$0xff]
    %v1021 = vld [vmem:[#allocation6 + $0xc48] sm:$0xff]
    %v1022 = vld [vmem:[#allocation6 + $0xc50] sm:$0xff]
    %v1023 = vld [vmem:[#allocation6 + $0xc58] sm:$0xff]
    %v1024 = vld [vmem:[#allocation6 + $0xc60] sm:$0xff]
    %v1025 = vld [vmem:[#allocation6 + $0xc68] sm:$0xff]
    %v1026 = vld [vmem:[#allocation6 + $0xc70] sm:$0xff]
    %v1027 = vld [vmem:[#allocation6 + $0xc78] sm:$0xff]
    %v1028 = vld [vmem:[#allocation6 + $0xc80] sm:$0xff]
    %v1029 = vld [vmem:[#allocation6 + $0xc88] sm:$0xff]
    %v1030 = vld [vmem:[#allocation6 + $0xc90] sm:$0xff]
    %v1031 = vld [vmem:[#allocation6 + $0xc98] sm:$0xff]
    %v1032 = vld [vmem:[#allocation6 + $0xca0] sm:$0xff]
    %v1033 = vld [vmem:[#allocation6 + $0xca8] sm:$0xff]
    %v1034 = vld [vmem:[#allocation6 + $0xcb0] sm:$0xff]
    %v1035 = vld [vmem:[#allocation6 + $0xcb8] sm:$0xff]
    %v1036 = vld [vmem:[#allocation6 + $0xcc0] sm:$0xff]
    %v1037 = vld [vmem:[#allocation6 + $0xcc8] sm:$0xff]
    %v1038 = vld [vmem:[#allocation6 + $0xcd0] sm:$0xff]
    %v1039 = vld [vmem:[#allocation6 + $0xcd8] sm:$0xff]
    %v1040 = vld [vmem:[#allocation6 + $0xce0] sm:$0xff]
    %v1041 = vld [vmem:[#allocation6 + $0xce8] sm:$0xff]
    %v1042 = vld [vmem:[#allocation6 + $0xcf0] sm:$0xff]
    %v1043 = vld [vmem:[#allocation6 + $0xcf8] sm:$0xff]
    %v1044 = vld [vmem:[#allocation6 + $0xd00] sm:$0xff]
    %v1045 = vld [vmem:[#allocation6 + $0xd08] sm:$0xff]
    %v1046 = vld [vmem:[#allocation6 + $0xd10] sm:$0xff]
    %v1047 = vld [vmem:[#allocation6 + $0xd18] sm:$0xff]
    %v1048 = vld [vmem:[#allocation6 + $0xd20] sm:$0xff]
    %v1049 = vld [vmem:[#allocation6 + $0xd28] sm:$0xff]
    %v1050 = vld [vmem:[#allocation6 + $0xd30] sm:$0xff]
    %v1051 = vld [vmem:[#allocation6 + $0xd38] sm:$0xff]
    %v1052 = vld [vmem:[#allocation6 + $0xd40] sm:$0xff]
    %v1053 = vld [vmem:[#allocation6 + $0xd48] sm:$0xff]
    %v1054 = vld [vmem:[#allocation6 + $0xd50] sm:$0xff]
    %v1055 = vld [vmem:[#allocation6 + $0xd58] sm:$0xff]
    %v1056 = vld [vmem:[#allocation6 + $0xd60] sm:$0xff]
    %v1057 = vld [vmem:[#allocation6 + $0xd68] sm:$0xff]
    %v1058 = vld [vmem:[#allocation6 + $0xd70] sm:$0xff]
    %v1059 = vld [vmem:[#allocation6 + $0xd78] sm:$0xff]
    %v1060 = vld [vmem:[#allocation6 + $0xd80] sm:$0xff]
    %v1061 = vld [vmem:[#allocation6 + $0xd88] sm:$0xff]
    %v1062 = vld [vmem:[#allocation6 + $0xd90] sm:$0xff]
    %v1063 = vld [vmem:[#allocation6 + $0xd98] sm:$0xff]
    %v1064 = vld [vmem:[#allocation6 + $0xda0] sm:$0xff]
    %v1065 = vld [vmem:[#allocation6 + $0xda8] sm:$0xff]
    %v1066 = vld [vmem:[#allocation6 + $0xdb0] sm:$0xff]
    %v1067 = vld [vmem:[#allocation6 + $0xdb8] sm:$0xff]
    %v1068 = vld [vmem:[#allocation6 + $0xdc0] sm:$0xff]
    %v1069 = vld [vmem:[#allocation6 + $0xdc8] sm:$0xff]
    %v1070 = vld [vmem:[#allocation6 + $0xdd0] sm:$0xff]
    %v1071 = vld [vmem:[#allocation6 + $0xdd8] sm:$0xff]
    %v1072 = vld [vmem:[#allocation6 + $0xde0] sm:$0xff]
    %v1073 = vld [vmem:[#allocation6 + $0xde8] sm:$0xff]
    %v1074 = vld [vmem:[#allocation6 + $0xdf0] sm:$0xff]
    %v1075 = vld [vmem:[#allocation6 + $0xdf8] sm:$0xff]
    %v1076 = vld [vmem:[#allocation6 + $0xe00] sm:$0xff]
    %v1077 = vld [vmem:[#allocation6 + $0xe08] sm:$0xff]
    %v1078 = vld [vmem:[#allocation6 + $0xe10] sm:$0xff]
    %v1079 = vld [vmem:[#allocation6 + $0xe18] sm:$0xff]
    %v1080 = vld [vmem:[#allocation6 + $0xe20] sm:$0xff]
    %v1081 = vld [vmem:[#allocation6 + $0xe28] sm:$0xff]
    %v1082 = vld [vmem:[#allocation6 + $0xe30] sm:$0xff]
    %v1083 = vld [vmem:[#allocation6 + $0xe38] sm:$0xff]
    %v1084 = vld [vmem:[#allocation6 + $0xe40] sm:$0xff]
    %v1085 = vld [vmem:[#allocation6 + $0xe48] sm:$0xff]
    %v1086 = vld [vmem:[#allocation6 + $0xe50] sm:$0xff]
    %v1087 = vld [vmem:[#allocation6 + $0xe58] sm:$0xff]
    %v1088 = vld [vmem:[#allocation6 + $0xe60] sm:$0xff]
    %v1089 = vld [vmem:[#allocation6 + $0xe68] sm:$0xff]
    %v1090 = vld [vmem:[#allocation6 + $0xe70] sm:$0xff]
    %v1091 = vld [vmem:[#allocation6 + $0xe78] sm:$0xff]
    %v1092 = vld [vmem:[#allocation6 + $0xe80] sm:$0xff]
    %v1093 = vld [vmem:[#allocation6 + $0xe88] sm:$0xff]
    %v1094 = vld [vmem:[#allocation6 + $0xe90] sm:$0xff]
    %v1095 = vld [vmem:[#allocation6 + $0xe98] sm:$0xff]
    %v1096 = vld [vmem:[#allocation6 + $0xea0] sm:$0xff]
    %v1097 = vld [vmem:[#allocation6 + $0xea8] sm:$0xff]
    %v1098 = vld [vmem:[#allocation6 + $0xeb0] sm:$0xff]
    %v1099 = vld [vmem:[#allocation6 + $0xeb8] sm:$0xff]
    %v1100 = vld [vmem:[#allocation6 + $0xec0] sm:$0xff]
    %v1101 = vld [vmem:[#allocation6 + $0xec8] sm:$0xff]
    %v1102 = vld [vmem:[#allocation6 + $0xed0] sm:$0xff]
    %v1103 = vld [vmem:[#allocation6 + $0xed8] sm:$0xff]
    %v1104 = vld [vmem:[#allocation6 + $0xee0] sm:$0xff]
    %v1105 = vld [vmem:[#allocation6 + $0xee8] sm:$0xff]
    %v1106 = vld [vmem:[#allocation6 + $0xef0] sm:$0xff]
    %v1107 = vld [vmem:[#allocation6 + $0xef8] sm:$0xff]
    %v1108 = vld [vmem:[#allocation6 + $0xf00] sm:$0xff]
    %v1109 = vld [vmem:[#allocation6 + $0xf08] sm:$0xff]
    %v1110 = vld [vmem:[#allocation6 + $0xf10] sm:$0xff]
    %v1111 = vld [vmem:[#allocation6 + $0xf18] sm:$0xff]
    %v1112 = vld [vmem:[#allocation6 + $0xf20] sm:$0xff]
    %v1113 = vld [vmem:[#allocation6 + $0xf28] sm:$0xff]
    %v1114 = vld [vmem:[#allocation6 + $0xf30] sm:$0xff]
    %v1115 = vld [vmem:[#allocation6 + $0xf38] sm:$0xff]
    %v1116 = vld [vmem:[#allocation6 + $0xf40] sm:$0xff]
    %v1117 = vld [vmem:[#allocation6 + $0xf48] sm:$0xff]
    %v1118 = vld [vmem:[#allocation6 + $0xf50] sm:$0xff]
    %v1119 = vld [vmem:[#allocation6 + $0xf58] sm:$0xff]
    %v1120 = vld [vmem:[#allocation6 + $0xf60] sm:$0xff]
    %v1121 = vld [vmem:[#allocation6 + $0xf68] sm:$0xff]
    %v1122 = vld [vmem:[#allocation6 + $0xf70] sm:$0xff]
    %v1123 = vld [vmem:[#allocation6 + $0xf78] sm:$0xff]
    %v1124 = vld [vmem:[#allocation6 + $0xf80] sm:$0xff]
    %v1125 = vld [vmem:[#allocation6 + $0xf88] sm:$0xff]
    %v1126 = vld [vmem:[#allocation6 + $0xf90] sm:$0xff]
    %v1127 = vld [vmem:[#allocation6 + $0xf98] sm:$0xff]
    %v1128 = vld [vmem:[#allocation6 + $0xfa0] sm:$0xff]
    %v1129 = vld [vmem:[#allocation6 + $0xfa8] sm:$0xff]
    %v1130 = vld [vmem:[#allocation6 + $0xfb0] sm:$0xff]
    %v1131 = vld [vmem:[#allocation6 + $0xfb8] sm:$0xff]
    %v1132 = vld [vmem:[#allocation6 + $0xfc0] sm:$0xff]
    %v1133 = vld [vmem:[#allocation6 + $0xfc8] sm:$0xff]
    %v1134 = vld [vmem:[#allocation6 + $0xfd0] sm:$0xff]
    %v1135 = vld [vmem:[#allocation6 + $0xfd8] sm:$0xff]
    %v1136 = vld [vmem:[#allocation6 + $0xfe0] sm:$0xff]
    %v1137 = vld [vmem:[#allocation6 + $0xfe8] sm:$0xff]
    %v1138 = vld [vmem:[#allocation6 + $0xff0] sm:$0xff]
    %v1139 = vld [vmem:[#allocation6 + $0xff8] sm:$0xff]
    %v1140 = vld [vmem:[#allocation6 + $0x1000] sm:$0xff]
    %v1141 = vld [vmem:[#allocation6 + $0x1008] sm:$0xff]
    %v1142 = vld [vmem:[#allocation6 + $0x1010] sm:$0xff]
    %v1143 = vld [vmem:[#allocation6 + $0x1018] sm:$0xff]
    %v1144 = vld [vmem:[#allocation6 + $0x1020] sm:$0xff]
    %v1145 = vld [vmem:[#allocation6 + $0x1028] sm:$0xff]
    %v1146 = vld [vmem:[#allocation6 + $0x1030] sm:$0xff]
    %v1147 = vld [vmem:[#allocation6 + $0x1038] sm:$0xff]
    %v1148 = vld [vmem:[#allocation6 + $0x1040] sm:$0xff]
    %v1149 = vld [vmem:[#allocation6 + $0x1048] sm:$0xff]
    %v1150 = vld [vmem:[#allocation6 + $0x1050] sm:$0xff]
    %v1151 = vld [vmem:[#allocation6 + $0x1058] sm:$0xff]
    %v1152 = vld [vmem:[#allocation6 + $0x1060] sm:$0xff]
    %v1153 = vld [vmem:[#allocation6 + $0x1068] sm:$0xff]
    %v1154 = vld [vmem:[#allocation6 + $0x1070] sm:$0xff]
    %v1155 = vld [vmem:[#allocation6 + $0x1078] sm:$0xff]
    %v1156 = vld [vmem:[#allocation6 + $0x1080] sm:$0xff]
    %v1157 = vld [vmem:[#allocation6 + $0x1088] sm:$0xff]
    %v1158 = vld [vmem:[#allocation6 + $0x1090] sm:$0xff]
    %v1159 = vld [vmem:[#allocation6 + $0x1098] sm:$0xff]
    %v1160 = vld [vmem:[#allocation6 + $0x10a0] sm:$0xff]
    %v1161 = vld [vmem:[#allocation6 + $0x10a8] sm:$0xff]
    %v1162 = vld [vmem:[#allocation6 + $0x10b0] sm:$0xff]
    %v1163 = vld [vmem:[#allocation6 + $0x10b8] sm:$0xff]
    %v1164 = vld [vmem:[#allocation6 + $0x10c0] sm:$0xff]
    %v1165 = vld [vmem:[#allocation6 + $0x10c8] sm:$0xff]
    %v1166 = vld [vmem:[#allocation6 + $0x10d0] sm:$0xff]
    %v1167 = vld [vmem:[#allocation6 + $0x10d8] sm:$0xff]
    %v1168 = vld [vmem:[#allocation6 + $0x10e0] sm:$0xff]
    %v1169 = vld [vmem:[#allocation6 + $0x10e8] sm:$0xff]
    %v1170 = vld [vmem:[#allocation6 + $0x10f0] sm:$0xff]
    %v1171 = vld [vmem:[#allocation6 + $0x10f8] sm:$0xff]
    %v1172 = vld [vmem:[#allocation6 + $0x1100] sm:$0xff]
    %v1173 = vld [vmem:[#allocation6 + $0x1108] sm:$0xff]
    %v1174 = vld [vmem:[#allocation6 + $0x1110] sm:$0xff]
    %v1175 = vld [vmem:[#allocation6 + $0x1118] sm:$0xff]
    %v1176 = vld [vmem:[#allocation6 + $0x1120] sm:$0xff]
    %v1177 = vld [vmem:[#allocation6 + $0x1128] sm:$0xff]
    %v1178 = vld [vmem:[#allocation6 + $0x1130] sm:$0xff]
    %v1179 = vld [vmem:[#allocation6 + $0x1138] sm:$0xff]
    %v1180 = vld [vmem:[#allocation6 + $0x1140] sm:$0xff]
    %v1181 = vld [vmem:[#allocation6 + $0x1148] sm:$0xff]
    %v1182 = vld [vmem:[#allocation6 + $0x1150] sm:$0xff]
    %v1183 = vld [vmem:[#allocation6 + $0x1158] sm:$0xff]
    %v1184 = vld [vmem:[#allocation6 + $0x1160] sm:$0xff]
    %v1185 = vld [vmem:[#allocation6 + $0x1168] sm:$0xff]
    %v1186 = vld [vmem:[#allocation6 + $0x1170] sm:$0xff]
    %v1187 = vld [vmem:[#allocation6 + $0x1178] sm:$0xff]
    %v1188 = vld [vmem:[#allocation6 + $0x1180] sm:$0xff]
    %v1189 = vld [vmem:[#allocation6 + $0x1188] sm:$0xff]
    %v1190 = vld [vmem:[#allocation6 + $0x1190] sm:$0xff]
    %v1191 = vld [vmem:[#allocation6 + $0x1198] sm:$0xff]
    %v1192 = vld [vmem:[#allocation6 + $0x11a0] sm:$0xff]
    %v1193 = vld [vmem:[#allocation6 + $0x11a8] sm:$0xff]
    %v1194 = vld [vmem:[#allocation6 + $0x11b0] sm:$0xff]
    %v1195 = vld [vmem:[#allocation6 + $0x11b8] sm:$0xff]
    %v1196 = vld [vmem:[#allocation6 + $0x11c0] sm:$0xff]
    %v1197 = vld [vmem:[#allocation6 + $0x11c8] sm:$0xff]
    %v1198 = vld [vmem:[#allocation6 + $0x11d0] sm:$0xff]
    %v1199 = vld [vmem:[#allocation6 + $0x11d8] sm:$0xff]
    %v1200 = vld [vmem:[#allocation6 + $0x11e0] sm:$0xff]
    %v1201 = vld [vmem:[#allocation6 + $0x11e8] sm:$0xff]
    %v1202 = vld [vmem:[#allocation6 + $0x11f0] sm:$0xff]
    %v1203 = vld [vmem:[#allocation6 + $0x11f8] sm:$0xff]
    %v1204 = vld [vmem:[#allocation6 + $0x1200] sm:$0xff]
    %v1205 = vld [vmem:[#allocation6 + $0x1208] sm:$0xff]
    %v1206 = vld [vmem:[#allocation6 + $0x1210] sm:$0xff]
    %v1207 = vld [vmem:[#allocation6 + $0x1218] sm:$0xff]
    %v1208 = vld [vmem:[#allocation6 + $0x1220] sm:$0xff]
    %v1209 = vld [vmem:[#allocation6 + $0x1228] sm:$0xff]
    %v1210 = vld [vmem:[#allocation6 + $0x1230] sm:$0xff]
    %v1211 = vld [vmem:[#allocation6 + $0x1238] sm:$0xff]
    %v1212 = vld [vmem:[#allocation6 + $0x1240] sm:$0xff]
    %v1213 = vld [vmem:[#allocation6 + $0x1248] sm:$0xff]
    %v1214 = vld [vmem:[#allocation6 + $0x1250] sm:$0xff]
    %v1215 = vld [vmem:[#allocation6 + $0x1258] sm:$0xff]
    %v1216 = vld [vmem:[#allocation6 + $0x1260] sm:$0xff]
    %v1217 = vld [vmem:[#allocation6 + $0x1268] sm:$0xff]
    %v1218 = vld [vmem:[#allocation6 + $0x1270] sm:$0xff]
    %v1219 = vld [vmem:[#allocation6 + $0x1278] sm:$0xff]
    %v1220 = vld [vmem:[#allocation6 + $0x1280] sm:$0xff]
    %v1221 = vld [vmem:[#allocation6 + $0x1288] sm:$0xff]
    %v1222 = vld [vmem:[#allocation6 + $0x1290] sm:$0xff]
    %v1223 = vld [vmem:[#allocation6 + $0x1298] sm:$0xff]
    %v1224 = vld [vmem:[#allocation6 + $0x12a0] sm:$0xff]
    %v1225 = vld [vmem:[#allocation6 + $0x12a8] sm:$0xff]
    %v1226 = vld [vmem:[#allocation6 + $0x12b0] sm:$0xff]
    %v1227 = vld [vmem:[#allocation6 + $0x12b8] sm:$0xff]
    %v1228 = vld [vmem:[#allocation6 + $0x12c0] sm:$0xff]
    %v1229 = vld [vmem:[#allocation6 + $0x12c8] sm:$0xff]
    %v1230 = vld [vmem:[#allocation6 + $0x12d0] sm:$0xff]
    %v1231 = vld [vmem:[#allocation6 + $0x12d8] sm:$0xff]
    %v1232 = vld [vmem:[#allocation6 + $0x12e0] sm:$0xff]
    %v1233 = vld [vmem:[#allocation6 + $0x12e8] sm:$0xff]
    %v1234 = vld [vmem:[#allocation6 + $0x12f0] sm:$0xff]
    %v1235 = vld [vmem:[#allocation6 + $0x12f8] sm:$0xff]
    %v1236 = vld [vmem:[#allocation6 + $0x1300] sm:$0xff]
    %v1237 = vld [vmem:[#allocation6 + $0x1308] sm:$0xff]
    %v1238 = vld [vmem:[#allocation6 + $0x1310] sm:$0xff]
    %v1239 = vld [vmem:[#allocation6 + $0x1318] sm:$0xff]
    %v1240 = vld [vmem:[#allocation6 + $0x1320] sm:$0xff]
    %v1241 = vld [vmem:[#allocation6 + $0x1328] sm:$0xff]
    %v1242 = vld [vmem:[#allocation6 + $0x1330] sm:$0xff]
    %v1243 = vld [vmem:[#allocation6 + $0x1338] sm:$0xff]
    %v1244 = vld [vmem:[#allocation6 + $0x1340] sm:$0xff]
    %v1245 = vld [vmem:[#allocation6 + $0x1348] sm:$0xff]
    %v1246 = vld [vmem:[#allocation6 + $0x1350] sm:$0xff]
    %v1247 = vld [vmem:[#allocation6 + $0x1358] sm:$0xff]
    %v1248 = vld [vmem:[#allocation6 + $0x1360] sm:$0xff]
    %v1249 = vld [vmem:[#allocation6 + $0x1368] sm:$0xff]
    %v1250 = vld [vmem:[#allocation6 + $0x1370] sm:$0xff]
    %v1251 = vld [vmem:[#allocation6 + $0x1378] sm:$0xff]
    %v1252 = vld [vmem:[#allocation6 + $0x1380] sm:$0xff]
    %v1253 = vld [vmem:[#allocation6 + $0x1388] sm:$0xff]
    %v1254 = vld [vmem:[#allocation6 + $0x1390] sm:$0xff]
    %v1255 = vld [vmem:[#allocation6 + $0x1398] sm:$0xff]
    %v1256 = vld [vmem:[#allocation6 + $0x13a0] sm:$0xff]
    %v1257 = vld [vmem:[#allocation6 + $0x13a8] sm:$0xff]
    %v1258 = vld [vmem:[#allocation6 + $0x13b0] sm:$0xff]
    %v1259 = vld [vmem:[#allocation6 + $0x13b8] sm:$0xff]
    %v1260 = vld [vmem:[#allocation6 + $0x13c0] sm:$0xff]
    %v1261 = vld [vmem:[#allocation6 + $0x13c8] sm:$0xff]
    %v1262 = vld [vmem:[#allocation6 + $0x13d0] sm:$0xff]
    %v1263 = vld [vmem:[#allocation6 + $0x13d8] sm:$0xff]
    %v1264 = vld [vmem:[#allocation6 + $0x13e0] sm:$0xff]
    %v1265 = vld [vmem:[#allocation6 + $0x13e8] sm:$0xff]
    %v1266 = vld [vmem:[#allocation6 + $0x13f0] sm:$0xff]
    %v1267 = vld [vmem:[#allocation6 + $0x13f8] sm:$0xff]
    %v1268 = vld [vmem:[#allocation6 + $0x1400] sm:$0xff]
    %v1269 = vld [vmem:[#allocation6 + $0x1408] sm:$0xff]
    %v1270 = vld [vmem:[#allocation6 + $0x1410] sm:$0xff]
    %v1271 = vld [vmem:[#allocation6 + $0x1418] sm:$0xff]
    %v1272 = vld [vmem:[#allocation6 + $0x1420] sm:$0xff]
    %v1273 = vld [vmem:[#allocation6 + $0x1428] sm:$0xff]
    %v1274 = vld [vmem:[#allocation6 + $0x1430] sm:$0xff]
    %v1275 = vld [vmem:[#allocation6 + $0x1438] sm:$0xff]
    %v1276 = vld [vmem:[#allocation6 + $0x1440] sm:$0xff]
    %v1277 = vld [vmem:[#allocation6 + $0x1448] sm:$0xff]
    %v1278 = vld [vmem:[#allocation6 + $0x1450] sm:$0xff]
    %v1279 = vld [vmem:[#allocation6 + $0x1458] sm:$0xff]
    %v1280 = vld [vmem:[#allocation6 + $0x1460] sm:$0xff]
    %v1281 = vld [vmem:[#allocation6 + $0x1468] sm:$0xff]
    %v1282 = vld [vmem:[#allocation6 + $0x1470] sm:$0xff]
    %v1283 = vld [vmem:[#allocation6 + $0x1478] sm:$0xff]
    %v1284 = vld [vmem:[#allocation6 + $0x1480] sm:$0xff]
    %v1285 = vld [vmem:[#allocation6 + $0x1488] sm:$0xff]
    %v1286 = vld [vmem:[#allocation6 + $0x1490] sm:$0xff]
    %v1287 = vld [vmem:[#allocation6 + $0x1498] sm:$0xff]
    %v1288 = vld [vmem:[#allocation6 + $0x14a0] sm:$0xff]
    %v1289 = vld [vmem:[#allocation6 + $0x14a8] sm:$0xff]
    %v1290 = vld [vmem:[#allocation6 + $0x14b0] sm:$0xff]
    %v1291 = vld [vmem:[#allocation6 + $0x14b8] sm:$0xff]
    %v1292 = vld [vmem:[#allocation6 + $0x14c0] sm:$0xff]
    %v1293 = vld [vmem:[#allocation6 + $0x14c8] sm:$0xff]
    %v1294 = vld [vmem:[#allocation6 + $0x14d0] sm:$0xff]
    %v1295 = vld [vmem:[#allocation6 + $0x14d8] sm:$0xff]
    %v1296 = vld [vmem:[#allocation6 + $0x14e0] sm:$0xff]
    %v1297 = vld [vmem:[#allocation6 + $0x14e8] sm:$0xff]
    %v1298 = vld [vmem:[#allocation6 + $0x14f0] sm:$0xff]
    %v1299 = vld [vmem:[#allocation6 + $0x14f8] sm:$0xff]
    %v1300 = vld [vmem:[#allocation6 + $0x1500] sm:$0xff]
    %v1301 = vld [vmem:[#allocation6 + $0x1508] sm:$0xff]
    %v1302 = vld [vmem:[#allocation6 + $0x1510] sm:$0xff]
    %v1303 = vld [vmem:[#allocation6 + $0x1518] sm:$0xff]
    %v1304 = vld [vmem:[#allocation6 + $0x1520] sm:$0xff]
    %v1305 = vld [vmem:[#allocation6 + $0x1528] sm:$0xff]
    %v1306 = vld [vmem:[#allocation6 + $0x1530] sm:$0xff]
    %v1307 = vld [vmem:[#allocation6 + $0x1538] sm:$0xff]
    %v1308 = vld [vmem:[#allocation6 + $0x1540] sm:$0xff]
    %v1309 = vld [vmem:[#allocation6 + $0x1548] sm:$0xff]
    %v1310 = vld [vmem:[#allocation6 + $0x1550] sm:$0xff]
    %v1311 = vld [vmem:[#allocation6 + $0x1558] sm:$0xff]
    %v1312 = vld [vmem:[#allocation6 + $0x1560] sm:$0xff]
    %v1313 = vld [vmem:[#allocation6 + $0x1568] sm:$0xff]
    %v1314 = vld [vmem:[#allocation6 + $0x1570] sm:$0xff]
    %v1315 = vld [vmem:[#allocation6 + $0x1578] sm:$0xff]
    %v1316 = vld [vmem:[#allocation6 + $0x1580] sm:$0xff]
    %v1317 = vld [vmem:[#allocation6 + $0x1588] sm:$0xff]
    %v1318 = vld [vmem:[#allocation6 + $0x1590] sm:$0xff]
    %v1319 = vld [vmem:[#allocation6 + $0x1598] sm:$0xff]
    %v1320 = vld [vmem:[#allocation6 + $0x15a0] sm:$0xff]
    %v1321 = vld [vmem:[#allocation6 + $0x15a8] sm:$0xff]
    %v1322 = vld [vmem:[#allocation6 + $0x15b0] sm:$0xff]
    %v1323 = vld [vmem:[#allocation6 + $0x15b8] sm:$0xff]
    %v1324 = vld [vmem:[#allocation6 + $0x15c0] sm:$0xff]
    %v1325 = vld [vmem:[#allocation6 + $0x15c8] sm:$0xff]
    %v1326 = vld [vmem:[#allocation6 + $0x15d0] sm:$0xff]
    %v1327 = vld [vmem:[#allocation6 + $0x15d8] sm:$0xff]
    %v1328 = vld [vmem:[#allocation6 + $0x15e0] sm:$0xff]
    %v1329 = vld [vmem:[#allocation6 + $0x15e8] sm:$0xff]
    %v1330 = vld [vmem:[#allocation6 + $0x15f0] sm:$0xff]
    %v1331 = vld [vmem:[#allocation6 + $0x15f8] sm:$0xff]
    %v1332 = vld [vmem:[#allocation6 + $0x1600] sm:$0xff]
    %v1333 = vld [vmem:[#allocation6 + $0x1608] sm:$0xff]
    %v1334 = vld [vmem:[#allocation6 + $0x1610] sm:$0xff]
    %v1335 = vld [vmem:[#allocation6 + $0x1618] sm:$0xff]
    %v1336 = vld [vmem:[#allocation6 + $0x1620] sm:$0xff]
    %v1337 = vld [vmem:[#allocation6 + $0x1628] sm:$0xff]
    %v1338 = vld [vmem:[#allocation6 + $0x1630] sm:$0xff]
    %v1339 = vld [vmem:[#allocation6 + $0x1638] sm:$0xff]
    %v1340 = vld [vmem:[#allocation6 + $0x1640] sm:$0xff]
    %v1341 = vld [vmem:[#allocation6 + $0x1648] sm:$0xff]
    %v1342 = vld [vmem:[#allocation6 + $0x1650] sm:$0xff]
    %v1343 = vld [vmem:[#allocation6 + $0x1658] sm:$0xff]
    %v1344 = vld [vmem:[#allocation6 + $0x1660] sm:$0xff]
    %v1345 = vld [vmem:[#allocation6 + $0x1668] sm:$0xff]
    %v1346 = vld [vmem:[#allocation6 + $0x1670] sm:$0xff]
    %v1347 = vld [vmem:[#allocation6 + $0x1678] sm:$0xff]
    %v1348 = vld [vmem:[#allocation6 + $0x1680] sm:$0xff]
    %v1349 = vld [vmem:[#allocation6 + $0x1688] sm:$0xff]
    %v1350 = vld [vmem:[#allocation6 + $0x1690] sm:$0xff]
    %v1351 = vld [vmem:[#allocation6 + $0x1698] sm:$0xff]
    %v1352 = vld [vmem:[#allocation6 + $0x16a0] sm:$0xff]
    %v1353 = vld [vmem:[#allocation6 + $0x16a8] sm:$0xff]
    %v1354 = vld [vmem:[#allocation6 + $0x16b0] sm:$0xff]
    %v1355 = vld [vmem:[#allocation6 + $0x16b8] sm:$0xff]
    %v1356 = vld [vmem:[#allocation6 + $0x16c0] sm:$0xff]
    %v1357 = vld [vmem:[#allocation6 + $0x16c8] sm:$0xff]
    %v1358 = vld [vmem:[#allocation6 + $0x16d0] sm:$0xff]
    %v1359 = vld [vmem:[#allocation6 + $0x16d8] sm:$0xff]
    %v1360 = vld [vmem:[#allocation6 + $0x16e0] sm:$0xff]
    %v1361 = vld [vmem:[#allocation6 + $0x16e8] sm:$0xff]
    %v1362 = vld [vmem:[#allocation6 + $0x16f0] sm:$0xff]
    %v1363 = vld [vmem:[#allocation6 + $0x16f8] sm:$0xff]
    %v1364 = vld [vmem:[#allocation6 + $0x1700] sm:$0xff]
    %v1365 = vld [vmem:[#allocation6 + $0x1708] sm:$0xff]
    %v1366 = vld [vmem:[#allocation6 + $0x1710] sm:$0xff]
    %v1367 = vld [vmem:[#allocation6 + $0x1718] sm:$0xff]
    %v1368 = vld [vmem:[#allocation6 + $0x1720] sm:$0xff]
    %v1369 = vld [vmem:[#allocation6 + $0x1728] sm:$0xff]
    %v1370 = vld [vmem:[#allocation6 + $0x1730] sm:$0xff]
    %v1371 = vld [vmem:[#allocation6 + $0x1738] sm:$0xff]
    %v1372 = vld [vmem:[#allocation6 + $0x1740] sm:$0xff]
    %v1373 = vld [vmem:[#allocation6 + $0x1748] sm:$0xff]
    %v1374 = vld [vmem:[#allocation6 + $0x1750] sm:$0xff]
    %v1375 = vld [vmem:[#allocation6 + $0x1758] sm:$0xff]
    %v1376 = vld [vmem:[#allocation6 + $0x1760] sm:$0xff]
    %v1377 = vld [vmem:[#allocation6 + $0x1768] sm:$0xff]
    %v1378 = vld [vmem:[#allocation6 + $0x1770] sm:$0xff]
    %v1379 = vld [vmem:[#allocation6 + $0x1778] sm:$0xff]
    %v1380 = vld [vmem:[#allocation6 + $0x1780] sm:$0xff]
    %v1381 = vld [vmem:[#allocation6 + $0x1788] sm:$0xff]
    %v1382 = vld [vmem:[#allocation6 + $0x1790] sm:$0xff]
    %v1383 = vld [vmem:[#allocation6 + $0x1798] sm:$0xff]
    %v1384 = vld [vmem:[#allocation6 + $0x17a0] sm:$0xff]
    %v1385 = vld [vmem:[#allocation6 + $0x17a8] sm:$0xff]
    %v1386 = vld [vmem:[#allocation6 + $0x17b0] sm:$0xff]
    %v1387 = vld [vmem:[#allocation6 + $0x17b8] sm:$0xff]
    %v1388 = vld [vmem:[#allocation6 + $0x17c0] sm:$0xff]
    %v1389 = vld [vmem:[#allocation6 + $0x17c8] sm:$0xff]
    %v1390 = vld [vmem:[#allocation6 + $0x17d0] sm:$0xff]
    %v1391 = vld [vmem:[#allocation6 + $0x17d8] sm:$0xff]
    %v1392 = vld [vmem:[#allocation6 + $0x17e0] sm:$0xff]
    %v1393 = vld [vmem:[#allocation6 + $0x17e8] sm:$0xff]
    %v1394 = vld [vmem:[#allocation6 + $0x17f0] sm:$0xff]
    %v1395 = vld [vmem:[#allocation6 + $0x17f8] sm:$0xff]
    %v1396 = vld [vmem:[#allocation6 + $0x1800] sm:$0xff]
    %v1397 = vld [vmem:[#allocation6 + $0x1808] sm:$0xff]
    %v1398 = vld [vmem:[#allocation6 + $0x1810] sm:$0xff]
    %v1399 = vld [vmem:[#allocation6 + $0x1818] sm:$0xff]
    %v1400 = vld [vmem:[#allocation6 + $0x1820] sm:$0xff]
    %v1401 = vld [vmem:[#allocation6 + $0x1828] sm:$0xff]
    %v1402 = vld [vmem:[#allocation6 + $0x1830] sm:$0xff]
    %v1403 = vld [vmem:[#allocation6 + $0x1838] sm:$0xff]
    %v1404 = vld [vmem:[#allocation6 + $0x1840] sm:$0xff]
    %v1405 = vld [vmem:[#allocation6 + $0x1848] sm:$0xff]
    %v1406 = vld [vmem:[#allocation6 + $0x1850] sm:$0xff]
    %v1407 = vld [vmem:[#allocation6 + $0x1858] sm:$0xff]
    %v1408 = vld [vmem:[#allocation6 + $0x1860] sm:$0xff]
    %v1409 = vld [vmem:[#allocation6 + $0x1868] sm:$0xff]
    %v1410 = vld [vmem:[#allocation6 + $0x1870] sm:$0xff]
    %v1411 = vld [vmem:[#allocation6 + $0x1878] sm:$0xff]
    %v1412 = vld [vmem:[#allocation6 + $0x1880] sm:$0xff]
    %v1413 = vld [vmem:[#allocation6 + $0x1888] sm:$0xff]
    %v1414 = vld [vmem:[#allocation6 + $0x1890] sm:$0xff]
    %v1415 = vld [vmem:[#allocation6 + $0x1898] sm:$0xff]
    %v1416 = vld [vmem:[#allocation6 + $0x18a0] sm:$0xff]
    %v1417 = vld [vmem:[#allocation6 + $0x18a8] sm:$0xff]
    %v1418 = vld [vmem:[#allocation6 + $0x18b0] sm:$0xff]
    %v1419 = vld [vmem:[#allocation6 + $0x18b8] sm:$0xff]
    %v1420 = vld [vmem:[#allocation6 + $0x18c0] sm:$0xff]
    %v1421 = vld [vmem:[#allocation6 + $0x18c8] sm:$0xff]
    %v1422 = vld [vmem:[#allocation6 + $0x18d0] sm:$0xff]
    %v1423 = vld [vmem:[#allocation6 + $0x18d8] sm:$0xff]
    %v1424 = vld [vmem:[#allocation6 + $0x18e0] sm:$0xff]
    %v1425 = vld [vmem:[#allocation6 + $0x18e8] sm:$0xff]
    %v1426 = vld [vmem:[#allocation6 + $0x18f0] sm:$0xff]
    %v1427 = vld [vmem:[#allocation6 + $0x18f8] sm:$0xff]
    %v1428 = vld [vmem:[#allocation6 + $0x1900] sm:$0xff]
    %v1429 = vld [vmem:[#allocation6 + $0x1908] sm:$0xff]
    %v1430 = vld [vmem:[#allocation6 + $0x1910] sm:$0xff]
    %v1431 = vld [vmem:[#allocation6 + $0x1918] sm:$0xff]
    %v1432 = vld [vmem:[#allocation6 + $0x1920] sm:$0xff]
    %v1433 = vld [vmem:[#allocation6 + $0x1928] sm:$0xff]
    %v1434 = vld [vmem:[#allocation6 + $0x1930] sm:$0xff]
    %v1435 = vld [vmem:[#allocation6 + $0x1938] sm:$0xff]
    %v1436 = vld [vmem:[#allocation6 + $0x1940] sm:$0xff]
    %v1437 = vld [vmem:[#allocation6 + $0x1948] sm:$0xff]
    %v1438 = vld [vmem:[#allocation6 + $0x1950] sm:$0xff]
    %v1439 = vld [vmem:[#allocation6 + $0x1958] sm:$0xff]
    %v1440 = vld [vmem:[#allocation6 + $0x1960] sm:$0xff]
    %v1441 = vld [vmem:[#allocation6 + $0x1968] sm:$0xff]
    %v1442 = vld [vmem:[#allocation6 + $0x1970] sm:$0xff]
    %v1443 = vld [vmem:[#allocation6 + $0x1978] sm:$0xff]
    %v1444 = vld [vmem:[#allocation6 + $0x1980] sm:$0xff]
    %v1445 = vld [vmem:[#allocation6 + $0x1988] sm:$0xff]
    %v1446 = vld [vmem:[#allocation6 + $0x1990] sm:$0xff]
    %v1447 = vld [vmem:[#allocation6 + $0x1998] sm:$0xff]
    %v1448 = vld [vmem:[#allocation6 + $0x19a0] sm:$0xff]
    %v1449 = vld [vmem:[#allocation6 + $0x19a8] sm:$0xff]
    %v1450 = vld [vmem:[#allocation6 + $0x19b0] sm:$0xff]
    %v1451 = vld [vmem:[#allocation6 + $0x19b8] sm:$0xff]
    %v1452 = vld [vmem:[#allocation6 + $0x19c0] sm:$0xff]
    %v1453 = vld [vmem:[#allocation6 + $0x19c8] sm:$0xff]
    %v1454 = vld [vmem:[#allocation6 + $0x19d0] sm:$0xff]
    %v1455 = vld [vmem:[#allocation6 + $0x19d8] sm:$0xff]
    %v1456 = vld [vmem:[#allocation6 + $0x19e0] sm:$0xff]
    %v1457 = vld [vmem:[#allocation6 + $0x19e8] sm:$0xff]
    %v1458 = vld [vmem:[#allocation6 + $0x19f0] sm:$0xff]
    %v1459 = vld [vmem:[#allocation6 + $0x19f8] sm:$0xff]
    %v1460 = vld [vmem:[#allocation6 + $0x1a00] sm:$0xff]
    %v1461 = vld [vmem:[#allocation6 + $0x1a08] sm:$0xff]
    %v1462 = vld [vmem:[#allocation6 + $0x1a10] sm:$0xff]
    %v1463 = vld [vmem:[#allocation6 + $0x1a18] sm:$0xff]
    %v1464 = vld [vmem:[#allocation6 + $0x1a20] sm:$0xff]
    %v1465 = vld [vmem:[#allocation6 + $0x1a28] sm:$0xff]
    %v1466 = vld [vmem:[#allocation6 + $0x1a30] sm:$0xff]
    %v1467 = vld [vmem:[#allocation6 + $0x1a38] sm:$0xff]
    %v1468 = vld [vmem:[#allocation6 + $0x1a40] sm:$0xff]
    %v1469 = vld [vmem:[#allocation6 + $0x1a48] sm:$0xff]
    %v1470 = vld [vmem:[#allocation6 + $0x1a50] sm:$0xff]
    %v1471 = vld [vmem:[#allocation6 + $0x1a58] sm:$0xff]
    %v1472 = vld [vmem:[#allocation6 + $0x1a60] sm:$0xff]
    %v1473 = vld [vmem:[#allocation6 + $0x1a68] sm:$0xff]
    %v1474 = vld [vmem:[#allocation6 + $0x1a70] sm:$0xff]
    %v1475 = vld [vmem:[#allocation6 + $0x1a78] sm:$0xff]
    %v1476 = vld [vmem:[#allocation6 + $0x1a80] sm:$0xff]
    %v1477 = vld [vmem:[#allocation6 + $0x1a88] sm:$0xff]
    %v1478 = vld [vmem:[#allocation6 + $0x1a90] sm:$0xff]
    %v1479 = vld [vmem:[#allocation6 + $0x1a98] sm:$0xff]
    %v1480 = vld [vmem:[#allocation6 + $0x1aa0] sm:$0xff]
    %v1481 = vld [vmem:[#allocation6 + $0x1aa8] sm:$0xff]
    %v1482 = vld [vmem:[#allocation6 + $0x1ab0] sm:$0xff]
    %v1483 = vld [vmem:[#allocation6 + $0x1ab8] sm:$0xff]
    %v1484 = vld [vmem:[#allocation6 + $0x1ac0] sm:$0xff]
    %v1485 = vld [vmem:[#allocation6 + $0x1ac8] sm:$0xff]
    %v1486 = vld [vmem:[#allocation6 + $0x1ad0] sm:$0xff]
    %v1487 = vld [vmem:[#allocation6 + $0x1ad8] sm:$0xff]
    %v1488 = vld [vmem:[#allocation6 + $0x1ae0] sm:$0xff]
    %v1489 = vld [vmem:[#allocation6 + $0x1ae8] sm:$0xff]
    %v1490 = vld [vmem:[#allocation6 + $0x1af0] sm:$0xff]
    %v1491 = vld [vmem:[#allocation6 + $0x1af8] sm:$0xff]
    %v1492 = vld [vmem:[#allocation6 + $0x1b00] sm:$0xff]
    %v1493 = vld [vmem:[#allocation6 + $0x1b08] sm:$0xff]
    %v1494 = vld [vmem:[#allocation6 + $0x1b10] sm:$0xff]
    %v1495 = vld [vmem:[#allocation6 + $0x1b18] sm:$0xff]
    %v1496 = vld [vmem:[#allocation6 + $0x1b20] sm:$0xff]
    %v1497 = vld [vmem:[#allocation6 + $0x1b28] sm:$0xff]
    %v1498 = vld [vmem:[#allocation6 + $0x1b30] sm:$0xff]
    %v1499 = vld [vmem:[#allocation6 + $0x1b38] sm:$0xff]
    %v1500 = vld [vmem:[#allocation6 + $0x1b40] sm:$0xff]
    %v1501 = vld [vmem:[#allocation6 + $0x1b48] sm:$0xff]
    %v1502 = vld [vmem:[#allocation6 + $0x1b50] sm:$0xff]
    %v1503 = vld [vmem:[#allocation6 + $0x1b58] sm:$0xff]
    %v1504 = vld [vmem:[#allocation6 + $0x1b60] sm:$0xff]
    %v1505 = vld [vmem:[#allocation6 + $0x1b68] sm:$0xff]
    %v1506 = vld [vmem:[#allocation6 + $0x1b70] sm:$0xff]
    %v1507 = vld [vmem:[#allocation6 + $0x1b78] sm:$0xff]
    %v1508 = vld [vmem:[#allocation6 + $0x1b80] sm:$0xff]
    %v1509 = vld [vmem:[#allocation6 + $0x1b88] sm:$0xff]
    %v1510 = vld [vmem:[#allocation6 + $0x1b90] sm:$0xff]
    %v1511 = vld [vmem:[#allocation6 + $0x1b98] sm:$0xff]
    %v1512 = vld [vmem:[#allocation6 + $0x1ba0] sm:$0xff]
    %v1513 = vld [vmem:[#allocation6 + $0x1ba8] sm:$0xff]
    %v1514 = vld [vmem:[#allocation6 + $0x1bb0] sm:$0xff]
    %v1515 = vld [vmem:[#allocation6 + $0x1bb8] sm:$0xff]
    %v1516 = vld [vmem:[#allocation6 + $0x1bc0] sm:$0xff]
    %v1517 = vld [vmem:[#allocation6 + $0x1bc8] sm:$0xff]
    %v1518 = vld [vmem:[#allocation6 + $0x1bd0] sm:$0xff]
    %v1519 = vld [vmem:[#allocation6 + $0x1bd8] sm:$0xff]
    %v1520 = vld [vmem:[#allocation6 + $0x1be0] sm:$0xff]
    %v1521 = vld [vmem:[#allocation6 + $0x1be8] sm:$0xff]
    %v1522 = vld [vmem:[#allocation6 + $0x1bf0] sm:$0xff]
    %v1523 = vld [vmem:[#allocation6 + $0x1bf8] sm:$0xff]
    %v1524 = vld [vmem:[#allocation6 + $0x1c00] sm:$0xff]
    %v1525 = vld [vmem:[#allocation6 + $0x1c08] sm:$0xff]
    %v1526 = vld [vmem:[#allocation6 + $0x1c10] sm:$0xff]
    %v1527 = vld [vmem:[#allocation6 + $0x1c18] sm:$0xff]
    %v1528 = vld [vmem:[#allocation6 + $0x1c20] sm:$0xff]
    %v1529 = vld [vmem:[#allocation6 + $0x1c28] sm:$0xff]
    %v1530 = vld [vmem:[#allocation6 + $0x1c30] sm:$0xff]
    %v1531 = vld [vmem:[#allocation6 + $0x1c38] sm:$0xff]
    %v1532 = vld [vmem:[#allocation6 + $0x1c40] sm:$0xff]
    %v1533 = vld [vmem:[#allocation6 + $0x1c48] sm:$0xff]
    %v1534 = vld [vmem:[#allocation6 + $0x1c50] sm:$0xff]
    %v1535 = vld [vmem:[#allocation6 + $0x1c58] sm:$0xff]
    %v1536 = vld [vmem:[#allocation6 + $0x1c60] sm:$0xff]
    %v1537 = vld [vmem:[#allocation6 + $0x1c68] sm:$0xff]
    %v1538 = vld [vmem:[#allocation6 + $0x1c70] sm:$0xff]
    %v1539 = vld [vmem:[#allocation6 + $0x1c78] sm:$0xff]
    %v1540 = vld [vmem:[#allocation6 + $0x1c80] sm:$0xff]
    %v1541 = vld [vmem:[#allocation6 + $0x1c88] sm:$0xff]
    %v1542 = vld [vmem:[#allocation6 + $0x1c90] sm:$0xff]
    %v1543 = vld [vmem:[#allocation6 + $0x1c98] sm:$0xff]
    %v1544 = vld [vmem:[#allocation6 + $0x1ca0] sm:$0xff]
    %v1545 = vld [vmem:[#allocation6 + $0x1ca8] sm:$0xff]
    %v1546 = vld [vmem:[#allocation6 + $0x1cb0] sm:$0xff]
    %v1547 = vld [vmem:[#allocation6 + $0x1cb8] sm:$0xff]
    %v1548 = vld [vmem:[#allocation6 + $0x1cc0] sm:$0xff]
    %v1549 = vld [vmem:[#allocation6 + $0x1cc8] sm:$0xff]
    %v1550 = vld [vmem:[#allocation6 + $0x1cd0] sm:$0xff]
    %v1551 = vld [vmem:[#allocation6 + $0x1cd8] sm:$0xff]
    %v1552 = vld [vmem:[#allocation6 + $0x1ce0] sm:$0xff]
    %v1553 = vld [vmem:[#allocation6 + $0x1ce8] sm:$0xff]
    %v1554 = vld [vmem:[#allocation6 + $0x1cf0] sm:$0xff]
    %v1555 = vld [vmem:[#allocation6 + $0x1cf8] sm:$0xff]
    %v1556 = vld [vmem:[#allocation6 + $0x1d00] sm:$0xff]
    %v1557 = vld [vmem:[#allocation6 + $0x1d08] sm:$0xff]
    %v1558 = vld [vmem:[#allocation6 + $0x1d10] sm:$0xff]
    %v1559 = vld [vmem:[#allocation6 + $0x1d18] sm:$0xff]
    %v1560 = vld [vmem:[#allocation6 + $0x1d20] sm:$0xff]
    %v1561 = vld [vmem:[#allocation6 + $0x1d28] sm:$0xff]
    %v1562 = vld [vmem:[#allocation6 + $0x1d30] sm:$0xff]
    %v1563 = vld [vmem:[#allocation6 + $0x1d38] sm:$0xff]
    %v1564 = vld [vmem:[#allocation6 + $0x1d40] sm:$0xff]
    %v1565 = vld [vmem:[#allocation6 + $0x1d48] sm:$0xff]
    %v1566 = vld [vmem:[#allocation6 + $0x1d50] sm:$0xff]
    %v1567 = vld [vmem:[#allocation6 + $0x1d58] sm:$0xff]
    %v1568 = vld [vmem:[#allocation6 + $0x1d60] sm:$0xff]
    %v1569 = vld [vmem:[#allocation6 + $0x1d68] sm:$0xff]
    %v1570 = vld [vmem:[#allocation6 + $0x1d70] sm:$0xff]
    %v1571 = vld [vmem:[#allocation6 + $0x1d78] sm:$0xff]
    %v1572 = vld [vmem:[#allocation6 + $0x1d80] sm:$0xff]
    %v1573 = vld [vmem:[#allocation6 + $0x1d88] sm:$0xff]
    %v1574 = vld [vmem:[#allocation6 + $0x1d90] sm:$0xff]
    %v1575 = vld [vmem:[#allocation6 + $0x1d98] sm:$0xff]
    %v1576 = vld [vmem:[#allocation6 + $0x1da0] sm:$0xff]
    %v1577 = vld [vmem:[#allocation6 + $0x1da8] sm:$0xff]
    %v1578 = vld [vmem:[#allocation6 + $0x1db0] sm:$0xff]
    %v1579 = vld [vmem:[#allocation6 + $0x1db8] sm:$0xff]
    %v1580 = vld [vmem:[#allocation6 + $0x1dc0] sm:$0xff]
    %v1581 = vld [vmem:[#allocation6 + $0x1dc8] sm:$0xff]
    %v1582 = vld [vmem:[#allocation6 + $0x1dd0] sm:$0xff]
    %v1583 = vld [vmem:[#allocation6 + $0x1dd8] sm:$0xff]
    %v1584 = vld [vmem:[#allocation6 + $0x1de0] sm:$0xff]
    %v1585 = vld [vmem:[#allocation6 + $0x1de8] sm:$0xff]
    %v1586 = vld [vmem:[#allocation6 + $0x1df0] sm:$0xff]
    %v1587 = vld [vmem:[#allocation6 + $0x1df8] sm:$0xff]
    %v1588 = vld [vmem:[#allocation6 + $0x1e00] sm:$0xff]
    %v1589 = vld [vmem:[#allocation6 + $0x1e08] sm:$0xff]
    %v1590 = vld [vmem:[#allocation6 + $0x1e10] sm:$0xff]
    %v1591 = vld [vmem:[#allocation6 + $0x1e18] sm:$0xff]
    %v1592 = vld [vmem:[#allocation6 + $0x1e20] sm:$0xff]
    %v1593 = vld [vmem:[#allocation6 + $0x1e28] sm:$0xff]
    %v1594 = vld [vmem:[#allocation6 + $0x1e30] sm:$0xff]
    %v1595 = vld [vmem:[#allocation6 + $0x1e38] sm:$0xff]
    %v1596 = vld [vmem:[#allocation6 + $0x1e40] sm:$0xff]
    %v1597 = vld [vmem:[#allocation6 + $0x1e48] sm:$0xff]
    %v1598 = vld [vmem:[#allocation6 + $0x1e50] sm:$0xff]
    %v1599 = vld [vmem:[#allocation6 + $0x1e58] sm:$0xff]
    %v1600 = vld [vmem:[#allocation6 + $0x1e60] sm:$0xff]
    %v1601 = vld [vmem:[#allocation6 + $0x1e68] sm:$0xff]
    %v1602 = vld [vmem:[#allocation6 + $0x1e70] sm:$0xff]
    %v1603 = vld [vmem:[#allocation6 + $0x1e78] sm:$0xff]
    %v1604 = vld [vmem:[#allocation6 + $0x1e80] sm:$0xff]
    %v1605 = vld [vmem:[#allocation6 + $0x1e88] sm:$0xff]
    %v1606 = vld [vmem:[#allocation6 + $0x1e90] sm:$0xff]
    %v1607 = vld [vmem:[#allocation6 + $0x1e98] sm:$0xff]
    %v1608 = vld [vmem:[#allocation6 + $0x1ea0] sm:$0xff]
    %v1609 = vld [vmem:[#allocation6 + $0x1ea8] sm:$0xff]
    %v1610 = vld [vmem:[#allocation6 + $0x1eb0] sm:$0xff]
    %v1611 = vld [vmem:[#allocation6 + $0x1eb8] sm:$0xff]
    %v1612 = vld [vmem:[#allocation6 + $0x1ec0] sm:$0xff]
    %v1613 = vld [vmem:[#allocation6 + $0x1ec8] sm:$0xff]
    %v1614 = vld [vmem:[#allocation6 + $0x1ed0] sm:$0xff]
    %v1615 = vld [vmem:[#allocation6 + $0x1ed8] sm:$0xff]
    %v1616 = vld [vmem:[#allocation6 + $0x1ee0] sm:$0xff]
    %v1617 = vld [vmem:[#allocation6 + $0x1ee8] sm:$0xff]
    %v1618 = vld [vmem:[#allocation6 + $0x1ef0] sm:$0xff]
    %v1619 = vld [vmem:[#allocation6 + $0x1ef8] sm:$0xff]
    %v1620 = vld [vmem:[#allocation6 + $0x1f00] sm:$0xff]
    %v1621 = vld [vmem:[#allocation6 + $0x1f08] sm:$0xff]
    %v1622 = vld [vmem:[#allocation6 + $0x1f10] sm:$0xff]
    %v1623 = vld [vmem:[#allocation6 + $0x1f18] sm:$0xff]
    %v1624 = vld [vmem:[#allocation6 + $0x1f20] sm:$0xff]
    %v1625 = vld [vmem:[#allocation6 + $0x1f28] sm:$0xff]
    %v1626 = vld [vmem:[#allocation6 + $0x1f30] sm:$0xff]
    %v1627 = vld [vmem:[#allocation6 + $0x1f38] sm:$0xff]
    %v1628 = vld [vmem:[#allocation6 + $0x1f40] sm:$0xff]
    %v1629 = vld [vmem:[#allocation6 + $0x1f48] sm:$0xff]
    %v1630 = vld [vmem:[#allocation6 + $0x1f50] sm:$0xff]
    %v1631 = vld [vmem:[#allocation6 + $0x1f58] sm:$0xff]
    %v1632 = vld [vmem:[#allocation6 + $0x1f60] sm:$0xff]
    %v1633 = vld [vmem:[#allocation6 + $0x1f68] sm:$0xff]
    %v1634 = vld [vmem:[#allocation6 + $0x1f70] sm:$0xff]
    %v1635 = vld [vmem:[#allocation6 + $0x1f78] sm:$0xff]
    %v1636 = vld [vmem:[#allocation6 + $0x1f80] sm:$0xff]
    %v1637 = vld [vmem:[#allocation6 + $0x1f88] sm:$0xff]
    %v1638 = vld [vmem:[#allocation6 + $0x1f90] sm:$0xff]
    %v1639 = vld [vmem:[#allocation6 + $0x1f98] sm:$0xff]
    %v1640 = vld [vmem:[#allocation6 + $0x1fa0] sm:$0xff]
    %v1641 = vld [vmem:[#allocation6 + $0x1fa8] sm:$0xff]
    %v1642 = vld [vmem:[#allocation6 + $0x1fb0] sm:$0xff]
    %v1643 = vld [vmem:[#allocation6 + $0x1fb8] sm:$0xff]
    %v1644 = vld [vmem:[#allocation6 + $0x1fc0] sm:$0xff]
    %v1645 = vld [vmem:[#allocation6 + $0x1fc8] sm:$0xff]
    %v1646 = vld [vmem:[#allocation6 + $0x1fd0] sm:$0xff]
    %v1647 = vld [vmem:[#allocation6 + $0x1fd8] sm:$0xff]
    %v1648 = vld [vmem:[#allocation6 + $0x1fe0] sm:$0xff]
    %v1649 = vld [vmem:[#allocation6 + $0x1fe8] sm:$0xff]
    %v1650 = vld [vmem:[#allocation6 + $0x1ff0] sm:$0xff]
    %v1651 = vld [vmem:[#allocation6 + $0x1ff8] sm:$0xff]
    %v1652 = vld [vmem:[#allocation7] sm:$0xff]
    %v1654 = vlaneseq
    %v1655 = vshrl.u32 %v1654, 7
    %v1656 = vsub.s32 0, %v1655
    %v1657 = vrot.slane %v1652, %v1656
    %v1658 = vlaneseq
    %v1659 = vshrl.u32 %v1658, 7
    %v1660 = vsub.s32 1, %v1659
    %v1661 = vrot.slane %v1652, %v1660
    %v1662 = vlaneseq
    %v1663 = vshrl.u32 %v1662, 7
    %v1664 = vsub.s32 2, %v1663
    %v1665 = vrot.slane %v1652, %v1664
    %v1666 = vlaneseq
    %v1667 = vshrl.u32 %v1666, 7
    %v1668 = vsub.s32 3, %v1667
    %v1669 = vrot.slane %v1652, %v1668
    %v1670 = vlaneseq
    %v1671 = vshrl.u32 %v1670, 7
    %v1672 = vsub.s32 4, %v1671
    %v1673 = vrot.slane %v1652, %v1672
    %v1674 = vlaneseq
    %v1675 = vshrl.u32 %v1674, 7
    %v1676 = vsub.s32 5, %v1675
    %v1677 = vrot.slane %v1652, %v1676
    %v1678 = vlaneseq
    %v1679 = vshrl.u32 %v1678, 7
    %v1680 = vsub.s32 6, %v1679
    %v1681 = vrot.slane %v1652, %v1680
    %v1682 = vlaneseq
    %v1683 = vshrl.u32 %v1682, 7
    %v1684 = vsub.s32 7, %v1683
    %v1685 = vrot.slane %v1652, %v1684
    %1694 = vmatprep.subr.mxu0 %v629
    %1695 = vmatpush1.msra.mxu0 %v628
    %1696 = vmatprep.subr.mxu0 %v637
    %1697 = vmatpush1.msra.mxu0 %v636
    %1698 = vmatprep.subr.mxu0 %v645
    %1699 = vmatpush1.msra.mxu0 %v644
    %1700 = vmatprep.subr.mxu0 %v653
    %1701 = vmatpush1.msra.mxu0 %v652
    %1702 = vmatprep.subr.mxu0 %v661
    %1703 = vmatpush1.msra.mxu0 %v660
    %1704 = vmatprep.subr.mxu0 %v669
    %1705 = vmatpush1.msra.mxu0 %v668
    %1706 = vmatprep.subr.mxu0 %v677
    %1707 = vmatpush1.msra.mxu0 %v676
    %1708 = vmatprep.subr.mxu0 %v685
    %1709 = vmatpush1.msra.mxu0 %v684
    %1710 = vmatprep.subr.mxu0 %v693
    %1711 = vmatpush1.msra.mxu0 %v692
    %1712 = vmatprep.subr.mxu0 %v701
    %1713 = vmatpush1.msra.mxu0 %v700
    %1714 = vmatprep.subr.mxu0 %v709
    %1715 = vmatpush1.msra.mxu0 %v708
    %1716 = vmatprep.subr.mxu0 %v717
    %1717 = vmatpush1.msra.mxu0 %v716
    %1718 = vmatprep.subr.mxu0 %v725
    %1719 = vmatpush1.msra.mxu0 %v724
    %1720 = vmatprep.subr.mxu0 %v733
    %1721 = vmatpush1.msra.mxu0 %v732
    %1722 = vmatprep.subr.mxu0 %v741
    %1723 = vmatpush1.msra.mxu0 %v740
    %1724 = vmatprep.subr.mxu0 %v749
    %1725 = vmatpush1.msra.mxu0 %v748
    %1726 = vmatprep.subr.mxu0 %v757
    %1727 = vmatpush1.msra.mxu0 %v756
    %1728 = vmatprep.subr.mxu0 %v765
    %1729 = vmatpush1.msra.mxu0 %v764
    %1730 = vmatprep.subr.mxu0 %v773
    %1731 = vmatpush1.msra.mxu0 %v772
    %1732 = vmatprep.subr.mxu0 %v781
    %1733 = vmatpush1.msra.mxu0 %v780
    %1734 = vmatprep.subr.mxu0 %v789
    %1735 = vmatpush1.msra.mxu0 %v788
    %1736 = vmatprep.subr.mxu0 %v797
    %1737 = vmatpush1.msra.mxu0 %v796
    %1738 = vmatprep.subr.mxu0 %v805
    %1739 = vmatpush1.msra.mxu0 %v804
    %1740 = vmatprep.subr.mxu0 %v813
    %1741 = vmatpush1.msra.mxu0 %v812
    %1742 = vmatprep.subr.mxu0 %v821
    %1743 = vmatpush1.msra.mxu0 %v820
    %1744 = vmatprep.subr.mxu0 %v829
    %1745 = vmatpush1.msra.mxu0 %v828
    %1746 = vmatprep.subr.mxu0 %v837
    %1747 = vmatpush1.msra.mxu0 %v836
    %1748 = vmatprep.subr.mxu0 %v845
    %1749 = vmatpush1.msra.mxu0 %v844
    %1750 = vmatprep.subr.mxu0 %v853
    %1751 = vmatpush1.msra.mxu0 %v852
    %1752 = vmatprep.subr.mxu0 %v861
    %1753 = vmatpush1.msra.mxu0 %v860
    %1754 = vmatprep.subr.mxu0 %v869
    %1755 = vmatpush1.msra.mxu0 %v868
    %1756 = vmatprep.subr.mxu0 %v877
    %1757 = vmatpush1.msra.mxu0 %v876
    %1758 = vmatprep.mubr.f32.mxu0 %v621
    %1759 = vmatmul.mubr.f32.gmra.mrb[0].mxu0 %v620
    %v1760 = vpop.f32.mrb[0].mxu0
    %v1761 = vadd.f32 %v1657, %v1760
    %v1762 = vpop.f32.mrb[0].mxu0
    %v1763 = vadd.f32 %v1661, %v1762
    %1764 = vdwg.mxu0
    %1765 = vmatprep.subr.mxu0 %v885
    %1766 = vmatpush1.msra.mxu0 %v884
    %1767 = vmatprep.subr.mxu0 %v893
    %1768 = vmatpush1.msra.mxu0 %v892
    %1769 = vmatprep.subr.mxu0 %v901
    %1770 = vmatpush1.msra.mxu0 %v900
    %1771 = vmatprep.subr.mxu0 %v909
    %1772 = vmatpush1.msra.mxu0 %v908
    %1773 = vmatprep.subr.mxu0 %v917
    %1774 = vmatpush1.msra.mxu0 %v916
    %1775 = vmatprep.subr.mxu0 %v925
    %1776 = vmatpush1.msra.mxu0 %v924
    %1777 = vmatprep.subr.mxu0 %v933
    %1778 = vmatpush1.msra.mxu0 %v932
    %1779 = vmatprep.subr.mxu0 %v941
    %1780 = vmatpush1.msra.mxu0 %v940
    %1781 = vmatprep.subr.mxu0 %v949
    %1782 = vmatpush1.msra.mxu0 %v948
    %1783 = vmatprep.subr.mxu0 %v957
    %1784 = vmatpush1.msra.mxu0 %v956
    %1785 = vmatprep.subr.mxu0 %v965
    %1786 = vmatpush1.msra.mxu0 %v964
    %1787 = vmatprep.subr.mxu0 %v973
    %1788 = vmatpush1.msra.mxu0 %v972
    %1789 = vmatprep.subr.mxu0 %v981
    %1790 = vmatpush1.msra.mxu0 %v980
    %1791 = vmatprep.subr.mxu0 %v989
    %1792 = vmatpush1.msra.mxu0 %v988
    %1793 = vmatprep.subr.mxu0 %v997
    %1794 = vmatpush1.msra.mxu0 %v996
    %1795 = vmatprep.subr.mxu0 %v1005
    %1796 = vmatpush1.msra.mxu0 %v1004
    %1797 = vmatprep.subr.mxu0 %v1013
    %1798 = vmatpush1.msra.mxu0 %v1012
    %1799 = vmatprep.subr.mxu0 %v1021
    %1800 = vmatpush1.msra.mxu0 %v1020
    %1801 = vmatprep.subr.mxu0 %v1029
    %1802 = vmatpush1.msra.mxu0 %v1028
    %1803 = vmatprep.subr.mxu0 %v1037
    %1804 = vmatpush1.msra.mxu0 %v1036
    %1805 = vmatprep.subr.mxu0 %v1045
    %1806 = vmatpush1.msra.mxu0 %v1044
    %1807 = vmatprep.subr.mxu0 %v1053
    %1808 = vmatpush1.msra.mxu0 %v1052
    %1809 = vmatprep.subr.mxu0 %v1061
    %1810 = vmatpush1.msra.mxu0 %v1060
    %1811 = vmatprep.subr.mxu0 %v1069
    %1812 = vmatpush1.msra.mxu0 %v1068
    %1813 = vmatprep.subr.mxu0 %v1077
    %1814 = vmatpush1.msra.mxu0 %v1076
    %1815 = vmatprep.subr.mxu0 %v1085
    %1816 = vmatpush1.msra.mxu0 %v1084
    %1817 = vmatprep.subr.mxu0 %v1093
    %1818 = vmatpush1.msra.mxu0 %v1092
    %1819 = vmatprep.subr.mxu0 %v1101
    %1820 = vmatpush1.msra.mxu0 %v1100
    %1821 = vmatprep.subr.mxu0 %v1109
    %1822 = vmatpush1.msra.mxu0 %v1108
    %1823 = vmatprep.subr.mxu0 %v1117
    %1824 = vmatpush1.msra.mxu0 %v1116
    %1825 = vmatprep.subr.mxu0 %v1125
    %1826 = vmatpush1.msra.mxu0 %v1124
    %1827 = vmatprep.subr.mxu0 %v1133
    %1828 = vmatpush1.msra.mxu0 %v1132
    %1829 = vmatprep.mubr.f32.mxu0 %v623
    %1830 = vmatmul.mubr.f32.gmra.mrb[0].mxu0 %v622
    %v1831 = vpop.f32.mrb[0].mxu0
    %v1832 = vadd.f32 %v1761, %v1831
    %v1833 = vpop.f32.mrb[0].mxu0
    %v1834 = vadd.f32 %v1763, %v1833
    %1835 = vdwg.mxu0
    %1836 = vmatprep.subr.mxu0 %v1141
    %1837 = vmatpush1.msra.mxu0 %v1140
    %1838 = vmatprep.subr.mxu0 %v1149
    %1839 = vmatpush1.msra.mxu0 %v1148
    %1840 = vmatprep.subr.mxu0 %v1157
    %1841 = vmatpush1.msra.mxu0 %v1156
    %1842 = vmatprep.subr.mxu0 %v1165
    %1843 = vmatpush1.msra.mxu0 %v1164
    %1844 = vmatprep.subr.mxu0 %v1173
    %1845 = vmatpush1.msra.mxu0 %v1172
    %1846 = vmatprep.subr.mxu0 %v1181
    %1847 = vmatpush1.msra.mxu0 %v1180
    %1848 = vmatprep.subr.mxu0 %v1189
    %1849 = vmatpush1.msra.mxu0 %v1188
    %1850 = vmatprep.subr.mxu0 %v1197
    %1851 = vmatpush1.msra.mxu0 %v1196
    %1852 = vmatprep.subr.mxu0 %v1205
    %1853 = vmatpush1.msra.mxu0 %v1204
    %1854 = vmatprep.subr.mxu0 %v1213
    %1855 = vmatpush1.msra.mxu0 %v1212
    %1856 = vmatprep.subr.mxu0 %v1221
    %1857 = vmatpush1.msra.mxu0 %v1220
    %1858 = vmatprep.subr.mxu0 %v1229
    %1859 = vmatpush1.msra.mxu0 %v1228
    %1860 = vmatprep.subr.mxu0 %v1237
    %1861 = vmatpush1.msra.mxu0 %v1236
    %1862 = vmatprep.subr.mxu0 %v1245
    %1863 = vmatpush1.msra.mxu0 %v1244
    %1864 = vmatprep.subr.mxu0 %v1253
    %1865 = vmatpush1.msra.mxu0 %v1252
    %1866 = vmatprep.subr.mxu0 %v1261
    %1867 = vmatpush1.msra.mxu0 %v1260
    %1868 = vmatprep.subr.mxu0 %v1269
    %1869 = vmatpush1.msra.mxu0 %v1268
    %1870 = vmatprep.subr.mxu0 %v1277
    %1871 = vmatpush1.msra.mxu0 %v1276
    %1872 = vmatprep.subr.mxu0 %v1285
    %1873 = vmatpush1.msra.mxu0 %v1284
    %1874 = vmatprep.subr.mxu0 %v1293
    %1875 = vmatpush1.msra.mxu0 %v1292
    %1876 = vmatprep.subr.mxu0 %v1301
    %1877 = vmatpush1.msra.mxu0 %v1300
    %1878 = vmatprep.subr.mxu0 %v1309
    %1879 = vmatpush1.msra.mxu0 %v1308
    %1880 = vmatprep.subr.mxu0 %v1317
    %1881 = vmatpush1.msra.mxu0 %v1316
    %1882 = vmatprep.subr.mxu0 %v1325
    %1883 = vmatpush1.msra.mxu0 %v1324
    %1884 = vmatprep.subr.mxu0 %v1333
    %1885 = vmatpush1.msra.mxu0 %v1332
    %1886 = vmatprep.subr.mxu0 %v1341
    %1887 = vmatpush1.msra.mxu0 %v1340
    %1888 = vmatprep.subr.mxu0 %v1349
    %1889 = vmatpush1.msra.mxu0 %v1348
    %1890 = vmatprep.subr.mxu0 %v1357
    %1891 = vmatpush1.msra.mxu0 %v1356
    %1892 = vmatprep.subr.mxu0 %v1365
    %1893 = vmatpush1.msra.mxu0 %v1364
    %1894 = vmatprep.subr.mxu0 %v1373
    %1895 = vmatpush1.msra.mxu0 %v1372
    %1896 = vmatprep.subr.mxu0 %v1381
    %1897 = vmatpush1.msra.mxu0 %v1380
    %1898 = vmatprep.subr.mxu0 %v1389
    %1899 = vmatpush1.msra.mxu0 %v1388
    %1900 = vmatprep.mubr.f32.mxu0 %v625
    %1901 = vmatmul.mubr.f32.gmra.mrb[0].mxu0 %v624
    %v1902 = vpop.f32.mrb[0].mxu0
    %v1903 = vadd.f32 %v1832, %v1902
    %v1904 = vpop.f32.mrb[0].mxu0
    %v1905 = vadd.f32 %v1834, %v1904
    %1906 = vdwg.mxu0
    %1907 = vmatprep.subr.mxu0 %v1397
    %1908 = vmatpush1.msra.mxu0 %v1396
    %1909 = vmatprep.subr.mxu0 %v1405
    %1910 = vmatpush1.msra.mxu0 %v1404
    %1911 = vmatprep.subr.mxu0 %v1413
    %1912 = vmatpush1.msra.mxu0 %v1412
    %1913 = vmatprep.subr.mxu0 %v1421
    %1914 = vmatpush1.msra.mxu0 %v1420
    %1915 = vmatprep.subr.mxu0 %v1429
    %1916 = vmatpush1.msra.mxu0 %v1428
    %1917 = vmatprep.subr.mxu0 %v1437
    %1918 = vmatpush1.msra.mxu0 %v1436
    %1919 = vmatprep.subr.mxu0 %v1445
    %1920 = vmatpush1.msra.mxu0 %v1444
    %1921 = vmatprep.subr.mxu0 %v1453
    %1922 = vmatpush1.msra.mxu0 %v1452
    %1923 = vmatprep.subr.mxu0 %v1461
    %1924 = vmatpush1.msra.mxu0 %v1460
    %1925 = vmatprep.subr.mxu0 %v1469
    %1926 = vmatpush1.msra.mxu0 %v1468
    %1927 = vmatprep.subr.mxu0 %v1477
    %1928 = vmatpush1.msra.mxu0 %v1476
    %1929 = vmatprep.subr.mxu0 %v1485
    %1930 = vmatpush1.msra.mxu0 %v1484
    %1931 = vmatprep.subr.mxu0 %v1493
    %1932 = vmatpush1.msra.mxu0 %v1492
    %1933 = vmatprep.subr.mxu0 %v1501
    %1934 = vmatpush1.msra.mxu0 %v1500
    %1935 = vmatprep.subr.mxu0 %v1509
    %1936 = vmatpush1.msra.mxu0 %v1508
    %1937 = vmatprep.subr.mxu0 %v1517
    %1938 = vmatpush1.msra.mxu0 %v1516
    %1939 = vmatprep.subr.mxu0 %v1525
    %1940 = vmatpush1.msra.mxu0 %v1524
    %1941 = vmatprep.subr.mxu0 %v1533
    %1942 = vmatpush1.msra.mxu0 %v1532
    %1943 = vmatprep.subr.mxu0 %v1541
    %1944 = vmatpush1.msra.mxu0 %v1540
    %1945 = vmatprep.subr.mxu0 %v1549
    %1946 = vmatpush1.msra.mxu0 %v1548
    %1947 = vmatprep.subr.mxu0 %v1557
    %1948 = vmatpush1.msra.mxu0 %v1556
    %1949 = vmatprep.subr.mxu0 %v1565
    %1950 = vmatpush1.msra.mxu0 %v1564
    %1951 = vmatprep.subr.mxu0 %v1573
    %1952 = vmatpush1.msra.mxu0 %v1572
    %1953 = vmatprep.subr.mxu0 %v1581
    %1954 = vmatpush1.msra.mxu0 %v1580
    %1955 = vmatprep.subr.mxu0 %v1589
    %1956 = vmatpush1.msra.mxu0 %v1588
    %1957 = vmatprep.subr.mxu0 %v1597
    %1958 = vmatpush1.msra.mxu0 %v1596
    %1959 = vmatprep.subr.mxu0 %v1605
    %1960 = vmatpush1.msra.mxu0 %v1604
    %1961 = vmatprep.subr.mxu0 %v1613
    %1962 = vmatpush1.msra.mxu0 %v1612
    %1963 = vmatprep.subr.mxu0 %v1621
    %1964 = vmatpush1.msra.mxu0 %v1620
    %1965 = vmatprep.subr.mxu0 %v1629
    %1966 = vmatpush1.msra.mxu0 %v1628
    %1967 = vmatprep.subr.mxu0 %v1637
    %1968 = vmatpush1.msra.mxu0 %v1636
    %1969 = vmatprep.subr.mxu0 %v1645
    %1970 = vmatpush1.msra.mxu0 %v1644
    %1971 = vmatprep.mubr.f32.mxu0 %v627
    %1972 = vmatmul.mubr.f32.gmra.mrb[0].mxu0 %v626
    %v1973 = vpop.f32.mrb[0].mxu0
    %v1974 = vadd.f32 %v1903, %v1973
    %v1975 = vpop.f32.mrb[0].mxu0
    %v1976 = vadd.f32 %v1905, %v1975
    %1977 = vdwg.mxu0
    %1978 = vmatprep.subr.mxu0 %v631
    %1979 = vmatpush1.msra.mxu0 %v630
    %1980 = vmatprep.subr.mxu0 %v639
    %1981 = vmatpush1.msra.mxu0 %v638
    %1982 = vmatprep.subr.mxu0 %v647
    %1983 = vmatpush1.msra.mxu0 %v646
    %1984 = vmatprep.subr.mxu0 %v655
    %1985 = vmatpush1.msra.mxu0 %v654
    %1986 = vmatprep.subr.mxu0 %v663
    %1987 = vmatpush1.msra.mxu0 %v662
    %1988 = vmatprep.subr.mxu0 %v671
    %1989 = vmatpush1.msra.mxu0 %v670
    %1990 = vmatprep.subr.mxu0 %v679
    %1991 = vmatpush1.msra.mxu0 %v678
    %1992 = vmatprep.subr.mxu0 %v687
    %1993 = vmatpush1.msra.mxu0 %v686
    %1994 = vmatprep.subr.mxu0 %v695
    %1995 = vmatpush1.msra.mxu0 %v694
    %1996 = vmatprep.subr.mxu0 %v703
    %1997 = vmatpush1.msra.mxu0 %v702
    %1998 = vmatprep.subr.mxu0 %v711
    %1999 = vmatpush1.msra.mxu0 %v710
    %2000 = vmatprep.subr.mxu0 %v719
    %2001 = vmatpush1.msra.mxu0 %v718
    %2002 = vmatprep.subr.mxu0 %v727
    %2003 = vmatpush1.msra.mxu0 %v726
    %2004 = vmatprep.subr.mxu0 %v735
    %2005 = vmatpush1.msra.mxu0 %v734
    %2006 = vmatprep.subr.mxu0 %v743
    %2007 = vmatpush1.msra.mxu0 %v742
    %2008 = vmatprep.subr.mxu0 %v751
    %2009 = vmatpush1.msra.mxu0 %v750
    %2010 = vmatprep.subr.mxu0 %v759
    %2011 = vmatpush1.msra.mxu0 %v758
    %2012 = vmatprep.subr.mxu0 %v767
    %2013 = vmatpush1.msra.mxu0 %v766
    %2014 = vmatprep.subr.mxu0 %v775
    %2015 = vmatpush1.msra.mxu0 %v774
    %2016 = vmatprep.subr.mxu0 %v783
    %2017 = vmatpush1.msra.mxu0 %v782
    %2018 = vmatprep.subr.mxu0 %v791
    %2019 = vmatpush1.msra.mxu0 %v790
    %2020 = vmatprep.subr.mxu0 %v799
    %2021 = vmatpush1.msra.mxu0 %v798
    %2022 = vmatprep.subr.mxu0 %v807
    %2023 = vmatpush1.msra.mxu0 %v806
    %2024 = vmatprep.subr.mxu0 %v815
    %2025 = vmatpush1.msra.mxu0 %v814
    %2026 = vmatprep.subr.mxu0 %v823
    %2027 = vmatpush1.msra.mxu0 %v822
    %2028 = vmatprep.subr.mxu0 %v831
    %2029 = vmatpush1.msra.mxu0 %v830
    %2030 = vmatprep.subr.mxu0 %v839
    %2031 = vmatpush1.msra.mxu0 %v838
    %2032 = vmatprep.subr.mxu0 %v847
    %2033 = vmatpush1.msra.mxu0 %v846
    %2034 = vmatprep.subr.mxu0 %v855
    %2035 = vmatpush1.msra.mxu0 %v854
    %2036 = vmatprep.subr.mxu0 %v863
    %2037 = vmatpush1.msra.mxu0 %v862
    %2038 = vmatprep.subr.mxu0 %v871
    %2039 = vmatpush1.msra.mxu0 %v870
    %2040 = vmatprep.subr.mxu0 %v879
    %2041 = vmatpush1.msra.mxu0 %v878
    %2042 = vmatprep.mubr.f32.mxu0 %v621
    %2043 = vmatmul.mubr.f32.gmra.mrb[0].mxu0 %v620
    %v2044 = vpop.f32.mrb[0].mxu0
    %v2045 = vadd.f32 %v1665, %v2044
    %v2046 = vpop.f32.mrb[0].mxu0
    %v2047 = vadd.f32 %v1669, %v2046
    %2048 = vdwg.mxu0
    %2049 = vmatprep.subr.mxu0 %v887
    %2050 = vmatpush1.msra.mxu0 %v886
    %2051 = vmatprep.subr.mxu0 %v895
    %2052 = vmatpush1.msra.mxu0 %v894
    %2053 = vmatprep.subr.mxu0 %v903
    %2054 = vmatpush1.msra.mxu0 %v902
    %2055 = vmatprep.subr.mxu0 %v911
    %2056 = vmatpush1.msra.mxu0 %v910
    %2057 = vmatprep.subr.mxu0 %v919
    %2058 = vmatpush1.msra.mxu0 %v918
    %2059 = vmatprep.subr.mxu0 %v927
    %2060 = vmatpush1.msra.mxu0 %v926
    %2061 = vmatprep.subr.mxu0 %v935
    %2062 = vmatpush1.msra.mxu0 %v934
    %2063 = vmatprep.subr.mxu0 %v943
    %2064 = vmatpush1.msra.mxu0 %v942
    %2065 = vmatprep.subr.mxu0 %v951
    %2066 = vmatpush1.msra.mxu0 %v950
    %2067 = vmatprep.subr.mxu0 %v959
    %2068 = vmatpush1.msra.mxu0 %v958
    %2069 = vmatprep.subr.mxu0 %v967
    %2070 = vmatpush1.msra.mxu0 %v966
    %2071 = vmatprep.subr.mxu0 %v975
    %2072 = vmatpush1.msra.mxu0 %v974
    %2073 = vmatprep.subr.mxu0 %v983
    %2074 = vmatpush1.msra.mxu0 %v982
    %2075 = vmatprep.subr.mxu0 %v991
    %2076 = vmatpush1.msra.mxu0 %v990
    %2077 = vmatprep.subr.mxu0 %v999
    %2078 = vmatpush1.msra.mxu0 %v998
    %2079 = vmatprep.subr.mxu0 %v1007
    %2080 = vmatpush1.msra.mxu0 %v1006
    %2081 = vmatprep.subr.mxu0 %v1015
    %2082 = vmatpush1.msra.mxu0 %v1014
    %2083 = vmatprep.subr.mxu0 %v1023
    %2084 = vmatpush1.msra.mxu0 %v1022
    %2085 = vmatprep.subr.mxu0 %v1031
    %2086 = vmatpush1.msra.mxu0 %v1030
    %2087 = vmatprep.subr.mxu0 %v1039
    %2088 = vmatpush1.msra.mxu0 %v1038
    %2089 = vmatprep.subr.mxu0 %v1047
    %2090 = vmatpush1.msra.mxu0 %v1046
    %2091 = vmatprep.subr.mxu0 %v1055
    %2092 = vmatpush1.msra.mxu0 %v1054
    %2093 = vmatprep.subr.mxu0 %v1063
    %2094 = vmatpush1.msra.mxu0 %v1062
    %2095 = vmatprep.subr.mxu0 %v1071
    %2096 = vmatpush1.msra.mxu0 %v1070
    %2097 = vmatprep.subr.mxu0 %v1079
    %2098 = vmatpush1.msra.mxu0 %v1078
    %2099 = vmatprep.subr.mxu0 %v1087
    %2100 = vmatpush1.msra.mxu0 %v1086
    %2101 = vmatprep.subr.mxu0 %v1095
    %2102 = vmatpush1.msra.mxu0 %v1094
    %2103 = vmatprep.subr.mxu0 %v1103
    %2104 = vmatpush1.msra.mxu0 %v1102
    %2105 = vmatprep.subr.mxu0 %v1111
    %2106 = vmatpush1.msra.mxu0 %v1110
    %2107 = vmatprep.subr.mxu0 %v1119
    %2108 = vmatpush1.msra.mxu0 %v1118
    %2109 = vmatprep.subr.mxu0 %v1127
    %2110 = vmatpush1.msra.mxu0 %v1126
    %2111 = vmatprep.subr.mxu0 %v1135
    %2112 = vmatpush1.msra.mxu0 %v1134
    %2113 = vmatprep.mubr.f32.mxu0 %v623
    %2114 = vmatmul.mubr.f32.gmra.mrb[0].mxu0 %v622
    %v2115 = vpop.f32.mrb[0].mxu0
    %v2116 = vadd.f32 %v2045, %v2115
    %v2117 = vpop.f32.mrb[0].mxu0
    %v2118 = vadd.f32 %v2047, %v2117
    %2119 = vdwg.mxu0
    %2120 = vmatprep.subr.mxu0 %v1143
    %2121 = vmatpush1.msra.mxu0 %v1142
    %2122 = vmatprep.subr.mxu0 %v1151
    %2123 = vmatpush1.msra.mxu0 %v1150
    %2124 = vmatprep.subr.mxu0 %v1159
    %2125 = vmatpush1.msra.mxu0 %v1158
    %2126 = vmatprep.subr.mxu0 %v1167
    %2127 = vmatpush1.msra.mxu0 %v1166
    %2128 = vmatprep.subr.mxu0 %v1175
    %2129 = vmatpush1.msra.mxu0 %v1174
    %2130 = vmatprep.subr.mxu0 %v1183
    %2131 = vmatpush1.msra.mxu0 %v1182
    %2132 = vmatprep.subr.mxu0 %v1191
    %2133 = vmatpush1.msra.mxu0 %v1190
    %2134 = vmatprep.subr.mxu0 %v1199
    %2135 = vmatpush1.msra.mxu0 %v1198
    %2136 = vmatprep.subr.mxu0 %v1207
    %2137 = vmatpush1.msra.mxu0 %v1206
    %2138 = vmatprep.subr.mxu0 %v1215
    %2139 = vmatpush1.msra.mxu0 %v1214
    %2140 = vmatprep.subr.mxu0 %v1223
    %2141 = vmatpush1.msra.mxu0 %v1222
    %2142 = vmatprep.subr.mxu0 %v1231
    %2143 = vmatpush1.msra.mxu0 %v1230
    %2144 = vmatprep.subr.mxu0 %v1239
    %2145 = vmatpush1.msra.mxu0 %v1238
    %2146 = vmatprep.subr.mxu0 %v1247
    %2147 = vmatpush1.msra.mxu0 %v1246
    %2148 = vmatprep.subr.mxu0 %v1255
    %2149 = vmatpush1.msra.mxu0 %v1254
    %2150 = vmatprep.subr.mxu0 %v1263
    %2151 = vmatpush1.msra.mxu0 %v1262
    %2152 = vmatprep.subr.mxu0 %v1271
    %2153 = vmatpush1.msra.mxu0 %v1270
    %2154 = vmatprep.subr.mxu0 %v1279
    %2155 = vmatpush1.msra.mxu0 %v1278
    %2156 = vmatprep.subr.mxu0 %v1287
    %2157 = vmatpush1.msra.mxu0 %v1286
    %2158 = vmatprep.subr.mxu0 %v1295
    %2159 = vmatpush1.msra.mxu0 %v1294
    %2160 = vmatprep.subr.mxu0 %v1303
    %2161 = vmatpush1.msra.mxu0 %v1302
    %2162 = vmatprep.subr.mxu0 %v1311
    %2163 = vmatpush1.msra.mxu0 %v1310
    %2164 = vmatprep.subr.mxu0 %v1319
    %2165 = vmatpush1.msra.mxu0 %v1318
    %2166 = vmatprep.subr.mxu0 %v1327
    %2167 = vmatpush1.msra.mxu0 %v1326
    %2168 = vmatprep.subr.mxu0 %v1335
    %2169 = vmatpush1.msra.mxu0 %v1334
    %2170 = vmatprep.subr.mxu0 %v1343
    %2171 = vmatpush1.msra.mxu0 %v1342
    %2172 = vmatprep.subr.mxu0 %v1351
    %2173 = vmatpush1.msra.mxu0 %v1350
    %2174 = vmatprep.subr.mxu0 %v1359
    %2175 = vmatpush1.msra.mxu0 %v1358
    %2176 = vmatprep.subr.mxu0 %v1367
    %2177 = vmatpush1.msra.mxu0 %v1366
    %2178 = vmatprep.subr.mxu0 %v1375
    %2179 = vmatpush1.msra.mxu0 %v1374
    %2180 = vmatprep.subr.mxu0 %v1383
    %2181 = vmatpush1.msra.mxu0 %v1382
    %2182 = vmatprep.subr.mxu0 %v1391
    %2183 = vmatpush1.msra.mxu0 %v1390
    %2184 = vmatprep.mubr.f32.mxu0 %v625
    %2185 = vmatmul.mubr.f32.gmra.mrb[0].mxu0 %v624
    %v2186 = vpop.f32.mrb[0].mxu0
    %v2187 = vadd.f32 %v2116, %v2186
    %v2188 = vpop.f32.mrb[0].mxu0
    %v2189 = vadd.f32 %v2118, %v2188
    %2190 = vdwg.mxu0
    %2191 = vmatprep.subr.mxu0 %v1399
    %2192 = vmatpush1.msra.mxu0 %v1398
    %2193 = vmatprep.subr.mxu0 %v1407
    %2194 = vmatpush1.msra.mxu0 %v1406
    %2195 = vmatprep.subr.mxu0 %v1415
    %2196 = vmatpush1.msra.mxu0 %v1414
    %2197 = vmatprep.subr.mxu0 %v1423
    %2198 = vmatpush1.msra.mxu0 %v1422
    %2199 = vmatprep.subr.mxu0 %v1431
    %2200 = vmatpush1.msra.mxu0 %v1430
    %2201 = vmatprep.subr.mxu0 %v1439
    %2202 = vmatpush1.msra.mxu0 %v1438
    %2203 = vmatprep.subr.mxu0 %v1447
    %2204 = vmatpush1.msra.mxu0 %v1446
    %2205 = vmatprep.subr.mxu0 %v1455
    %2206 = vmatpush1.msra.mxu0 %v1454
    %2207 = vmatprep.subr.mxu0 %v1463
    %2208 = vmatpush1.msra.mxu0 %v1462
    %2209 = vmatprep.subr.mxu0 %v1471
    %2210 = vmatpush1.msra.mxu0 %v1470
    %2211 = vmatprep.subr.mxu0 %v1479
    %2212 = vmatpush1.msra.mxu0 %v1478
    %2213 = vmatprep.subr.mxu0 %v1487
    %2214 = vmatpush1.msra.mxu0 %v1486
    %2215 = vmatprep.subr.mxu0 %v1495
    %2216 = vmatpush1.msra.mxu0 %v1494
    %2217 = vmatprep.subr.mxu0 %v1503
    %2218 = vmatpush1.msra.mxu0 %v1502
    %2219 = vmatprep.subr.mxu0 %v1511
    %2220 = vmatpush1.msra.mxu0 %v1510
    %2221 = vmatprep.subr.mxu0 %v1519
    %2222 = vmatpush1.msra.mxu0 %v1518
    %2223 = vmatprep.subr.mxu0 %v1527
    %2224 = vmatpush1.msra.mxu0 %v1526
    %2225 = vmatprep.subr.mxu0 %v1535
    %2226 = vmatpush1.msra.mxu0 %v1534
    %2227 = vmatprep.subr.mxu0 %v1543
    %2228 = vmatpush1.msra.mxu0 %v1542
    %2229 = vmatprep.subr.mxu0 %v1551
    %2230 = vmatpush1.msra.mxu0 %v1550
    %2231 = vmatprep.subr.mxu0 %v1559
    %2232 = vmatpush1.msra.mxu0 %v1558
    %2233 = vmatprep.subr.mxu0 %v1567
    %2234 = vmatpush1.msra.mxu0 %v1566
    %2235 = vmatprep.subr.mxu0 %v1575
    %2236 = vmatpush1.msra.mxu0 %v1574
    %2237 = vmatprep.subr.mxu0 %v1583
    %2238 = vmatpush1.msra.mxu0 %v1582
    %2239 = vmatprep.subr.mxu0 %v1591
    %2240 = vmatpush1.msra.mxu0 %v1590
    %2241 = vmatprep.subr.mxu0 %v1599
    %2242 = vmatpush1.msra.mxu0 %v1598
    %2243 = vmatprep.subr.mxu0 %v1607
    %2244 = vmatpush1.msra.mxu0 %v1606
    %2245 = vmatprep.subr.mxu0 %v1615
    %2246 = vmatpush1.msra.mxu0 %v1614
    %2247 = vmatprep.subr.mxu0 %v1623
    %2248 = vmatpush1.msra.mxu0 %v1622
    %2249 = vmatprep.subr.mxu0 %v1631
    %2250 = vmatpush1.msra.mxu0 %v1630
    %2251 = vmatprep.subr.mxu0 %v1639
    %2252 = vmatpush1.msra.mxu0 %v1638
    %2253 = vmatprep.subr.mxu0 %v1647
    %2254 = vmatpush1.msra.mxu0 %v1646
    %2255 = vmatprep.mubr.f32.mxu0 %v627
    %2256 = vmatmul.mubr.f32.gmra.mrb[0].mxu0 %v626
    %v2257 = vpop.f32.mrb[0].mxu0
    %v2258 = vadd.f32 %v2187, %v2257
    %v2259 = vpop.f32.mrb[0].mxu0
    %v2260 = vadd.f32 %v2189, %v2259
    %2261 = vdwg.mxu0
    %2262 = vmatprep.subr.mxu0 %v633
    %2263 = vmatpush1.msra.mxu0 %v632
    %2264 = vmatprep.subr.mxu0 %v641
    %2265 = vmatpush1.msra.mxu0 %v640
    %2266 = vmatprep.subr.mxu0 %v649
    %2267 = vmatpush1.msra.mxu0 %v648
    %2268 = vmatprep.subr.mxu0 %v657
    %2269 = vmatpush1.msra.mxu0 %v656
    %2270 = vmatprep.subr.mxu0 %v665
    %2271 = vmatpush1.msra.mxu0 %v664
    %2272 = vmatprep.subr.mxu0 %v673
    %2273 = vmatpush1.msra.mxu0 %v672
    %2274 = vmatprep.subr.mxu0 %v681
    %2275 = vmatpush1.msra.mxu0 %v680
    %2276 = vmatprep.subr.mxu0 %v689
    %2277 = vmatpush1.msra.mxu0 %v688
    %2278 = vmatprep.subr.mxu0 %v697
    %2279 = vmatpush1.msra.mxu0 %v696
    %2280 = vmatprep.subr.mxu0 %v705
    %2281 = vmatpush1.msra.mxu0 %v704
    %2282 = vmatprep.subr.mxu0 %v713
    %2283 = vmatpush1.msra.mxu0 %v712
    %2284 = vmatprep.subr.mxu0 %v721
    %2285 = vmatpush1.msra.mxu0 %v720
    %2286 = vmatprep.subr.mxu0 %v729
    %2287 = vmatpush1.msra.mxu0 %v728
    %2288 = vmatprep.subr.mxu0 %v737
    %2289 = vmatpush1.msra.mxu0 %v736
    %2290 = vmatprep.subr.mxu0 %v745
    %2291 = vmatpush1.msra.mxu0 %v744
    %2292 = vmatprep.subr.mxu0 %v753
    %2293 = vmatpush1.msra.mxu0 %v752
    %2294 = vmatprep.subr.mxu0 %v761
    %2295 = vmatpush1.msra.mxu0 %v760
    %2296 = vmatprep.subr.mxu0 %v769
    %2297 = vmatpush1.msra.mxu0 %v768
    %2298 = vmatprep.subr.mxu0 %v777
    %2299 = vmatpush1.msra.mxu0 %v776
    %2300 = vmatprep.subr.mxu0 %v785
    %2301 = vmatpush1.msra.mxu0 %v784
    %2302 = vmatprep.subr.mxu0 %v793
    %2303 = vmatpush1.msra.mxu0 %v792
    %2304 = vmatprep.subr.mxu0 %v801
    %2305 = vmatpush1.msra.mxu0 %v800
    %2306 = vmatprep.subr.mxu0 %v809
    %2307 = vmatpush1.msra.mxu0 %v808
    %2308 = vmatprep.subr.mxu0 %v817
    %2309 = vmatpush1.msra.mxu0 %v816
    %2310 = vmatprep.subr.mxu0 %v825
    %2311 = vmatpush1.msra.mxu0 %v824
    %2312 = vmatprep.subr.mxu0 %v833
    %2313 = vmatpush1.msra.mxu0 %v832
    %2314 = vmatprep.subr.mxu0 %v841
    %2315 = vmatpush1.msra.mxu0 %v840
    %2316 = vmatprep.subr.mxu0 %v849
    %2317 = vmatpush1.msra.mxu0 %v848
    %2318 = vmatprep.subr.mxu0 %v857
    %2319 = vmatpush1.msra.mxu0 %v856
    %2320 = vmatprep.subr.mxu0 %v865
    %2321 = vmatpush1.msra.mxu0 %v864
    %2322 = vmatprep.subr.mxu0 %v873
    %2323 = vmatpush1.msra.mxu0 %v872
    %2324 = vmatprep.subr.mxu0 %v881
    %2325 = vmatpush1.msra.mxu0 %v880
    %2326 = vmatprep.mubr.f32.mxu0 %v621
    %2327 = vmatmul.mubr.f32.gmra.mrb[0].mxu0 %v620
    %v2328 = vpop.f32.mrb[0].mxu0
    %v2329 = vadd.f32 %v1673, %v2328
    %v2330 = vpop.f32.mrb[0].mxu0
    %v2331 = vadd.f32 %v1677, %v2330
    %2332 = vdwg.mxu0
    %2333 = vmatprep.subr.mxu0 %v889
    %2334 = vmatpush1.msra.mxu0 %v888
    %2335 = vmatprep.subr.mxu0 %v897
    %2336 = vmatpush1.msra.mxu0 %v896
    %2337 = vmatprep.subr.mxu0 %v905
    %2338 = vmatpush1.msra.mxu0 %v904
    %2339 = vmatprep.subr.mxu0 %v913
    %2340 = vmatpush1.msra.mxu0 %v912
    %2341 = vmatprep.subr.mxu0 %v921
    %2342 = vmatpush1.msra.mxu0 %v920
    %2343 = vmatprep.subr.mxu0 %v929
    %2344 = vmatpush1.msra.mxu0 %v928
    %2345 = vmatprep.subr.mxu0 %v937
    %2346 = vmatpush1.msra.mxu0 %v936
    %2347 = vmatprep.subr.mxu0 %v945
    %2348 = vmatpush1.msra.mxu0 %v944
    %2349 = vmatprep.subr.mxu0 %v953
    %2350 = vmatpush1.msra.mxu0 %v952
    %2351 = vmatprep.subr.mxu0 %v961
    %2352 = vmatpush1.msra.mxu0 %v960
    %2353 = vmatprep.subr.mxu0 %v969
    %2354 = vmatpush1.msra.mxu0 %v968
    %2355 = vmatprep.subr.mxu0 %v977
    %2356 = vmatpush1.msra.mxu0 %v976
    %2357 = vmatprep.subr.mxu0 %v985
    %2358 = vmatpush1.msra.mxu0 %v984
    %2359 = vmatprep.subr.mxu0 %v993
    %2360 = vmatpush1.msra.mxu0 %v992
    %2361 = vmatprep.subr.mxu0 %v1001
    %2362 = vmatpush1.msra.mxu0 %v1000
    %2363 = vmatprep.subr.mxu0 %v1009
    %2364 = vmatpush1.msra.mxu0 %v1008
    %2365 = vmatprep.subr.mxu0 %v1017
    %2366 = vmatpush1.msra.mxu0 %v1016
    %2367 = vmatprep.subr.mxu0 %v1025
    %2368 = vmatpush1.msra.mxu0 %v1024
    %2369 = vmatprep.subr.mxu0 %v1033
    %2370 = vmatpush1.msra.mxu0 %v1032
    %2371 = vmatprep.subr.mxu0 %v1041
    %2372 = vmatpush1.msra.mxu0 %v1040
    %2373 = vmatprep.subr.mxu0 %v1049
    %2374 = vmatpush1.msra.mxu0 %v1048
    %2375 = vmatprep.subr.mxu0 %v1057
    %2376 = vmatpush1.msra.mxu0 %v1056
    %2377 = vmatprep.subr.mxu0 %v1065
    %2378 = vmatpush1.msra.mxu0 %v1064
    %2379 = vmatprep.subr.mxu0 %v1073
    %2380 = vmatpush1.msra.mxu0 %v1072
    %2381 = vmatprep.subr.mxu0 %v1081
    %2382 = vmatpush1.msra.mxu0 %v1080
    %2383 = vmatprep.subr.mxu0 %v1089
    %2384 = vmatpush1.msra.mxu0 %v1088
    %2385 = vmatprep.subr.mxu0 %v1097
    %2386 = vmatpush1.msra.mxu0 %v1096
    %2387 = vmatprep.subr.mxu0 %v1105
    %2388 = vmatpush1.msra.mxu0 %v1104
    %2389 = vmatprep.subr.mxu0 %v1113
    %2390 = vmatpush1.msra.mxu0 %v1112
    %2391 = vmatprep.subr.mxu0 %v1121
    %2392 = vmatpush1.msra.mxu0 %v1120
    %2393 = vmatprep.subr.mxu0 %v1129
    %2394 = vmatpush1.msra.mxu0 %v1128
    %2395 = vmatprep.subr.mxu0 %v1137
    %2396 = vmatpush1.msra.mxu0 %v1136
    %2397 = vmatprep.mubr.f32.mxu0 %v623
    %2398 = vmatmul.mubr.f32.gmra.mrb[0].mxu0 %v622
    %v2399 = vpop.f32.mrb[0].mxu0
    %v2400 = vadd.f32 %v2329, %v2399
    %v2401 = vpop.f32.mrb[0].mxu0
    %v2402 = vadd.f32 %v2331, %v2401
    %2403 = vdwg.mxu0
    %2404 = vmatprep.subr.mxu0 %v1145
    %2405 = vmatpush1.msra.mxu0 %v1144
    %2406 = vmatprep.subr.mxu0 %v1153
    %2407 = vmatpush1.msra.mxu0 %v1152
    %2408 = vmatprep.subr.mxu0 %v1161
    %2409 = vmatpush1.msra.mxu0 %v1160
    %2410 = vmatprep.subr.mxu0 %v1169
    %2411 = vmatpush1.msra.mxu0 %v1168
    %2412 = vmatprep.subr.mxu0 %v1177
    %2413 = vmatpush1.msra.mxu0 %v1176
    %2414 = vmatprep.subr.mxu0 %v1185
    %2415 = vmatpush1.msra.mxu0 %v1184
    %2416 = vmatprep.subr.mxu0 %v1193
    %2417 = vmatpush1.msra.mxu0 %v1192
    %2418 = vmatprep.subr.mxu0 %v1201
    %2419 = vmatpush1.msra.mxu0 %v1200
    %2420 = vmatprep.subr.mxu0 %v1209
    %2421 = vmatpush1.msra.mxu0 %v1208
    %2422 = vmatprep.subr.mxu0 %v1217
    %2423 = vmatpush1.msra.mxu0 %v1216
    %2424 = vmatprep.subr.mxu0 %v1225
    %2425 = vmatpush1.msra.mxu0 %v1224
    %2426 = vmatprep.subr.mxu0 %v1233
    %2427 = vmatpush1.msra.mxu0 %v1232
    %2428 = vmatprep.subr.mxu0 %v1241
    %2429 = vmatpush1.msra.mxu0 %v1240
    %2430 = vmatprep.subr.mxu0 %v1249
    %2431 = vmatpush1.msra.mxu0 %v1248
    %2432 = vmatprep.subr.mxu0 %v1257
    %2433 = vmatpush1.msra.mxu0 %v1256
    %2434 = vmatprep.subr.mxu0 %v1265
    %2435 = vmatpush1.msra.mxu0 %v1264
    %2436 = vmatprep.subr.mxu0 %v1273
    %2437 = vmatpush1.msra.mxu0 %v1272
    %2438 = vmatprep.subr.mxu0 %v1281
    %2439 = vmatpush1.msra.mxu0 %v1280
    %2440 = vmatprep.subr.mxu0 %v1289
    %2441 = vmatpush1.msra.mxu0 %v1288
    %2442 = vmatprep.subr.mxu0 %v1297
    %2443 = vmatpush1.msra.mxu0 %v1296
    %2444 = vmatprep.subr.mxu0 %v1305
    %2445 = vmatpush1.msra.mxu0 %v1304
    %2446 = vmatprep.subr.mxu0 %v1313
    %2447 = vmatpush1.msra.mxu0 %v1312
    %2448 = vmatprep.subr.mxu0 %v1321
    %2449 = vmatpush1.msra.mxu0 %v1320
    %2450 = vmatprep.subr.mxu0 %v1329
    %2451 = vmatpush1.msra.mxu0 %v1328
    %2452 = vmatprep.subr.mxu0 %v1337
    %2453 = vmatpush1.msra.mxu0 %v1336
    %2454 = vmatprep.subr.mxu0 %v1345
    %2455 = vmatpush1.msra.mxu0 %v1344
    %2456 = vmatprep.subr.mxu0 %v1353
    %2457 = vmatpush1.msra.mxu0 %v1352
    %2458 = vmatprep.subr.mxu0 %v1361
    %2459 = vmatpush1.msra.mxu0 %v1360
    %2460 = vmatprep.subr.mxu0 %v1369
    %2461 = vmatpush1.msra.mxu0 %v1368
    %2462 = vmatprep.subr.mxu0 %v1377
    %2463 = vmatpush1.msra.mxu0 %v1376
    %2464 = vmatprep.subr.mxu0 %v1385
    %2465 = vmatpush1.msra.mxu0 %v1384
    %2466 = vmatprep.subr.mxu0 %v1393
    %2467 = vmatpush1.msra.mxu0 %v1392
    %2468 = vmatprep.mubr.f32.mxu0 %v625
    %2469 = vmatmul.mubr.f32.gmra.mrb[0].mxu0 %v624
    %v2470 = vpop.f32.mrb[0].mxu0
    %v2471 = vadd.f32 %v2400, %v2470
    %v2472 = vpop.f32.mrb[0].mxu0
    %v2473 = vadd.f32 %v2402, %v2472
    %2474 = vdwg.mxu0
    %2475 = vmatprep.subr.mxu0 %v1401
    %2476 = vmatpush1.msra.mxu0 %v1400
    %2477 = vmatprep.subr.mxu0 %v1409
    %2478 = vmatpush1.msra.mxu0 %v1408
    %2479 = vmatprep.subr.mxu0 %v1417
    %2480 = vmatpush1.msra.mxu0 %v1416
    %2481 = vmatprep.subr.mxu0 %v1425
    %2482 = vmatpush1.msra.mxu0 %v1424
    %2483 = vmatprep.subr.mxu0 %v1433
    %2484 = vmatpush1.msra.mxu0 %v1432
    %2485 = vmatprep.subr.mxu0 %v1441
    %2486 = vmatpush1.msra.mxu0 %v1440
    %2487 = vmatprep.subr.mxu0 %v1449
    %2488 = vmatpush1.msra.mxu0 %v1448
    %2489 = vmatprep.subr.mxu0 %v1457
    %2490 = vmatpush1.msra.mxu0 %v1456
    %2491 = vmatprep.subr.mxu0 %v1465
    %2492 = vmatpush1.msra.mxu0 %v1464
    %2493 = vmatprep.subr.mxu0 %v1473
    %2494 = vmatpush1.msra.mxu0 %v1472
    %2495 = vmatprep.subr.mxu0 %v1481
    %2496 = vmatpush1.msra.mxu0 %v1480
    %2497 = vmatprep.subr.mxu0 %v1489
    %2498 = vmatpush1.msra.mxu0 %v1488
    %2499 = vmatprep.subr.mxu0 %v1497
    %2500 = vmatpush1.msra.mxu0 %v1496
    %2501 = vmatprep.subr.mxu0 %v1505
    %2502 = vmatpush1.msra.mxu0 %v1504
    %2503 = vmatprep.subr.mxu0 %v1513
    %2504 = vmatpush1.msra.mxu0 %v1512
    %2505 = vmatprep.subr.mxu0 %v1521
    %2506 = vmatpush1.msra.mxu0 %v1520
    %2507 = vmatprep.subr.mxu0 %v1529
    %2508 = vmatpush1.msra.mxu0 %v1528
    %2509 = vmatprep.subr.mxu0 %v1537
    %2510 = vmatpush1.msra.mxu0 %v1536
    %2511 = vmatprep.subr.mxu0 %v1545
    %2512 = vmatpush1.msra.mxu0 %v1544
    %2513 = vmatprep.subr.mxu0 %v1553
    %2514 = vmatpush1.msra.mxu0 %v1552
    %2515 = vmatprep.subr.mxu0 %v1561
    %2516 = vmatpush1.msra.mxu0 %v1560
    %2517 = vmatprep.subr.mxu0 %v1569
    %2518 = vmatpush1.msra.mxu0 %v1568
    %2519 = vmatprep.subr.mxu0 %v1577
    %2520 = vmatpush1.msra.mxu0 %v1576
    %2521 = vmatprep.subr.mxu0 %v1585
    %2522 = vmatpush1.msra.mxu0 %v1584
    %2523 = vmatprep.subr.mxu0 %v1593
    %2524 = vmatpush1.msra.mxu0 %v1592
    %2525 = vmatprep.subr.mxu0 %v1601
    %2526 = vmatpush1.msra.mxu0 %v1600
    %2527 = vmatprep.subr.mxu0 %v1609
    %2528 = vmatpush1.msra.mxu0 %v1608
    %2529 = vmatprep.subr.mxu0 %v1617
    %2530 = vmatpush1.msra.mxu0 %v1616
    %2531 = vmatprep.subr.mxu0 %v1625
    %2532 = vmatpush1.msra.mxu0 %v1624
    %2533 = vmatprep.subr.mxu0 %v1633
    %2534 = vmatpush1.msra.mxu0 %v1632
    %2535 = vmatprep.subr.mxu0 %v1641
    %2536 = vmatpush1.msra.mxu0 %v1640
    %2537 = vmatprep.subr.mxu0 %v1649
    %2538 = vmatpush1.msra.mxu0 %v1648
    %2539 = vmatprep.mubr.f32.mxu0 %v627
    %2540 = vmatmul.mubr.f32.gmra.mrb[0].mxu0 %v626
    %v2541 = vpop.f32.mrb[0].mxu0
    %v2542 = vadd.f32 %v2471, %v2541
    %v2543 = vpop.f32.mrb[0].mxu0
    %v2544 = vadd.f32 %v2473, %v2543
    %2545 = vdwg.mxu0
    %2546 = vmatprep.subr.mxu0 %v635
    %2547 = vmatpush1.msra.mxu0 %v634
    %2548 = vmatprep.subr.mxu0 %v643
    %2549 = vmatpush1.msra.mxu0 %v642
    %2550 = vmatprep.subr.mxu0 %v651
    %2551 = vmatpush1.msra.mxu0 %v650
    %2552 = vmatprep.subr.mxu0 %v659
    %2553 = vmatpush1.msra.mxu0 %v658
    %2554 = vmatprep.subr.mxu0 %v667
    %2555 = vmatpush1.msra.mxu0 %v666
    %2556 = vmatprep.subr.mxu0 %v675
    %2557 = vmatpush1.msra.mxu0 %v674
    %2558 = vmatprep.subr.mxu0 %v683
    %2559 = vmatpush1.msra.mxu0 %v682
    %2560 = vmatprep.subr.mxu0 %v691
    %2561 = vmatpush1.msra.mxu0 %v690
    %2562 = vmatprep.subr.mxu0 %v699
    %2563 = vmatpush1.msra.mxu0 %v698
    %2564 = vmatprep.subr.mxu0 %v707
    %2565 = vmatpush1.msra.mxu0 %v706
    %2566 = vmatprep.subr.mxu0 %v715
    %2567 = vmatpush1.msra.mxu0 %v714
    %2568 = vmatprep.subr.mxu0 %v723
    %2569 = vmatpush1.msra.mxu0 %v722
    %2570 = vmatprep.subr.mxu0 %v731
    %2571 = vmatpush1.msra.mxu0 %v730
    %2572 = vmatprep.subr.mxu0 %v739
    %2573 = vmatpush1.msra.mxu0 %v738
    %2574 = vmatprep.subr.mxu0 %v747
    %2575 = vmatpush1.msra.mxu0 %v746
    %2576 = vmatprep.subr.mxu0 %v755
    %2577 = vmatpush1.msra.mxu0 %v754
    %2578 = vmatprep.subr.mxu0 %v763
    %2579 = vmatpush1.msra.mxu0 %v762
    %2580 = vmatprep.subr.mxu0 %v771
    %2581 = vmatpush1.msra.mxu0 %v770
    %2582 = vmatprep.subr.mxu0 %v779
    %2583 = vmatpush1.msra.mxu0 %v778
    %2584 = vmatprep.subr.mxu0 %v787
    %2585 = vmatpush1.msra.mxu0 %v786
    %2586 = vmatprep.subr.mxu0 %v795
    %2587 = vmatpush1.msra.mxu0 %v794
    %2588 = vmatprep.subr.mxu0 %v803
    %2589 = vmatpush1.msra.mxu0 %v802
    %2590 = vmatprep.subr.mxu0 %v811
    %2591 = vmatpush1.msra.mxu0 %v810
    %2592 = vmatprep.subr.mxu0 %v819
    %2593 = vmatpush1.msra.mxu0 %v818
    %2594 = vmatprep.subr.mxu0 %v827
    %2595 = vmatpush1.msra.mxu0 %v826
    %2596 = vmatprep.subr.mxu0 %v835
    %2597 = vmatpush1.msra.mxu0 %v834
    %2598 = vmatprep.subr.mxu0 %v843
    %2599 = vmatpush1.msra.mxu0 %v842
    %2600 = vmatprep.subr.mxu0 %v851
    %2601 = vmatpush1.msra.mxu0 %v850
    %2602 = vmatprep.subr.mxu0 %v859
    %2603 = vmatpush1.msra.mxu0 %v858
    %2604 = vmatprep.subr.mxu0 %v867
    %2605 = vmatpush1.msra.mxu0 %v866
    %2606 = vmatprep.subr.mxu0 %v875
    %2607 = vmatpush1.msra.mxu0 %v874
    %2608 = vmatprep.subr.mxu0 %v883
    %2609 = vmatpush1.msra.mxu0 %v882
    %2610 = vmatprep.mubr.f32.mxu0 %v621
    %2611 = vmatmul.mubr.f32.gmra.mrb[0].mxu0 %v620
    %v2612 = vpop.f32.mrb[0].mxu0
    %v2613 = vadd.f32 %v1681, %v2612
    %v2614 = vpop.f32.mrb[0].mxu0
    %v2615 = vadd.f32 %v1685, %v2614
    %2616 = vdwg.mxu0
    %2617 = vmatprep.subr.mxu0 %v891
    %2618 = vmatpush1.msra.mxu0 %v890
    %2619 = vmatprep.subr.mxu0 %v899
    %2620 = vmatpush1.msra.mxu0 %v898
    %2621 = vmatprep.subr.mxu0 %v907
    %2622 = vmatpush1.msra.mxu0 %v906
    %2623 = vmatprep.subr.mxu0 %v915
    %2624 = vmatpush1.msra.mxu0 %v914
    %2625 = vmatprep.subr.mxu0 %v923
    %2626 = vmatpush1.msra.mxu0 %v922
    %2627 = vmatprep.subr.mxu0 %v931
    %2628 = vmatpush1.msra.mxu0 %v930
    %2629 = vmatprep.subr.mxu0 %v939
    %2630 = vmatpush1.msra.mxu0 %v938
    %2631 = vmatprep.subr.mxu0 %v947
    %2632 = vmatpush1.msra.mxu0 %v946
    %2633 = vmatprep.subr.mxu0 %v955
    %2634 = vmatpush1.msra.mxu0 %v954
    %2635 = vmatprep.subr.mxu0 %v963
    %2636 = vmatpush1.msra.mxu0 %v962
    %2637 = vmatprep.subr.mxu0 %v971
    %2638 = vmatpush1.msra.mxu0 %v970
    %2639 = vmatprep.subr.mxu0 %v979
    %2640 = vmatpush1.msra.mxu0 %v978
    %2641 = vmatprep.subr.mxu0 %v987
    %2642 = vmatpush1.msra.mxu0 %v986
    %2643 = vmatprep.subr.mxu0 %v995
    %2644 = vmatpush1.msra.mxu0 %v994
    %2645 = vmatprep.subr.mxu0 %v1003
    %2646 = vmatpush1.msra.mxu0 %v1002
    %2647 = vmatprep.subr.mxu0 %v1011
    %2648 = vmatpush1.msra.mxu0 %v1010
    %2649 = vmatprep.subr.mxu0 %v1019
    %2650 = vmatpush1.msra.mxu0 %v1018
    %2651 = vmatprep.subr.mxu0 %v1027
    %2652 = vmatpush1.msra.mxu0 %v1026
    %2653 = vmatprep.subr.mxu0 %v1035
    %2654 = vmatpush1.msra.mxu0 %v1034
    %2655 = vmatprep.subr.mxu0 %v1043
    %2656 = vmatpush1.msra.mxu0 %v1042
    %2657 = vmatprep.subr.mxu0 %v1051
    %2658 = vmatpush1.msra.mxu0 %v1050
    %2659 = vmatprep.subr.mxu0 %v1059
    %2660 = vmatpush1.msra.mxu0 %v1058
    %2661 = vmatprep.subr.mxu0 %v1067
    %2662 = vmatpush1.msra.mxu0 %v1066
    %2663 = vmatprep.subr.mxu0 %v1075
    %2664 = vmatpush1.msra.mxu0 %v1074
    %2665 = vmatprep.subr.mxu0 %v1083
    %2666 = vmatpush1.msra.mxu0 %v1082
    %2667 = vmatprep.subr.mxu0 %v1091
    %2668 = vmatpush1.msra.mxu0 %v1090
    %2669 = vmatprep.subr.mxu0 %v1099
    %2670 = vmatpush1.msra.mxu0 %v1098
    %2671 = vmatprep.subr.mxu0 %v1107
    %2672 = vmatpush1.msra.mxu0 %v1106
    %2673 = vmatprep.subr.mxu0 %v1115
    %2674 = vmatpush1.msra.mxu0 %v1114
    %2675 = vmatprep.subr.mxu0 %v1123
    %2676 = vmatpush1.msra.mxu0 %v1122
    %2677 = vmatprep.subr.mxu0 %v1131
    %2678 = vmatpush1.msra.mxu0 %v1130
    %2679 = vmatprep.subr.mxu0 %v1139
    %2680 = vmatpush1.msra.mxu0 %v1138
    %2681 = vmatprep.mubr.f32.mxu0 %v623
    %2682 = vmatmul.mubr.f32.gmra.mrb[0].mxu0 %v622
    %v2683 = vpop.f32.mrb[0].mxu0
    %v2684 = vadd.f32 %v2613, %v2683
    %v2685 = vpop.f32.mrb[0].mxu0
    %v2686 = vadd.f32 %v2615, %v2685
    %2687 = vdwg.mxu0
    %2688 = vmatprep.subr.mxu0 %v1147
    %2689 = vmatpush1.msra.mxu0 %v1146
    %2690 = vmatprep.subr.mxu0 %v1155
    %2691 = vmatpush1.msra.mxu0 %v1154
    %2692 = vmatprep.subr.mxu0 %v1163
    %2693 = vmatpush1.msra.mxu0 %v1162
    %2694 = vmatprep.subr.mxu0 %v1171
    %2695 = vmatpush1.msra.mxu0 %v1170
    %2696 = vmatprep.subr.mxu0 %v1179
    %2697 = vmatpush1.msra.mxu0 %v1178
    %2698 = vmatprep.subr.mxu0 %v1187
    %2699 = vmatpush1.msra.mxu0 %v1186
    %2700 = vmatprep.subr.mxu0 %v1195
    %2701 = vmatpush1.msra.mxu0 %v1194
    %2702 = vmatprep.subr.mxu0 %v1203
    %2703 = vmatpush1.msra.mxu0 %v1202
    %2704 = vmatprep.subr.mxu0 %v1211
    %2705 = vmatpush1.msra.mxu0 %v1210
    %2706 = vmatprep.subr.mxu0 %v1219
    %2707 = vmatpush1.msra.mxu0 %v1218
    %2708 = vmatprep.subr.mxu0 %v1227
    %2709 = vmatpush1.msra.mxu0 %v1226
    %2710 = vmatprep.subr.mxu0 %v1235
    %2711 = vmatpush1.msra.mxu0 %v1234
    %2712 = vmatprep.subr.mxu0 %v1243
    %2713 = vmatpush1.msra.mxu0 %v1242
    %2714 = vmatprep.subr.mxu0 %v1251
    %2715 = vmatpush1.msra.mxu0 %v1250
    %2716 = vmatprep.subr.mxu0 %v1259
    %2717 = vmatpush1.msra.mxu0 %v1258
    %2718 = vmatprep.subr.mxu0 %v1267
    %2719 = vmatpush1.msra.mxu0 %v1266
    %2720 = vmatprep.subr.mxu0 %v1275
    %2721 = vmatpush1.msra.mxu0 %v1274
    %2722 = vmatprep.subr.mxu0 %v1283
    %2723 = vmatpush1.msra.mxu0 %v1282
    %2724 = vmatprep.subr.mxu0 %v1291
    %2725 = vmatpush1.msra.mxu0 %v1290
    %2726 = vmatprep.subr.mxu0 %v1299
    %2727 = vmatpush1.msra.mxu0 %v1298
    %2728 = vmatprep.subr.mxu0 %v1307
    %2729 = vmatpush1.msra.mxu0 %v1306
    %2730 = vmatprep.subr.mxu0 %v1315
    %2731 = vmatpush1.msra.mxu0 %v1314
    %2732 = vmatprep.subr.mxu0 %v1323
    %2733 = vmatpush1.msra.mxu0 %v1322
    %2734 = vmatprep.subr.mxu0 %v1331
    %2735 = vmatpush1.msra.mxu0 %v1330
    %2736 = vmatprep.subr.mxu0 %v1339
    %2737 = vmatpush1.msra.mxu0 %v1338
    %2738 = vmatprep.subr.mxu0 %v1347
    %2739 = vmatpush1.msra.mxu0 %v1346
    %2740 = vmatprep.subr.mxu0 %v1355
    %2741 = vmatpush1.msra.mxu0 %v1354
    %2742 = vmatprep.subr.mxu0 %v1363
    %2743 = vmatpush1.msra.mxu0 %v1362
    %2744 = vmatprep.subr.mxu0 %v1371
    %2745 = vmatpush1.msra.mxu0 %v1370
    %2746 = vmatprep.subr.mxu0 %v1379
    %2747 = vmatpush1.msra.mxu0 %v1378
    %2748 = vmatprep.subr.mxu0 %v1387
    %2749 = vmatpush1.msra.mxu0 %v1386
    %2750 = vmatprep.subr.mxu0 %v1395
    %2751 = vmatpush1.msra.mxu0 %v1394
    %2752 = vmatprep.mubr.f32.mxu0 %v625
    %2753 = vmatmul.mubr.f32.gmra.mrb[0].mxu0 %v624
    %v2754 = vpop.f32.mrb[0].mxu0
    %v2755 = vadd.f32 %v2684, %v2754
    %v2756 = vpop.f32.mrb[0].mxu0
    %v2757 = vadd.f32 %v2686, %v2756
    %2758 = vdwg.mxu0
    %2759 = vmatprep.subr.mxu0 %v1403
    %2760 = vmatpush1.msra.mxu0 %v1402
    %2761 = vmatprep.subr.mxu0 %v1411
    %2762 = vmatpush1.msra.mxu0 %v1410
    %2763 = vmatprep.subr.mxu0 %v1419
    %2764 = vmatpush1.msra.mxu0 %v1418
    %2765 = vmatprep.subr.mxu0 %v1427
    %2766 = vmatpush1.msra.mxu0 %v1426
    %2767 = vmatprep.subr.mxu0 %v1435
    %2768 = vmatpush1.msra.mxu0 %v1434
    %2769 = vmatprep.subr.mxu0 %v1443
    %2770 = vmatpush1.msra.mxu0 %v1442
    %2771 = vmatprep.subr.mxu0 %v1451
    %2772 = vmatpush1.msra.mxu0 %v1450
    %2773 = vmatprep.subr.mxu0 %v1459
    %2774 = vmatpush1.msra.mxu0 %v1458
    %2775 = vmatprep.subr.mxu0 %v1467
    %2776 = vmatpush1.msra.mxu0 %v1466
    %2777 = vmatprep.subr.mxu0 %v1475
    %2778 = vmatpush1.msra.mxu0 %v1474
    %2779 = vmatprep.subr.mxu0 %v1483
    %2780 = vmatpush1.msra.mxu0 %v1482
    %2781 = vmatprep.subr.mxu0 %v1491
    %2782 = vmatpush1.msra.mxu0 %v1490
    %2783 = vmatprep.subr.mxu0 %v1499
    %2784 = vmatpush1.msra.mxu0 %v1498
    %2785 = vmatprep.subr.mxu0 %v1507
    %2786 = vmatpush1.msra.mxu0 %v1506
    %2787 = vmatprep.subr.mxu0 %v1515
    %2788 = vmatpush1.msra.mxu0 %v1514
    %2789 = vmatprep.subr.mxu0 %v1523
    %2790 = vmatpush1.msra.mxu0 %v1522
    %2791 = vmatprep.subr.mxu0 %v1531
    %2792 = vmatpush1.msra.mxu0 %v1530
    %2793 = vmatprep.subr.mxu0 %v1539
    %2794 = vmatpush1.msra.mxu0 %v1538
    %2795 = vmatprep.subr.mxu0 %v1547
    %2796 = vmatpush1.msra.mxu0 %v1546
    %2797 = vmatprep.subr.mxu0 %v1555
    %2798 = vmatpush1.msra.mxu0 %v1554
    %2799 = vmatprep.subr.mxu0 %v1563
    %2800 = vmatpush1.msra.mxu0 %v1562
    %2801 = vmatprep.subr.mxu0 %v1571
    %2802 = vmatpush1.msra.mxu0 %v1570
    %2803 = vmatprep.subr.mxu0 %v1579
    %2804 = vmatpush1.msra.mxu0 %v1578
    %2805 = vmatprep.subr.mxu0 %v1587
    %2806 = vmatpush1.msra.mxu0 %v1586
    %2807 = vmatprep.subr.mxu0 %v1595
    %2808 = vmatpush1.msra.mxu0 %v1594
    %2809 = vmatprep.subr.mxu0 %v1603
    %2810 = vmatpush1.msra.mxu0 %v1602
    %2811 = vmatprep.subr.mxu0 %v1611
    %2812 = vmatpush1.msra.mxu0 %v1610
    %2813 = vmatprep.subr.mxu0 %v1619
    %2814 = vmatpush1.msra.mxu0 %v1618
    %2815 = vmatprep.subr.mxu0 %v1627
    %2816 = vmatpush1.msra.mxu0 %v1626
    %2817 = vmatprep.subr.mxu0 %v1635
    %2818 = vmatpush1.msra.mxu0 %v1634
    %2819 = vmatprep.subr.mxu0 %v1643
    %2820 = vmatpush1.msra.mxu0 %v1642
    %2821 = vmatprep.subr.mxu0 %v1651
    %2822 = vmatpush1.msra.mxu0 %v1650
    %2823 = vmatprep.mubr.f32.mxu0 %v627
    %2824 = vmatmul.mubr.f32.gmra.mrb[0].mxu0 %v626
    %v2825 = vpop.f32.mrb[0].mxu0
    %v2826 = vadd.f32 %v2755, %v2825
    %v2827 = vpop.f32.mrb[0].mxu0
    %v2828 = vadd.f32 %v2757, %v2827
    %2829 = vdwg.mxu0
    %v2830 = vmul.f32 %v1974, 0.5
    %v2831 = vmul.f32 %v1976, 0.5
    %v2832 = vmul.f32 %v2258, 0.5
    %v2833 = vmul.f32 %v2260, 0.5
    %v2834 = vmul.f32 %v2542, 0.5
    %v2835 = vmul.f32 %v2544, 0.5
    %v2836 = vmul.f32 %v2826, 0.5
    %v2837 = vmul.f32 %v2828, 0.5
    %v2838 = vmul.f32 %v1974, 0.70710677
    %v2839 = vmul.f32 %v1976, 0.70710677
    %v2840 = vmul.f32 %v2258, 0.70710677
    %v2841 = vmul.f32 %v2260, 0.70710677
    %v2842 = vmul.f32 %v2542, 0.70710677
    %v2843 = vmul.f32 %v2544, 0.70710677
    %v2844 = vmul.f32 %v2826, 0.70710677
    %v2845 = vmul.f32 %v2828, 0.70710677
    %v2846 = verf.f32.pop %v2838
    %v2847 = verf.f32.pop %v2839
    %v2848 = verf.f32.pop %v2840
    %v2849 = verf.f32.pop %v2841
    %v2850 = verf.f32.pop %v2842
    %v2851 = verf.f32.pop %v2843
    %v2852 = verf.f32.pop %v2844
    %v2853 = verf.f32.pop %v2845
    %v2854 = vadd.f32 %v2846, 1.0
    %v2855 = vadd.f32 %v2847, 1.0
    %v2856 = vadd.f32 %v2848, 1.0
    %v2857 = vadd.f32 %v2849, 1.0
    %v2858 = vadd.f32 %v2850, 1.0
    %v2859 = vadd.f32 %v2851, 1.0
    %v2860 = vadd.f32 %v2852, 1.0
    %v2861 = vadd.f32 %v2853, 1.0
    %v2862 = vmul.f32 %v2830, %v2854
    %v2863 = vmul.f32 %v2831, %v2855
    %v2864 = vmul.f32 %v2832, %v2856
    %v2865 = vmul.f32 %v2833, %v2857
    %v2866 = vmul.f32 %v2834, %v2858
    %v2867 = vmul.f32 %v2835, %v2859
    %v2868 = vmul.f32 %v2836, %v2860
    %v2869 = vmul.f32 %v2837, %v2861
    %v2870 = vld [vmem:[#allocation9] sm:$0xff]
    %v2871 = vld [vmem:[#allocation9 + $0x8] sm:$0xff]
    %v2872 = vld [vmem:[#allocation9 + $0x10] sm:$0xff]
    %v2873 = vld [vmem:[#allocation9 + $0x18] sm:$0xff]
    %v2874 = vld [vmem:[#allocation9 + $0x20] sm:$0xff]
    %v2875 = vld [vmem:[#allocation9 + $0x28] sm:$0xff]
    %v2876 = vld [vmem:[#allocation9 + $0x30] sm:$0xff]
    %v2877 = vld [vmem:[#allocation9 + $0x38] sm:$0xff]
    %v2878 = vld [vmem:[#allocation9 + $0x40] sm:$0xff]
    %v2879 = vld [vmem:[#allocation9 + $0x48] sm:$0xff]
    %v2880 = vld [vmem:[#allocation9 + $0x50] sm:$0xff]
    %v2881 = vld [vmem:[#allocation9 + $0x58] sm:$0xff]
    %v2882 = vld [vmem:[#allocation9 + $0x60] sm:$0xff]
    %v2883 = vld [vmem:[#allocation9 + $0x68] sm:$0xff]
    %v2884 = vld [vmem:[#allocation9 + $0x70] sm:$0xff]
    %v2885 = vld [vmem:[#allocation9 + $0x78] sm:$0xff]
    %v2886 = vld [vmem:[#allocation9 + $0x80] sm:$0xff]
    %v2887 = vld [vmem:[#allocation9 + $0x88] sm:$0xff]
    %v2888 = vld [vmem:[#allocation9 + $0x90] sm:$0xff]
    %v2889 = vld [vmem:[#allocation9 + $0x98] sm:$0xff]
    %v2890 = vld [vmem:[#allocation9 + $0xa0] sm:$0xff]
    %v2891 = vld [vmem:[#allocation9 + $0xa8] sm:$0xff]
    %v2892 = vld [vmem:[#allocation9 + $0xb0] sm:$0xff]
    %v2893 = vld [vmem:[#allocation9 + $0xb8] sm:$0xff]
    %v2894 = vld [vmem:[#allocation9 + $0xc0] sm:$0xff]
    %v2895 = vld [vmem:[#allocation9 + $0xc8] sm:$0xff]
    %v2896 = vld [vmem:[#allocation9 + $0xd0] sm:$0xff]
    %v2897 = vld [vmem:[#allocation9 + $0xd8] sm:$0xff]
    %v2898 = vld [vmem:[#allocation9 + $0xe0] sm:$0xff]
    %v2899 = vld [vmem:[#allocation9 + $0xe8] sm:$0xff]
    %v2900 = vld [vmem:[#allocation9 + $0xf0] sm:$0xff]
    %v2901 = vld [vmem:[#allocation9 + $0xf8] sm:$0xff]
    %v2902 = vld [vmem:[#allocation9 + $0x100] sm:$0xff]
    %v2903 = vld [vmem:[#allocation9 + $0x108] sm:$0xff]
    %v2904 = vld [vmem:[#allocation9 + $0x110] sm:$0xff]
    %v2905 = vld [vmem:[#allocation9 + $0x118] sm:$0xff]
    %v2906 = vld [vmem:[#allocation9 + $0x120] sm:$0xff]
    %v2907 = vld [vmem:[#allocation9 + $0x128] sm:$0xff]
    %v2908 = vld [vmem:[#allocation9 + $0x130] sm:$0xff]
    %v2909 = vld [vmem:[#allocation9 + $0x138] sm:$0xff]
    %v2910 = vld [vmem:[#allocation9 + $0x140] sm:$0xff]
    %v2911 = vld [vmem:[#allocation9 + $0x148] sm:$0xff]
    %v2912 = vld [vmem:[#allocation9 + $0x150] sm:$0xff]
    %v2913 = vld [vmem:[#allocation9 + $0x158] sm:$0xff]
    %v2914 = vld [vmem:[#allocation9 + $0x160] sm:$0xff]
    %v2915 = vld [vmem:[#allocation9 + $0x168] sm:$0xff]
    %v2916 = vld [vmem:[#allocation9 + $0x170] sm:$0xff]
    %v2917 = vld [vmem:[#allocation9 + $0x178] sm:$0xff]
    %v2918 = vld [vmem:[#allocation9 + $0x180] sm:$0xff]
    %v2919 = vld [vmem:[#allocation9 + $0x188] sm:$0xff]
    %v2920 = vld [vmem:[#allocation9 + $0x190] sm:$0xff]
    %v2921 = vld [vmem:[#allocation9 + $0x198] sm:$0xff]
    %v2922 = vld [vmem:[#allocation9 + $0x1a0] sm:$0xff]
    %v2923 = vld [vmem:[#allocation9 + $0x1a8] sm:$0xff]
    %v2924 = vld [vmem:[#allocation9 + $0x1b0] sm:$0xff]
    %v2925 = vld [vmem:[#allocation9 + $0x1b8] sm:$0xff]
    %v2926 = vld [vmem:[#allocation9 + $0x1c0] sm:$0xff]
    %v2927 = vld [vmem:[#allocation9 + $0x1c8] sm:$0xff]
    %v2928 = vld [vmem:[#allocation9 + $0x1d0] sm:$0xff]
    %v2929 = vld [vmem:[#allocation9 + $0x1d8] sm:$0xff]
    %v2930 = vld [vmem:[#allocation9 + $0x1e0] sm:$0xff]
    %v2931 = vld [vmem:[#allocation9 + $0x1e8] sm:$0xff]
    %v2932 = vld [vmem:[#allocation9 + $0x1f0] sm:$0xff]
    %v2933 = vld [vmem:[#allocation9 + $0x1f8] sm:$0xff]
    %v2934 = vld [vmem:[#allocation9 + $0x200] sm:$0xff]
    %v2935 = vld [vmem:[#allocation9 + $0x208] sm:$0xff]
    %v2936 = vld [vmem:[#allocation9 + $0x210] sm:$0xff]
    %v2937 = vld [vmem:[#allocation9 + $0x218] sm:$0xff]
    %v2938 = vld [vmem:[#allocation9 + $0x220] sm:$0xff]
    %v2939 = vld [vmem:[#allocation9 + $0x228] sm:$0xff]
    %v2940 = vld [vmem:[#allocation9 + $0x230] sm:$0xff]
    %v2941 = vld [vmem:[#allocation9 + $0x238] sm:$0xff]
    %v2942 = vld [vmem:[#allocation9 + $0x240] sm:$0xff]
    %v2943 = vld [vmem:[#allocation9 + $0x248] sm:$0xff]
    %v2944 = vld [vmem:[#allocation9 + $0x250] sm:$0xff]
    %v2945 = vld [vmem:[#allocation9 + $0x258] sm:$0xff]
    %v2946 = vld [vmem:[#allocation9 + $0x260] sm:$0xff]
    %v2947 = vld [vmem:[#allocation9 + $0x268] sm:$0xff]
    %v2948 = vld [vmem:[#allocation9 + $0x270] sm:$0xff]
    %v2949 = vld [vmem:[#allocation9 + $0x278] sm:$0xff]
    %v2950 = vld [vmem:[#allocation9 + $0x280] sm:$0xff]
    %v2951 = vld [vmem:[#allocation9 + $0x288] sm:$0xff]
    %v2952 = vld [vmem:[#allocation9 + $0x290] sm:$0xff]
    %v2953 = vld [vmem:[#allocation9 + $0x298] sm:$0xff]
    %v2954 = vld [vmem:[#allocation9 + $0x2a0] sm:$0xff]
    %v2955 = vld [vmem:[#allocation9 + $0x2a8] sm:$0xff]
    %v2956 = vld [vmem:[#allocation9 + $0x2b0] sm:$0xff]
    %v2957 = vld [vmem:[#allocation9 + $0x2b8] sm:$0xff]
    %v2958 = vld [vmem:[#allocation9 + $0x2c0] sm:$0xff]
    %v2959 = vld [vmem:[#allocation9 + $0x2c8] sm:$0xff]
    %v2960 = vld [vmem:[#allocation9 + $0x2d0] sm:$0xff]
    %v2961 = vld [vmem:[#allocation9 + $0x2d8] sm:$0xff]
    %v2962 = vld [vmem:[#allocation9 + $0x2e0] sm:$0xff]
    %v2963 = vld [vmem:[#allocation9 + $0x2e8] sm:$0xff]
    %v2964 = vld [vmem:[#allocation9 + $0x2f0] sm:$0xff]
    %v2965 = vld [vmem:[#allocation9 + $0x2f8] sm:$0xff]
    %v2966 = vld [vmem:[#allocation9 + $0x300] sm:$0xff]
    %v2967 = vld [vmem:[#allocation9 + $0x308] sm:$0xff]
    %v2968 = vld [vmem:[#allocation9 + $0x310] sm:$0xff]
    %v2969 = vld [vmem:[#allocation9 + $0x318] sm:$0xff]
    %v2970 = vld [vmem:[#allocation9 + $0x320] sm:$0xff]
    %v2971 = vld [vmem:[#allocation9 + $0x328] sm:$0xff]
    %v2972 = vld [vmem:[#allocation9 + $0x330] sm:$0xff]
    %v2973 = vld [vmem:[#allocation9 + $0x338] sm:$0xff]
    %v2974 = vld [vmem:[#allocation9 + $0x340] sm:$0xff]
    %v2975 = vld [vmem:[#allocation9 + $0x348] sm:$0xff]
    %v2976 = vld [vmem:[#allocation9 + $0x350] sm:$0xff]
    %v2977 = vld [vmem:[#allocation9 + $0x358] sm:$0xff]
    %v2978 = vld [vmem:[#allocation9 + $0x360] sm:$0xff]
    %v2979 = vld [vmem:[#allocation9 + $0x368] sm:$0xff]
    %v2980 = vld [vmem:[#allocation9 + $0x370] sm:$0xff]
    %v2981 = vld [vmem:[#allocation9 + $0x378] sm:$0xff]
    %v2982 = vld [vmem:[#allocation9 + $0x380] sm:$0xff]
    %v2983 = vld [vmem:[#allocation9 + $0x388] sm:$0xff]
    %v2984 = vld [vmem:[#allocation9 + $0x390] sm:$0xff]
    %v2985 = vld [vmem:[#allocation9 + $0x398] sm:$0xff]
    %v2986 = vld [vmem:[#allocation9 + $0x3a0] sm:$0xff]
    %v2987 = vld [vmem:[#allocation9 + $0x3a8] sm:$0xff]
    %v2988 = vld [vmem:[#allocation9 + $0x3b0] sm:$0xff]
    %v2989 = vld [vmem:[#allocation9 + $0x3b8] sm:$0xff]
    %v2990 = vld [vmem:[#allocation9 + $0x3c0] sm:$0xff]
    %v2991 = vld [vmem:[#allocation9 + $0x3c8] sm:$0xff]
    %v2992 = vld [vmem:[#allocation9 + $0x3d0] sm:$0xff]
    %v2993 = vld [vmem:[#allocation9 + $0x3d8] sm:$0xff]
    %v2994 = vld [vmem:[#allocation9 + $0x3e0] sm:$0xff]
    %v2995 = vld [vmem:[#allocation9 + $0x3e8] sm:$0xff]
    %v2996 = vld [vmem:[#allocation9 + $0x3f0] sm:$0xff]
    %v2997 = vld [vmem:[#allocation9 + $0x3f8] sm:$0xff]
    %v2998 = vld [vmem:[#allocation10] sm:$0x1]
    %v3000 = vlaneseq
    %v3001 = vshrl.u32 %v3000, 7
    %v3002 = vsub.s32 0, %v3001
    %v3003 = vrot.slane %v2998, %v3002
    %3005 = vmatprep.subr.mxu0 0.0
    %3006 = vmatpush1.msra.mxu0 %v2870
    %3007 = vmatprep.subr.mxu0 0.0
    %3008 = vmatpush1.msra.mxu0 %v2871
    %3009 = vmatprep.subr.mxu0 0.0
    %3010 = vmatpush1.msra.mxu0 %v2872
    %3011 = vmatprep.subr.mxu0 0.0
    %3012 = vmatpush1.msra.mxu0 %v2873
    %3013 = vmatprep.subr.mxu0 0.0
    %3014 = vmatpush1.msra.mxu0 %v2874
    %3015 = vmatprep.subr.mxu0 0.0
    %3016 = vmatpush1.msra.mxu0 %v2875
    %3017 = vmatprep.subr.mxu0 0.0
    %3018 = vmatpush1.msra.mxu0 %v2876
    %3019 = vmatprep.subr.mxu0 0.0
    %3020 = vmatpush1.msra.mxu0 %v2877
    %3021 = vmatprep.subr.mxu0 0.0
    %3022 = vmatpush1.msra.mxu0 %v2878
    %3023 = vmatprep.subr.mxu0 0.0
    %3024 = vmatpush1.msra.mxu0 %v2879
    %3025 = vmatprep.subr.mxu0 0.0
    %3026 = vmatpush1.msra.mxu0 %v2880
    %3027 = vmatprep.subr.mxu0 0.0
    %3028 = vmatpush1.msra.mxu0 %v2881
    %3029 = vmatprep.subr.mxu0 0.0
    %3030 = vmatpush1.msra.mxu0 %v2882
    %3031 = vmatprep.subr.mxu0 0.0
    %3032 = vmatpush1.msra.mxu0 %v2883
    %3033 = vmatprep.subr.mxu0 0.0
    %3034 = vmatpush1.msra.mxu0 %v2884
    %3035 = vmatprep.subr.mxu0 0.0
    %3036 = vmatpush1.msra.mxu0 %v2885
    %3037 = vmatprep.subr.mxu0 0.0
    %3038 = vmatpush1.msra.mxu0 %v2886
    %3039 = vmatprep.subr.mxu0 0.0
    %3040 = vmatpush1.msra.mxu0 %v2887
    %3041 = vmatprep.subr.mxu0 0.0
    %3042 = vmatpush1.msra.mxu0 %v2888
    %3043 = vmatprep.subr.mxu0 0.0
    %3044 = vmatpush1.msra.mxu0 %v2889
    %3045 = vmatprep.subr.mxu0 0.0
    %3046 = vmatpush1.msra.mxu0 %v2890
    %3047 = vmatprep.subr.mxu0 0.0
    %3048 = vmatpush1.msra.mxu0 %v2891
    %3049 = vmatprep.subr.mxu0 0.0
    %3050 = vmatpush1.msra.mxu0 %v2892
    %3051 = vmatprep.subr.mxu0 0.0
    %3052 = vmatpush1.msra.mxu0 %v2893
    %3053 = vmatprep.subr.mxu0 0.0
    %3054 = vmatpush1.msra.mxu0 %v2894
    %3055 = vmatprep.subr.mxu0 0.0
    %3056 = vmatpush1.msra.mxu0 %v2895
    %3057 = vmatprep.subr.mxu0 0.0
    %3058 = vmatpush1.msra.mxu0 %v2896
    %3059 = vmatprep.subr.mxu0 0.0
    %3060 = vmatpush1.msra.mxu0 %v2897
    %3061 = vmatprep.subr.mxu0 0.0
    %3062 = vmatpush1.msra.mxu0 %v2898
    %3063 = vmatprep.subr.mxu0 0.0
    %3064 = vmatpush1.msra.mxu0 %v2899
    %3065 = vmatprep.subr.mxu0 0.0
    %3066 = vmatpush1.msra.mxu0 %v2900
    %3067 = vmatprep.subr.mxu0 0.0
    %3068 = vmatpush1.msra.mxu0 %v2901
    %3069 = vmatprep.mubr.f32.mxu0 %v2863
    %3070 = vmatmul.mubr.f32.gmra.mrb[0].mxu0 %v2862
    %v3071 = vpop.f32.mrb[0].mxu0
    %v3072 = vadd.f32 %v3003, %v3071
    %v3073 = vpop.f32.mrb[0].mxu0
    %3074 = vdwg.mxu0
    %3075 = vmatprep.subr.mxu0 0.0
    %3076 = vmatpush1.msra.mxu0 %v2902
    %3077 = vmatprep.subr.mxu0 0.0
    %3078 = vmatpush1.msra.mxu0 %v2903
    %3079 = vmatprep.subr.mxu0 0.0
    %3080 = vmatpush1.msra.mxu0 %v2904
    %3081 = vmatprep.subr.mxu0 0.0
    %3082 = vmatpush1.msra.mxu0 %v2905
    %3083 = vmatprep.subr.mxu0 0.0
    %3084 = vmatpush1.msra.mxu0 %v2906
    %3085 = vmatprep.subr.mxu0 0.0
    %3086 = vmatpush1.msra.mxu0 %v2907
    %3087 = vmatprep.subr.mxu0 0.0
    %3088 = vmatpush1.msra.mxu0 %v2908
    %3089 = vmatprep.subr.mxu0 0.0
    %3090 = vmatpush1.msra.mxu0 %v2909
    %3091 = vmatprep.subr.mxu0 0.0
    %3092 = vmatpush1.msra.mxu0 %v2910
    %3093 = vmatprep.subr.mxu0 0.0
    %3094 = vmatpush1.msra.mxu0 %v2911
    %3095 = vmatprep.subr.mxu0 0.0
    %3096 = vmatpush1.msra.mxu0 %v2912
    %3097 = vmatprep.subr.mxu0 0.0
    %3098 = vmatpush1.msra.mxu0 %v2913
    %3099 = vmatprep.subr.mxu0 0.0
    %3100 = vmatpush1.msra.mxu0 %v2914
    %3101 = vmatprep.subr.mxu0 0.0
    %3102 = vmatpush1.msra.mxu0 %v2915
    %3103 = vmatprep.subr.mxu0 0.0
    %3104 = vmatpush1.msra.mxu0 %v2916
    %3105 = vmatprep.subr.mxu0 0.0
    %3106 = vmatpush1.msra.mxu0 %v2917
    %3107 = vmatprep.subr.mxu0 0.0
    %3108 = vmatpush1.msra.mxu0 %v2918
    %3109 = vmatprep.subr.mxu0 0.0
    %3110 = vmatpush1.msra.mxu0 %v2919
    %3111 = vmatprep.subr.mxu0 0.0
    %3112 = vmatpush1.msra.mxu0 %v2920
    %3113 = vmatprep.subr.mxu0 0.0
    %3114 = vmatpush1.msra.mxu0 %v2921
    %3115 = vmatprep.subr.mxu0 0.0
    %3116 = vmatpush1.msra.mxu0 %v2922
    %3117 = vmatprep.subr.mxu0 0.0
    %3118 = vmatpush1.msra.mxu0 %v2923
    %3119 = vmatprep.subr.mxu0 0.0
    %3120 = vmatpush1.msra.mxu0 %v2924
    %3121 = vmatprep.subr.mxu0 0.0
    %3122 = vmatpush1.msra.mxu0 %v2925
    %3123 = vmatprep.subr.mxu0 0.0
    %3124 = vmatpush1.msra.mxu0 %v2926
    %3125 = vmatprep.subr.mxu0 0.0
    %3126 = vmatpush1.msra.mxu0 %v2927
    %3127 = vmatprep.subr.mxu0 0.0
    %3128 = vmatpush1.msra.mxu0 %v2928
    %3129 = vmatprep.subr.mxu0 0.0
    %3130 = vmatpush1.msra.mxu0 %v2929
    %3131 = vmatprep.subr.mxu0 0.0
    %3132 = vmatpush1.msra.mxu0 %v2930
    %3133 = vmatprep.subr.mxu0 0.0
    %3134 = vmatpush1.msra.mxu0 %v2931
    %3135 = vmatprep.subr.mxu0 0.0
    %3136 = vmatpush1.msra.mxu0 %v2932
    %3137 = vmatprep.subr.mxu0 0.0
    %3138 = vmatpush1.msra.mxu0 %v2933
    %3139 = vmatprep.mubr.f32.mxu0 %v2865
    %3140 = vmatmul.mubr.f32.gmra.mrb[0].mxu0 %v2864
    %v3141 = vpop.f32.mrb[0].mxu0
    %v3142 = vadd.f32 %v3072, %v3141
    %v3143 = vpop.f32.mrb[0].mxu0
    %3144 = vdwg.mxu0
    %3145 = vmatprep.subr.mxu0 0.0
    %3146 = vmatpush1.msra.mxu0 %v2934
    %3147 = vmatprep.subr.mxu0 0.0
    %3148 = vmatpush1.msra.mxu0 %v2935
    %3149 = vmatprep.subr.mxu0 0.0
    %3150 = vmatpush1.msra.mxu0 %v2936
    %3151 = vmatprep.subr.mxu0 0.0
    %3152 = vmatpush1.msra.mxu0 %v2937
    %3153 = vmatprep.subr.mxu0 0.0
    %3154 = vmatpush1.msra.mxu0 %v2938
    %3155 = vmatprep.subr.mxu0 0.0
    %3156 = vmatpush1.msra.mxu0 %v2939
    %3157 = vmatprep.subr.mxu0 0.0
    %3158 = vmatpush1.msra.mxu0 %v2940
    %3159 = vmatprep.subr.mxu0 0.0
    %3160 = vmatpush1.msra.mxu0 %v2941
    %3161 = vmatprep.subr.mxu0 0.0
    %3162 = vmatpush1.msra.mxu0 %v2942
    %3163 = vmatprep.subr.mxu0 0.0
    %3164 = vmatpush1.msra.mxu0 %v2943
    %3165 = vmatprep.subr.mxu0 0.0
    %3166 = vmatpush1.msra.mxu0 %v2944
    %3167 = vmatprep.subr.mxu0 0.0
    %3168 = vmatpush1.msra.mxu0 %v2945
    %3169 = vmatprep.subr.mxu0 0.0
    %3170 = vmatpush1.msra.mxu0 %v2946
    %3171 = vmatprep.subr.mxu0 0.0
    %3172 = vmatpush1.msra.mxu0 %v2947
    %3173 = vmatprep.subr.mxu0 0.0
    %3174 = vmatpush1.msra.mxu0 %v2948
    %3175 = vmatprep.subr.mxu0 0.0
    %3176 = vmatpush1.msra.mxu0 %v2949
    %3177 = vmatprep.subr.mxu0 0.0
    %3178 = vmatpush1.msra.mxu0 %v2950
    %3179 = vmatprep.subr.mxu0 0.0
    %3180 = vmatpush1.msra.mxu0 %v2951
    %3181 = vmatprep.subr.mxu0 0.0
    %3182 = vmatpush1.msra.mxu0 %v2952
    %3183 = vmatprep.subr.mxu0 0.0
    %3184 = vmatpush1.msra.mxu0 %v2953
    %3185 = vmatprep.subr.mxu0 0.0
    %3186 = vmatpush1.msra.mxu0 %v2954
    %3187 = vmatprep.subr.mxu0 0.0
    %3188 = vmatpush1.msra.mxu0 %v2955
    %3189 = vmatprep.subr.mxu0 0.0
    %3190 = vmatpush1.msra.mxu0 %v2956
    %3191 = vmatprep.subr.mxu0 0.0
    %3192 = vmatpush1.msra.mxu0 %v2957
    %3193 = vmatprep.subr.mxu0 0.0
    %3194 = vmatpush1.msra.mxu0 %v2958
    %3195 = vmatprep.subr.mxu0 0.0
    %3196 = vmatpush1.msra.mxu0 %v2959
    %3197 = vmatprep.subr.mxu0 0.0
    %3198 = vmatpush1.msra.mxu0 %v2960
    %3199 = vmatprep.subr.mxu0 0.0
    %3200 = vmatpush1.msra.mxu0 %v2961
    %3201 = vmatprep.subr.mxu0 0.0
    %3202 = vmatpush1.msra.mxu0 %v2962
    %3203 = vmatprep.subr.mxu0 0.0
    %3204 = vmatpush1.msra.mxu0 %v2963
    %3205 = vmatprep.subr.mxu0 0.0
    %3206 = vmatpush1.msra.mxu0 %v2964
    %3207 = vmatprep.subr.mxu0 0.0
    %3208 = vmatpush1.msra.mxu0 %v2965
    %3209 = vmatprep.mubr.f32.mxu0 %v2867
    %3210 = vmatmul.mubr.f32.gmra.mrb[0].mxu0 %v2866
    %v3211 = vpop.f32.mrb[0].mxu0
    %v3212 = vadd.f32 %v3142, %v3211
    %v3213 = vpop.f32.mrb[0].mxu0
    %3214 = vdwg.mxu0
    %3215 = vmatprep.subr.mxu0 0.0
    %3216 = vmatpush1.msra.mxu0 %v2966
    %3217 = vmatprep.subr.mxu0 0.0
    %3218 = vmatpush1.msra.mxu0 %v2967
    %3219 = vmatprep.subr.mxu0 0.0
    %3220 = vmatpush1.msra.mxu0 %v2968
    %3221 = vmatprep.subr.mxu0 0.0
    %3222 = vmatpush1.msra.mxu0 %v2969
    %3223 = vmatprep.subr.mxu0 0.0
    %3224 = vmatpush1.msra.mxu0 %v2970
    %3225 = vmatprep.subr.mxu0 0.0
    %3226 = vmatpush1.msra.mxu0 %v2971
    %3227 = vmatprep.subr.mxu0 0.0
    %3228 = vmatpush1.msra.mxu0 %v2972
    %3229 = vmatprep.subr.mxu0 0.0
    %3230 = vmatpush1.msra.mxu0 %v2973
    %3231 = vmatprep.subr.mxu0 0.0
    %3232 = vmatpush1.msra.mxu0 %v2974
    %3233 = vmatprep.subr.mxu0 0.0
    %3234 = vmatpush1.msra.mxu0 %v2975
    %3235 = vmatprep.subr.mxu0 0.0
    %3236 = vmatpush1.msra.mxu0 %v2976
    %3237 = vmatprep.subr.mxu0 0.0
    %3238 = vmatpush1.msra.mxu0 %v2977
    %3239 = vmatprep.subr.mxu0 0.0
    %3240 = vmatpush1.msra.mxu0 %v2978
    %3241 = vmatprep.subr.mxu0 0.0
    %3242 = vmatpush1.msra.mxu0 %v2979
    %3243 = vmatprep.subr.mxu0 0.0
    %3244 = vmatpush1.msra.mxu0 %v2980
    %3245 = vmatprep.subr.mxu0 0.0
    %3246 = vmatpush1.msra.mxu0 %v2981
    %3247 = vmatprep.subr.mxu0 0.0
    %3248 = vmatpush1.msra.mxu0 %v2982
    %3249 = vmatprep.subr.mxu0 0.0
    %3250 = vmatpush1.msra.mxu0 %v2983
    %3251 = vmatprep.subr.mxu0 0.0
    %3252 = vmatpush1.msra.mxu0 %v2984
    %3253 = vmatprep.subr.mxu0 0.0
    %3254 = vmatpush1.msra.mxu0 %v2985
    %3255 = vmatprep.subr.mxu0 0.0
    %3256 = vmatpush1.msra.mxu0 %v2986
    %3257 = vmatprep.subr.mxu0 0.0
    %3258 = vmatpush1.msra.mxu0 %v2987
    %3259 = vmatprep.subr.mxu0 0.0
    %3260 = vmatpush1.msra.mxu0 %v2988
    %3261 = vmatprep.subr.mxu0 0.0
    %3262 = vmatpush1.msra.mxu0 %v2989
    %3263 = vmatprep.subr.mxu0 0.0
    %3264 = vmatpush1.msra.mxu0 %v2990
    %3265 = vmatprep.subr.mxu0 0.0
    %3266 = vmatpush1.msra.mxu0 %v2991
    %3267 = vmatprep.subr.mxu0 0.0
    %3268 = vmatpush1.msra.mxu0 %v2992
    %3269 = vmatprep.subr.mxu0 0.0
    %3270 = vmatpush1.msra.mxu0 %v2993
    %3271 = vmatprep.subr.mxu0 0.0
    %3272 = vmatpush1.msra.mxu0 %v2994
    %3273 = vmatprep.subr.mxu0 0.0
    %3274 = vmatpush1.msra.mxu0 %v2995
    %3275 = vmatprep.subr.mxu0 0.0
    %3276 = vmatpush1.msra.mxu0 %v2996
    %3277 = vmatprep.subr.mxu0 0.0
    %3278 = vmatpush1.msra.mxu0 %v2997
    %3279 = vmatprep.mubr.f32.mxu0 %v2869
    %3280 = vmatmul.mubr.f32.gmra.mrb[0].mxu0 %v2868
    %v3281 = vpop.f32.mrb[0].mxu0
    %v3282 = vadd.f32 %v3212, %v3281
    %v3283 = vpop.f32.mrb[0].mxu0
    %3284 = vdwg.mxu0
    %v3285 = vmul.f32 %v3282, 0.5
    %v3286 = vmul.f32 %v3282, 0.70710677
    %v3287 = verf.f32.pop %v3286
    %v3288 = vadd.f32 %v3287, 1.0
    %v3289 = vmul.f32 %v3285, %v3288
    %v3290 = vld [vmem:[#allocation12] sm:$0xff]
    %v3291 = vld [vmem:[#allocation12 + $0x8] sm:$0xff]
    %v3292 = vld [vmem:[#allocation12 + $0x10] sm:$0xff]
    %v3293 = vld [vmem:[#allocation12 + $0x18] sm:$0xff]
    %v3294 = vld [vmem:[#allocation12 + $0x20] sm:$0xff]
    %v3295 = vld [vmem:[#allocation12 + $0x28] sm:$0xff]
    %v3296 = vld [vmem:[#allocation12 + $0x30] sm:$0xff]
    %v3297 = vld [vmem:[#allocation12 + $0x38] sm:$0xff]
    %v3298 = vld [vmem:[#allocation12 + $0x40] sm:$0xff]
    %v3299 = vld [vmem:[#allocation12 + $0x48] sm:$0xff]
    %v3300 = vld [vmem:[#allocation12 + $0x50] sm:$0xff]
    %v3301 = vld [vmem:[#allocation12 + $0x58] sm:$0xff]
    %v3302 = vld [vmem:[#allocation12 + $0x60] sm:$0xff]
    %v3303 = vld [vmem:[#allocation12 + $0x68] sm:$0xff]
    %v3304 = vld [vmem:[#allocation12 + $0x70] sm:$0xff]
    %v3305 = vld [vmem:[#allocation12 + $0x78] sm:$0xff]
    %v3306 = vld [vmem:[#allocation13] sm:$0x1]
    %v3308 = vlaneseq
    %v3309 = vshrl.u32 %v3308, 7
    %v3310 = vsub.s32 0, %v3309
    %v3311 = vrot.slane %v3306, %v3310
    %3313 = vmatprep.subr.mxu0 0.0
    %3314 = vmatpush1.msra.mxu0 %v3290
    %3315 = vmatprep.subr.mxu0 0.0
    %3316 = vmatpush1.msra.mxu0 %v3291
    %3317 = vmatprep.subr.mxu0 0.0
    %3318 = vmatpush1.msra.mxu0 %v3292
    %3319 = vmatprep.subr.mxu0 0.0
    %3320 = vmatpush1.msra.mxu0 %v3293
    %3321 = vmatprep.subr.mxu0 0.0
    %3322 = vmatpush1.msra.mxu0 %v3294
    %3323 = vmatprep.subr.mxu0 0.0
    %3324 = vmatpush1.msra.mxu0 %v3295
    %3325 = vmatprep.subr.mxu0 0.0
    %3326 = vmatpush1.msra.mxu0 %v3296
    %3327 = vmatprep.subr.mxu0 0.0
    %3328 = vmatpush1.msra.mxu0 %v3297
    %3329 = vmatprep.subr.mxu0 0.0
    %3330 = vmatpush1.msra.mxu0 %v3298
    %3331 = vmatprep.subr.mxu0 0.0
    %3332 = vmatpush1.msra.mxu0 %v3299
    %3333 = vmatprep.subr.mxu0 0.0
    %3334 = vmatpush1.msra.mxu0 %v3300
    %3335 = vmatprep.subr.mxu0 0.0
    %3336 = vmatpush1.msra.mxu0 %v3301
    %3337 = vmatprep.subr.mxu0 0.0
    %3338 = vmatpush1.msra.mxu0 %v3302
    %3339 = vmatprep.subr.mxu0 0.0
    %3340 = vmatpush1.msra.mxu0 %v3303
    %3341 = vmatprep.subr.mxu0 0.0
    %3342 = vmatpush1.msra.mxu0 %v3304
    %3343 = vmatprep.subr.mxu0 0.0
    %3344 = vmatpush1.msra.mxu0 %v3305
    %3345 = vmatprep.subr.mxu0 0.0
    %3346 = vmatpush1.msra.mxu0 0.0
    %3347 = vmatprep.subr.mxu0 0.0
    %3348 = vmatpush1.msra.mxu0 0.0
    %3349 = vmatprep.subr.mxu0 0.0
    %3350 = vmatpush1.msra.mxu0 0.0
    %3351 = vmatprep.subr.mxu0 0.0
    %3352 = vmatpush1.msra.mxu0 0.0
    %3353 = vmatprep.subr.mxu0 0.0
    %3354 = vmatpush1.msra.mxu0 0.0
    %3355 = vmatprep.subr.mxu0 0.0
    %3356 = vmatpush1.msra.mxu0 0.0
    %3357 = vmatprep.subr.mxu0 0.0
    %3358 = vmatpush1.msra.mxu0 0.0
    %3359 = vmatprep.subr.mxu0 0.0
    %3360 = vmatpush1.msra.mxu0 0.0
    %3361 = vmatprep.subr.mxu0 0.0
    %3362 = vmatpush1.msra.mxu0 0.0
    %3363 = vmatprep.subr.mxu0 0.0
    %3364 = vmatpush1.msra.mxu0 0.0
    %3365 = vmatprep.subr.mxu0 0.0
    %3366 = vmatpush1.msra.mxu0 0.0
    %3367 = vmatprep.subr.mxu0 0.0
    %3368 = vmatpush1.msra.mxu0 0.0
    %3369 = vmatprep.subr.mxu0 0.0
    %3370 = vmatpush1.msra.mxu0 0.0
    %3371 = vmatprep.subr.mxu0 0.0
    %3372 = vmatpush1.msra.mxu0 0.0
    %3373 = vmatprep.subr.mxu0 0.0
    %3374 = vmatpush1.msra.mxu0 0.0
    %3375 = vmatprep.subr.mxu0 0.0
    %3376 = vmatpush1.msra.mxu0 0.0
    %3377 = vmatprep.mubr.f32.mxu0 0.0
    %3378 = vmatmul.mubr.f32.gmra.mrb[0].mxu0 %v3289
    %v3379 = vpop.f32.mrb[0].mxu0
    %v3380 = vadd.f32 %v3311, %v3379
    %v3381 = vpop.f32.mrb[0].mxu0
    %3382 = vdwg.mxu0
    %3383 = vst [vmem:[%s9] sm:$0xff] %v3380
    // Predicated region
    $region70: #{_gelu_net_jit.1} parent=1 // pred_check
      _
    $region71: #{_gelu_net_jit.1} parent=1 // pred_check_branch
      %3385 = sbr.rel (0) target = $region73
    $region72: #{_gelu_net_jit.1} parent=1 // pred_region
      _
    $region73: #{_gelu_net_jit.1} parent=1 // pred_fallthru
      _
    // Predicated region
    $region74: #{_gelu_net_jit.1} parent=1 // pred_check
      _
    $region75: #{_gelu_net_jit.1} parent=1 // pred_check_branch
      %3387 = sbr.rel (0) target = $region77
    $region76: #{_gelu_net_jit.1} parent=1 // pred_region
      _
    $region77: #{_gelu_net_jit.1} parent=1 // pred_fallthru
      _
    %3388 = vsyncpa [#allocation3], 1
    %3389 = vsyncpa [#allocation5], 1
    %3390 = vsyncpa [#allocation8], 1
    %3391 = vsyncpa [#allocation11], 1
    %3392 = vsyncpa [#allocation14], 1

</llo_original>
